<compile_context>
chip_gen: v7x
topology: tpu7x:2x2x1
jax: 0.10.0
libtpu: 0.0.40
codegen_flags: <defaults>
</compile_context>

<pallas_src>
import functools

import jax
import jax.numpy as jnp
from jax import lax
from jax.experimental import pallas as pl
from jax.experimental.pallas import tpu as pltpu

BN_EPS = 1e-5


# --------------------------------------------------------------------------
# In-kernel helpers
# --------------------------------------------------------------------------
def _im2col_3x3(x3):
    """x3: (H, W, C) f32 -> (Ho*Wo, 9*C) patch matrix, (ky, kx, c) minor order."""
    h, w, c = x3.shape
    ho, wo = h - 2, w - 2
    taps = [x3[ky:ky + ho, kx:kx + wo, :]
            for ky in range(3) for kx in range(3)]          # 9 x (Ho, Wo, C)
    patches = jnp.concatenate(taps, axis=-1)                # (Ho, Wo, 9*C)
    return patches.reshape(ho * wo, 9 * c)                  # (M, 9*C)


def _accumulate_stats(stats_ref, y2d):
    """Accumulate per-channel [sum; sum_of_squares] into a resident (2,C) output."""
    @pl.when(pl.program_id(0) == 0)
    def _():
        stats_ref[...] = jnp.zeros_like(stats_ref)
    ysum = jnp.sum(y2d, axis=0, keepdims=True)              # (1, C)
    ysq = jnp.sum(y2d * y2d, axis=0, keepdims=True)         # (1, C)
    stats_ref[...] += jnp.concatenate([ysum, ysq], axis=0)  # (2, C)


# --------------------------------------------------------------------------
# Kernels
# --------------------------------------------------------------------------
def conv1_stats_kernel(x_ref, w1_ref, y_ref, stats_ref):
    """conv1 (single im2col matmul) + BN1 partial sums for one image."""
    x3 = x_ref[0].astype(jnp.float32)                       # (H, W, Cin)
    patches = _im2col_3x3(x3)                               # (M1, 9*Cin)
    y2d = jnp.dot(patches, w1_ref[...],
                  preferred_element_type=jnp.float32)       # (M1, Cout)
    y_ref[...] = y2d[None].astype(y_ref.dtype)              # (1, M1, Cout)
    _accumulate_stats(stats_ref, y2d)


def bn1_conv2_stats_kernel(y_ref, a1_ref, c1_ref, w2_ref, z_ref, stats_ref,
                           *, ho1, wo1):
    """Apply BN1+ReLU (folded scale/shift), conv2, BN2 partial sums."""
    y2d = y_ref[0].astype(jnp.float32)                      # (M1, Cout)
    yact = jnp.maximum(y2d * a1_ref[...] + c1_ref[...], 0.0)
    y3 = yact.reshape(ho1, wo1, yact.shape[-1])             # (Ho1, Wo1, Cout)
    patches = _im2col_3x3(y3)                               # (M2, 9*Cout)
    z2d = jnp.dot(patches, w2_ref[...],
                  preferred_element_type=jnp.float32)       # (M2, Cout)
    z_ref[...] = z2d[None].astype(z_ref.dtype)
    _accumulate_stats(stats_ref, z2d)


def bn2_relu_kernel(z_ref, a2_ref, c2_ref, o_ref):
    """Apply BN2+ReLU (folded scale/shift)."""
    z2d = z_ref[0].astype(jnp.float32)                      # (M2, Cout)
    o_ref[...] = jnp.maximum(z2d * a2_ref[...] + c2_ref[...], 0.0)[None] \
        .astype(o_ref.dtype)


# --------------------------------------------------------------------------
# Wrapper
# --------------------------------------------------------------------------
def _finalize_bn(stats, gamma, beta, count):
    """Fold batch mean/var + gamma/beta into per-channel scale/shift (1, C)."""
    mean = stats[0] / count
    var = jnp.maximum(stats[1] / count - mean * mean, 0.0)  # biased, as PyTorch train mode
    scale = gamma * lax.rsqrt(var + BN_EPS)
    shift = beta - mean * scale
    return (scale.reshape(1, -1).astype(jnp.float32),
            shift.reshape(1, -1).astype(jnp.float32))


@jax.jit
def block_forward(x_nchw, w1, b1, g1, be1, w2, b2, g2, be2):
    """x_nchw: (N, Cin, H, W). Returns (N, Cout, H-4, W-4), matching PyTorch."""
    # Conv biases are exactly cancelled by the train-mode BatchNorm that
    # follows each conv; accepted for API parity but not used.
    del b1, b2

    n, cin, h, w = x_nchw.shape
    cout = w1.shape[0]
    ho1, wo1 = h - 2, w - 2
    ho2, wo2 = ho1 - 2, wo1 - 2
    m1, m2 = ho1 * wo1, ho2 * wo2

    # NCHW -> NHWC; OIHW -> flattened HWIO, matching the im2col column order.
    x = jnp.transpose(x_nchw, (0, 2, 3, 1)).astype(jnp.float32)
    w1f = jnp.transpose(w1, (2, 3, 1, 0)).reshape(9 * cin, cout).astype(jnp.float32)
    w2f = jnp.transpose(w2, (2, 3, 1, 0)).reshape(9 * cout, cout).astype(jnp.float32)

    cp_acc = pltpu.CompilerParams(dimension_semantics=("arbitrary",),
                                  vmem_limit_bytes=32 * 1024 * 1024)
    cp_par = pltpu.CompilerParams(dimension_semantics=("parallel",),
                                  vmem_limit_bytes=32 * 1024 * 1024)

    # ---- pass 1: conv1 + BN1 partial sums --------------------------------
    y_raw, stats1 = pl.pallas_call(
        conv1_stats_kernel,
        grid=(n,),
        in_specs=[
            pl.BlockSpec((1, h, w, cin), lambda i: (i, 0, 0, 0)),
            pl.BlockSpec((9 * cin, cout), lambda i: (0, 0)),
        ],
        out_specs=[
            pl.BlockSpec((1, m1, cout), lambda i: (i, 0, 0)),
            pl.BlockSpec((2, cout), lambda i: (0, 0)),       # resident accumulator
        ],
        out_shape=[
            jax.ShapeDtypeStruct((n, m1, cout), jnp.float32),
            jax.ShapeDtypeStruct((2, cout), jnp.float32),
        ],
        compiler_params=cp_acc,
    )(x, w1f)

    a1, c1 = _finalize_bn(stats1, g1, be1, n * m1)

    # ---- pass 2: BN1+ReLU + conv2 + BN2 partial sums ----------------------
    kernel2 = functools.partial(bn1_conv2_stats_kernel, ho1=ho1, wo1=wo1)
    z_raw, stats2 = pl.pallas_call(
        kernel2,
        grid=(n,),
        in_specs=[
            pl.BlockSpec((1, m1, cout), lambda i: (i, 0, 0)),
            pl.BlockSpec((1, cout), lambda i: (0, 0)),
            pl.BlockSpec((1, cout), lambda i: (0, 0)),
            pl.BlockSpec((9 * cout, cout), lambda i: (0, 0)),
        ],
        out_specs=[
            pl.BlockSpec((1, m2, cout), lambda i: (i, 0, 0)),
            pl.BlockSpec((2, cout), lambda i: (0, 0)),       # resident accumulator
        ],
        out_shape=[
            jax.ShapeDtypeStruct((n, m2, cout), jnp.float32),
            jax.ShapeDtypeStruct((2, cout), jnp.float32),
        ],
        compiler_params=cp_acc,
    )(y_raw, a1, c1, w2f)

    a2, c2 = _finalize_bn(stats2, g2, be2, n * m2)

    # ---- pass 3: BN2+ReLU --------------------------------------------------
    out_flat = pl.pallas_call(
        bn2_relu_kernel,
        grid=(n,),
        in_specs=[
            pl.BlockSpec((1, m2, cout), lambda i: (i, 0, 0)),
            pl.BlockSpec((1, cout), lambda i: (0, 0)),
            pl.BlockSpec((1, cout), lambda i: (0, 0)),
        ],
        out_specs=pl.BlockSpec((1, m2, cout), lambda i: (i, 0, 0)),
        out_shape=jax.ShapeDtypeStruct((n, m2, cout), jnp.float32),
        compiler_params=cp_par,
    )(z_raw, a2, c2)

    out_nhwc = out_flat.reshape(n, ho2, wo2, cout)
    return jnp.transpose(out_nhwc, (0, 3, 1, 2))             # back to NCHW


# --------------------------------------------------------------------------
# Pure-JAX reference (NCHW / OIHW), matches PyTorch train-mode BN.
# --------------------------------------------------------------------------
def _reference(x, w1, b1, g1, be1, w2, b2, g2, be2):
    dn = ("NCHW", "OIHW", "NCHW")

    def conv_bn_relu(inp, w, b, g, be):
        y = lax.conv_general_dilated(inp, w, (1, 1), "VALID",
                                     dimension_numbers=dn)
        y = y + b.reshape(1, -1, 1, 1)
        mean = jnp.mean(y, axis=(0, 2, 3), keepdims=True)
        var = jnp.mean((y - mean) ** 2, axis=(0, 2, 3), keepdims=True)
        yhat = (y - mean) * lax.rsqrt(var + BN_EPS)
        return jnp.maximum(yhat * g.reshape(1, -1, 1, 1)
                           + be.reshape(1, -1, 1, 1), 0.0)

    y = conv_bn_relu(x, w1, b1, g1, be1)
    return conv_bn_relu(y, w2, b2, g2, be2)


if __name__ == "__main__":
    key = jax.random.PRNGKey(0)
    N, C_IN, C_OUT, H, W = 2, 4, 8, 16, 16

    ks = jax.random.split(key, 9)
    x = jax.random.normal(ks[0], (N, C_IN, H, W), jnp.float32)
    w1 = jax.random.normal(ks[1], (C_OUT, C_IN, 3, 3), jnp.float32) * 0.1
    b1 = jax.random.normal(ks[2], (C_OUT,), jnp.float32) * 0.1
    g1 = 1.0 + 0.1 * jax.random.normal(ks[3], (C_OUT,), jnp.float32)
    be1 = 0.1 * jax.random.normal(ks[4], (C_OUT,), jnp.float32)
    w2 = jax.random.normal(ks[5], (C_OUT, C_OUT, 3, 3), jnp.float32) * 0.1
    b2 = jax.random.normal(ks[6], (C_OUT,), jnp.float32) * 0.1
    g2 = 1.0 + 0.1 * jax.random.normal(ks[7], (C_OUT,), jnp.float32)
    be2 = 0.1 * jax.random.normal(ks[8], (C_OUT,), jnp.float32)

    out = block_forward(x, w1, b1, g1, be1, w2, b2, g2, be2)
    out = jax.block_until_ready(out)
    assert out.shape == (N, C_OUT, H - 4, W - 4), out.shape

    ref = _reference(x, w1, b1, g1, be1, w2, b2, g2, be2)
    max_err = float(jnp.max(jnp.abs(out - ref)))
    assert jnp.allclose(out, ref, rtol=1e-4, atol=1e-4), max_err

    print("KERNEL_OK")
</pallas_src>

<mosaic_0001>
module attributes {stable_mosaic.version = 11 : i64} {
  func.func @conv1_stats_kernel(%arg0: i32, %arg1: memref<1x16x16x4xf32, #tpu.memory_space<vmem>>, %arg2: memref<36x8xf32, #tpu.memory_space<vmem>>, %arg3: memref<1x196x8xf32, #tpu.memory_space<vmem>>, %arg4: memref<2x8xf32, #tpu.memory_space<vmem>>) attributes {dimension_semantics = [#tpu.dimension_semantics<arbitrary>], iteration_bounds = array<i64: 2>, scalar_prefetch = 0 : i64, scratch_operands = 0 : i64, tpu.core_type = #tpu.core_type<tc>, window_params = [{transform_indices = @transform_0, window_bounds = array<i64: 1, 16, 16, 4>}, {pipeline_mode = #tpu.pipeline_mode<synchronous>, transform_indices = @transform_1, window_bounds = array<i64: 36, 8>}, {transform_indices = @transform_2, window_bounds = array<i64: 1, 196, 8>}, {pipeline_mode = #tpu.pipeline_mode<synchronous>, transform_indices = @transform_3, window_bounds = array<i64: 2, 8>}]} {
    %c0 = arith.constant 0 : index
    %c0_0 = arith.constant 0 : index
    %c0_1 = arith.constant 0 : index
    %c0_2 = arith.constant 0 : index
    %0 = vector.load %arg1[%c0, %c0_0, %c0_1, %c0_2] : memref<1x16x16x4xf32, #tpu.memory_space<vmem>>, vector<1x16x16x4xf32>
    %1 = vector.shape_cast %0 : vector<1x16x16x4xf32> to vector<16x16x4xf32>
    %2 = vector.extract_strided_slice %1 {offsets = [0, 0, 0], sizes = [14, 14, 4], strides = [1, 1, 1]} : vector<16x16x4xf32> to vector<14x14x4xf32>
    %3 = vector.extract_strided_slice %1 {offsets = [0, 1, 0], sizes = [14, 14, 4], strides = [1, 1, 1]} : vector<16x16x4xf32> to vector<14x14x4xf32>
    %4 = vector.extract_strided_slice %1 {offsets = [0, 2, 0], sizes = [14, 14, 4], strides = [1, 1, 1]} : vector<16x16x4xf32> to vector<14x14x4xf32>
    %5 = vector.extract_strided_slice %1 {offsets = [1, 0, 0], sizes = [14, 14, 4], strides = [1, 1, 1]} : vector<16x16x4xf32> to vector<14x14x4xf32>
    %6 = vector.extract_strided_slice %1 {offsets = [1, 1, 0], sizes = [14, 14, 4], strides = [1, 1, 1]} : vector<16x16x4xf32> to vector<14x14x4xf32>
    %7 = vector.extract_strided_slice %1 {offsets = [1, 2, 0], sizes = [14, 14, 4], strides = [1, 1, 1]} : vector<16x16x4xf32> to vector<14x14x4xf32>
    %8 = vector.extract_strided_slice %1 {offsets = [2, 0, 0], sizes = [14, 14, 4], strides = [1, 1, 1]} : vector<16x16x4xf32> to vector<14x14x4xf32>
    %9 = vector.extract_strided_slice %1 {offsets = [2, 1, 0], sizes = [14, 14, 4], strides = [1, 1, 1]} : vector<16x16x4xf32> to vector<14x14x4xf32>
    %10 = vector.extract_strided_slice %1 {offsets = [2, 2, 0], sizes = [14, 14, 4], strides = [1, 1, 1]} : vector<16x16x4xf32> to vector<14x14x4xf32>
    %11 = tpu.concatenate %2, %3, %4, %5, %6, %7, %8, %9, %10 in 2 : vector<14x14x4xf32>, vector<14x14x4xf32>, vector<14x14x4xf32>, vector<14x14x4xf32>, vector<14x14x4xf32>, vector<14x14x4xf32>, vector<14x14x4xf32>, vector<14x14x4xf32>, vector<14x14x4xf32> -> vector<14x14x36xf32>
    %12 = vector.shape_cast %11 : vector<14x14x36xf32> to vector<196x36xf32>
    %c0_3 = arith.constant 0 : index
    %c0_4 = arith.constant 0 : index
    %13 = vector.load %arg2[%c0_3, %c0_4] : memref<36x8xf32, #tpu.memory_space<vmem>>, vector<36x8xf32>
    %cst = arith.constant dense<0.000000e+00> : vector<196x8xf32>
    %14 = tpu.matmul %12, %13, %cst {dimension_numbers = #tpu.dot_dimension_numbers<[1], [0], [0], [1], [0, 0, 1, 1], [], []>} : vector<196x36xf32>, vector<36x8xf32>, vector<196x8xf32> -> vector<196x8xf32>
    %15 = vector.shape_cast %14 : vector<196x8xf32> to vector<1x196x8xf32>
    %c0_5 = arith.constant 0 : index
    %c0_6 = arith.constant 0 : index
    %c0_7 = arith.constant 0 : index
    %16 = vector.load %arg3[%c0_5, %c0_6, %c0_7] : memref<1x196x8xf32, #tpu.memory_space<vmem>>, vector<1x196x8xf32>
    tpu.vector_store %arg3[%c0_5, %c0_6, %c0_7], %15 {strides = array<i32>} : memref<1x196x8xf32, #tpu.memory_space<vmem>>, vector<1x196x8xf32>,
    %c0_i32 = arith.constant 0 : i32
    %17 = arith.cmpi eq, %arg0, %c0_i32 : i32
    %18 = arith.extui %17 : i1 to i32
    %c0_i32_8 = arith.constant 0 : i32
    %19 = arith.cmpi ne, %18, %c0_i32_8 : i32
    scf.if %19 {
      %cst_15 = arith.constant 0.000000e+00 : f32
      %29 = vector.broadcast %cst_15 : f32 to vector<2x8xf32>
      %c0_16 = arith.constant 0 : index
      %c0_17 = arith.constant 0 : index
      %30 = vector.load %arg4[%c0_16, %c0_17] : memref<2x8xf32, #tpu.memory_space<vmem>>, vector<2x8xf32>
      tpu.vector_store %arg4[%c0_16, %c0_17], %29 {strides = array<i32>} : memref<2x8xf32, #tpu.memory_space<vmem>>, vector<2x8xf32>,
    } else {
    }
    %cst_9 = arith.constant dense<0.000000e+00> : vector<8xf32>
    %20 = vector.multi_reduction <add>, %14, %cst_9 [0] : vector<196x8xf32> to vector<8xf32>
    %21 = vector.shape_cast %20 : vector<8xf32> to vector<1x8xf32>
    %22 = arith.mulf %14, %14 : vector<196x8xf32>
    %cst_10 = arith.constant dense<0.000000e+00> : vector<8xf32>
    %23 = vector.multi_reduction <add>, %22, %cst_10 [0] : vector<196x8xf32> to vector<8xf32>
    %24 = vector.shape_cast %23 : vector<8xf32> to vector<1x8xf32>
    %c0_11 = arith.constant 0 : index
    %c0_12 = arith.constant 0 : index
    %25 = vector.load %arg4[%c0_11, %c0_12] : memref<2x8xf32, #tpu.memory_space<vmem>>, vector<2x8xf32>
    %26 = tpu.concatenate %21, %24 in 0 : vector<1x8xf32>, vector<1x8xf32> -> vector<2x8xf32>
    %27 = arith.addf %25, %26 : vector<2x8xf32>
    %c0_13 = arith.constant 0 : index
    %c0_14 = arith.constant 0 : index
    %28 = vector.load %arg4[%c0_13, %c0_14] : memref<2x8xf32, #tpu.memory_space<vmem>>, vector<2x8xf32>
    tpu.vector_store %arg4[%c0_13, %c0_14], %27 {strides = array<i32>} : memref<2x8xf32, #tpu.memory_space<vmem>>, vector<2x8xf32>,
    return
  }
  func.func @transform_0(%arg0: i32) -> (i32, i32, i32, i32) {
    %c0_i32 = arith.constant 0 : i32
    %c0_i32_0 = arith.constant 0 : i32
    %c0_i32_1 = arith.constant 0 : i32
    %c0_i32_2 = arith.constant 0 : i32
    return %arg0, %c0_i32, %c0_i32_0, %c0_i32_1 : i32, i32, i32, i32
  }
  func.func @transform_1(%arg0: i32) -> (i32, i32) {
    %c0_i32 = arith.constant 0 : i32
    %c0_i32_0 = arith.constant 0 : i32
    %c0_i32_1 = arith.constant 0 : i32
    return %c0_i32, %c0_i32_0 : i32, i32
  }
  func.func @transform_2(%arg0: i32) -> (i32, i32, i32) {
    %c0_i32 = arith.constant 0 : i32
    %c0_i32_0 = arith.constant 0 : i32
    %c0_i32_1 = arith.constant 0 : i32
    return %arg0, %c0_i32, %c0_i32_0 : i32, i32, i32
  }
  func.func @transform_3(%arg0: i32) -> (i32, i32) {
    %c0_i32 = arith.constant 0 : i32
    %c0_i32_0 = arith.constant 0 : i32
    %c0_i32_1 = arith.constant 0 : i32
    return %c0_i32, %c0_i32_0 : i32, i32
  }
}

module attributes {stable_mosaic.version = 11 : i64} {
  func.func @bn2_relu_kernel(%arg0: i32, %arg1: memref<1x144x8xf32, #tpu.memory_space<vmem>>, %arg2: memref<1x8xf32, #tpu.memory_space<vmem>>, %arg3: memref<1x8xf32, #tpu.memory_space<vmem>>, %arg4: memref<1x144x8xf32, #tpu.memory_space<vmem>>) attributes {dimension_semantics = [#tpu.dimension_semantics<parallel>], iteration_bounds = array<i64: 2>, scalar_prefetch = 0 : i64, scratch_operands = 0 : i64, tpu.core_type = #tpu.core_type<tc>, window_params = [{transform_indices = @transform_0, window_bounds = array<i64: 1, 144, 8>}, {pipeline_mode = #tpu.pipeline_mode<synchronous>, transform_indices = @transform_1, window_bounds = array<i64: 1, 8>}, {pipeline_mode = #tpu.pipeline_mode<synchronous>, transform_indices = @transform_2, window_bounds = array<i64: 1, 8>}, {transform_indices = @transform_3, window_bounds = array<i64: 1, 144, 8>}]} {
    %c0 = arith.constant 0 : index
    %c0_0 = arith.constant 0 : index
    %c0_1 = arith.constant 0 : index
    %0 = vector.load %arg1[%c0, %c0_0, %c0_1] : memref<1x144x8xf32, #tpu.memory_space<vmem>>, vector<1x144x8xf32>
    %1 = vector.shape_cast %0 : vector<1x144x8xf32> to vector<144x8xf32>
    %c0_2 = arith.constant 0 : index
    %c0_3 = arith.constant 0 : index
    %2 = vector.load %arg2[%c0_2, %c0_3] : memref<1x8xf32, #tpu.memory_space<vmem>>, vector<1x8xf32>
    %3 = vector.broadcast %2 : vector<1x8xf32> to vector<144x8xf32>
    %4 = arith.mulf %1, %3 : vector<144x8xf32>
    %c0_4 = arith.constant 0 : index
    %c0_5 = arith.constant 0 : index
    %5 = vector.load %arg3[%c0_4, %c0_5] : memref<1x8xf32, #tpu.memory_space<vmem>>, vector<1x8xf32>
    %6 = vector.broadcast %5 : vector<1x8xf32> to vector<144x8xf32>
    %7 = arith.addf %4, %6 : vector<144x8xf32>
    %cst = arith.constant 0.000000e+00 : f32
    %8 = vector.broadcast %cst : f32 to vector<144x8xf32>
    %9 = arith.maximumf %7, %8 : vector<144x8xf32>
    %10 = vector.shape_cast %9 : vector<144x8xf32> to vector<1x144x8xf32>
    %c0_6 = arith.constant 0 : index
    %c0_7 = arith.constant 0 : index
    %c0_8 = arith.constant 0 : index
    %11 = vector.load %arg4[%c0_6, %c0_7, %c0_8] : memref<1x144x8xf32, #tpu.memory_space<vmem>>, vector<1x144x8xf32>
    tpu.vector_store %arg4[%c0_6, %c0_7, %c0_8], %10 {strides = array<i32>} : memref<1x144x8xf32, #tpu.memory_space<vmem>>, vector<1x144x8xf32>,
    return
  }
  func.func @transform_0(%arg0: i32) -> (i32, i32, i32) {
    %c0_i32 = arith.constant 0 : i32
    %c0_i32_0 = arith.constant 0 : i32
    %c0_i32_1 = arith.constant 0 : i32
    return %arg0, %c0_i32, %c0_i32_0 : i32, i32, i32
  }
  func.func @transform_1(%arg0: i32) -> (i32, i32) {
    %c0_i32 = arith.constant 0 : i32
    %c0_i32_0 = arith.constant 0 : i32
    %c0_i32_1 = arith.constant 0 : i32
    return %c0_i32, %c0_i32_0 : i32, i32
  }
  func.func @transform_2(%arg0: i32) -> (i32, i32) {
    %c0_i32 = arith.constant 0 : i32
    %c0_i32_0 = arith.constant 0 : i32
    %c0_i32_1 = arith.constant 0 : i32
    return %c0_i32, %c0_i32_0 : i32, i32
  }
  func.func @transform_3(%arg0: i32) -> (i32, i32, i32) {
    %c0_i32 = arith.constant 0 : i32
    %c0_i32_0 = arith.constant 0 : i32
    %c0_i32_1 = arith.constant 0 : i32
    return %arg0, %c0_i32, %c0_i32_0 : i32, i32, i32
  }
}

module attributes {stable_mosaic.version = 11 : i64} {
  func.func @bn1_conv2_stats_kernel(%arg0: i32, %arg1: memref<1x196x8xf32, #tpu.memory_space<vmem>>, %arg2: memref<1x8xf32, #tpu.memory_space<vmem>>, %arg3: memref<1x8xf32, #tpu.memory_space<vmem>>, %arg4: memref<72x8xf32, #tpu.memory_space<vmem>>, %arg5: memref<1x144x8xf32, #tpu.memory_space<vmem>>, %arg6: memref<2x8xf32, #tpu.memory_space<vmem>>) attributes {dimension_semantics = [#tpu.dimension_semantics<arbitrary>], iteration_bounds = array<i64: 2>, scalar_prefetch = 0 : i64, scratch_operands = 0 : i64, tpu.core_type = #tpu.core_type<tc>, window_params = [{transform_indices = @transform_0, window_bounds = array<i64: 1, 196, 8>}, {pipeline_mode = #tpu.pipeline_mode<synchronous>, transform_indices = @transform_1, window_bounds = array<i64: 1, 8>}, {pipeline_mode = #tpu.pipeline_mode<synchronous>, transform_indices = @transform_2, window_bounds = array<i64: 1, 8>}, {pipeline_mode = #tpu.pipeline_mode<synchronous>, transform_indices = @transform_3, window_bounds = array<i64: 72, 8>}, {transform_indices = @transform_4, window_bounds = array<i64: 1, 144, 8>}, {pipeline_mode = #tpu.pipeline_mode<synchronous>, transform_indices = @transform_5, window_bounds = array<i64: 2, 8>}]} {
    %c0 = arith.constant 0 : index
    %c0_0 = arith.constant 0 : index
    %c0_1 = arith.constant 0 : index
    %0 = vector.load %arg1[%c0, %c0_0, %c0_1] : memref<1x196x8xf32, #tpu.memory_space<vmem>>, vector<1x196x8xf32>
    %1 = vector.shape_cast %0 : vector<1x196x8xf32> to vector<196x8xf32>
    %c0_2 = arith.constant 0 : index
    %c0_3 = arith.constant 0 : index
    %2 = vector.load %arg2[%c0_2, %c0_3] : memref<1x8xf32, #tpu.memory_space<vmem>>, vector<1x8xf32>
    %3 = vector.broadcast %2 : vector<1x8xf32> to vector<196x8xf32>
    %4 = arith.mulf %1, %3 : vector<196x8xf32>
    %c0_4 = arith.constant 0 : index
    %c0_5 = arith.constant 0 : index
    %5 = vector.load %arg3[%c0_4, %c0_5] : memref<1x8xf32, #tpu.memory_space<vmem>>, vector<1x8xf32>
    %6 = vector.broadcast %5 : vector<1x8xf32> to vector<196x8xf32>
    %7 = arith.addf %4, %6 : vector<196x8xf32>
    %cst = arith.constant 0.000000e+00 : f32
    %8 = vector.broadcast %cst : f32 to vector<196x8xf32>
    %9 = arith.maximumf %7, %8 : vector<196x8xf32>
    %10 = vector.shape_cast %9 : vector<196x8xf32> to vector<14x14x8xf32>
    %11 = vector.extract_strided_slice %10 {offsets = [0, 0, 0], sizes = [12, 12, 8], strides = [1, 1, 1]} : vector<14x14x8xf32> to vector<12x12x8xf32>
    %12 = vector.extract_strided_slice %10 {offsets = [0, 1, 0], sizes = [12, 12, 8], strides = [1, 1, 1]} : vector<14x14x8xf32> to vector<12x12x8xf32>
    %13 = vector.extract_strided_slice %10 {offsets = [0, 2, 0], sizes = [12, 12, 8], strides = [1, 1, 1]} : vector<14x14x8xf32> to vector<12x12x8xf32>
    %14 = vector.extract_strided_slice %10 {offsets = [1, 0, 0], sizes = [12, 12, 8], strides = [1, 1, 1]} : vector<14x14x8xf32> to vector<12x12x8xf32>
    %15 = vector.extract_strided_slice %10 {offsets = [1, 1, 0], sizes = [12, 12, 8], strides = [1, 1, 1]} : vector<14x14x8xf32> to vector<12x12x8xf32>
    %16 = vector.extract_strided_slice %10 {offsets = [1, 2, 0], sizes = [12, 12, 8], strides = [1, 1, 1]} : vector<14x14x8xf32> to vector<12x12x8xf32>
    %17 = vector.extract_strided_slice %10 {offsets = [2, 0, 0], sizes = [12, 12, 8], strides = [1, 1, 1]} : vector<14x14x8xf32> to vector<12x12x8xf32>
    %18 = vector.extract_strided_slice %10 {offsets = [2, 1, 0], sizes = [12, 12, 8], strides = [1, 1, 1]} : vector<14x14x8xf32> to vector<12x12x8xf32>
    %19 = vector.extract_strided_slice %10 {offsets = [2, 2, 0], sizes = [12, 12, 8], strides = [1, 1, 1]} : vector<14x14x8xf32> to vector<12x12x8xf32>
    %20 = tpu.concatenate %11, %12, %13, %14, %15, %16, %17, %18, %19 in 2 : vector<12x12x8xf32>, vector<12x12x8xf32>, vector<12x12x8xf32>, vector<12x12x8xf32>, vector<12x12x8xf32>, vector<12x12x8xf32>, vector<12x12x8xf32>, vector<12x12x8xf32>, vector<12x12x8xf32> -> vector<12x12x72xf32>
    %21 = vector.shape_cast %20 : vector<12x12x72xf32> to vector<144x72xf32>
    %c0_6 = arith.constant 0 : index
    %c0_7 = arith.constant 0 : index
    %22 = vector.load %arg4[%c0_6, %c0_7] : memref<72x8xf32, #tpu.memory_space<vmem>>, vector<72x8xf32>
    %cst_8 = arith.constant dense<0.000000e+00> : vector<144x8xf32>
    %23 = tpu.matmul %21, %22, %cst_8 {dimension_numbers = #tpu.dot_dimension_numbers<[1], [0], [0], [1], [0, 0, 1, 1], [], []>} : vector<144x72xf32>, vector<72x8xf32>, vector<144x8xf32> -> vector<144x8xf32>
    %24 = vector.shape_cast %23 : vector<144x8xf32> to vector<1x144x8xf32>
    %c0_9 = arith.constant 0 : index
    %c0_10 = arith.constant 0 : index
    %c0_11 = arith.constant 0 : index
    %25 = vector.load %arg5[%c0_9, %c0_10, %c0_11] : memref<1x144x8xf32, #tpu.memory_space<vmem>>, vector<1x144x8xf32>
    tpu.vector_store %arg5[%c0_9, %c0_10, %c0_11], %24 {strides = array<i32>} : memref<1x144x8xf32, #tpu.memory_space<vmem>>, vector<1x144x8xf32>,
    %c0_i32 = arith.constant 0 : i32
    %26 = arith.cmpi eq, %arg0, %c0_i32 : i32
    %27 = arith.extui %26 : i1 to i32
    %c0_i32_12 = arith.constant 0 : i32
    %28 = arith.cmpi ne, %27, %c0_i32_12 : i32
    scf.if %28 {
      %cst_19 = arith.constant 0.000000e+00 : f32
      %38 = vector.broadcast %cst_19 : f32 to vector<2x8xf32>
      %c0_20 = arith.constant 0 : index
      %c0_21 = arith.constant 0 : index
      %39 = vector.load %arg6[%c0_20, %c0_21] : memref<2x8xf32, #tpu.memory_space<vmem>>, vector<2x8xf32>
      tpu.vector_store %arg6[%c0_20, %c0_21], %38 {strides = array<i32>} : memref<2x8xf32, #tpu.memory_space<vmem>>, vector<2x8xf32>,
    } else {
    }
    %cst_13 = arith.constant dense<0.000000e+00> : vector<8xf32>
    %29 = vector.multi_reduction <add>, %23, %cst_13 [0] : vector<144x8xf32> to vector<8xf32>
    %30 = vector.shape_cast %29 : vector<8xf32> to vector<1x8xf32>
    %31 = arith.mulf %23, %23 : vector<144x8xf32>
    %cst_14 = arith.constant dense<0.000000e+00> : vector<8xf32>
    %32 = vector.multi_reduction <add>, %31, %cst_14 [0] : vector<144x8xf32> to vector<8xf32>
    %33 = vector.shape_cast %32 : vector<8xf32> to vector<1x8xf32>
    %c0_15 = arith.constant 0 : index
    %c0_16 = arith.constant 0 : index
    %34 = vector.load %arg6[%c0_15, %c0_16] : memref<2x8xf32, #tpu.memory_space<vmem>>, vector<2x8xf32>
    %35 = tpu.concatenate %30, %33 in 0 : vector<1x8xf32>, vector<1x8xf32> -> vector<2x8xf32>
    %36 = arith.addf %34, %35 : vector<2x8xf32>
    %c0_17 = arith.constant 0 : index
    %c0_18 = arith.constant 0 : index
    %37 = vector.load %arg6[%c0_17, %c0_18] : memref<2x8xf32, #tpu.memory_space<vmem>>, vector<2x8xf32>
    tpu.vector_store %arg6[%c0_17, %c0_18], %36 {strides = array<i32>} : memref<2x8xf32, #tpu.memory_space<vmem>>, vector<2x8xf32>,
    return
  }
  func.func @transform_0(%arg0: i32) -> (i32, i32, i32) {
    %c0_i32 = arith.constant 0 : i32
    %c0_i32_0 = arith.constant 0 : i32
    %c0_i32_1 = arith.constant 0 : i32
    return %arg0, %c0_i32, %c0_i32_0 : i32, i32, i32
  }
  func.func @transform_1(%arg0: i32) -> (i32, i32) {
    %c0_i32 = arith.constant 0 : i32
    %c0_i32_0 = arith.constant 0 : i32
    %c0_i32_1 = arith.constant 0 : i32
    return %c0_i32, %c0_i32_0 : i32, i32
  }
  func.func @transform_2(%arg0: i32) -> (i32, i32) {
    %c0_i32 = arith.constant 0 : i32
    %c0_i32_0 = arith.constant 0 : i32
    %c0_i32_1 = arith.constant 0 : i32
    return %c0_i32, %c0_i32_0 : i32, i32
  }
  func.func @transform_3(%arg0: i32) -> (i32, i32) {
    %c0_i32 = arith.constant 0 : i32
    %c0_i32_0 = arith.constant 0 : i32
    %c0_i32_1 = arith.constant 0 : i32
    return %c0_i32, %c0_i32_0 : i32, i32
  }
  func.func @transform_4(%arg0: i32) -> (i32, i32, i32) {
    %c0_i32 = arith.constant 0 : i32
    %c0_i32_0 = arith.constant 0 : i32
    %c0_i32_1 = arith.constant 0 : i32
    return %arg0, %c0_i32, %c0_i32_0 : i32, i32, i32
  }
  func.func @transform_5(%arg0: i32) -> (i32, i32) {
    %c0_i32 = arith.constant 0 : i32
    %c0_i32_0 = arith.constant 0 : i32
    %c0_i32_1 = arith.constant 0 : i32
    return %c0_i32, %c0_i32_0 : i32, i32
  }
}

</mosaic_0001>

<llo_original>
// kernel: block_forward.5
$region0: #{block_forward.5}
  #allocation0 [shape = 'u32[]', space=smem, size = 0x4, offset = 0x4, fixed_abs, tag = 'smem constant byte address 0x4 - core index']
  #allocation1 [shape = 'u32[144,128]{1,0:T(1,128)}', space=vmem, size = 0x12000, scoped, tag = 'internal scratch']
  %s0 = inlined_call_operand.vmem [shape: f32[2,144,8], index: 0, kind: input, shape index: {}]
  %s1 = inlined_call_operand.vmem [shape: f32[1,8], index: 1, kind: input, shape index: {}]
  %s2 = inlined_call_operand.vmem [shape: f32[1,8], index: 2, kind: input, shape index: {}]
  %s3 = inlined_call_operand.vmem [shape: f32[2,144,8], index: 3, kind: output, shape index: {}]
  %s4 = sld [smem:[#allocation0]]
  $region45: #{block_forward.5} parent=0
    _
  %s6 = ssub.s32 1, %s4
  %s7 = scalar_select 0, %s6, %s4
  loop: start=0, step=1, limit=4
  $region2: #{block_forward.5} parent=0 // loop_pre_header
    _
  $region3: #{block_forward.5} parent=0 // loop_header
    %s9 = sphi 0, %s13
    %p10 = scmp.ge.s32.totalorder %s9, 4
    %s19 = sphi 0, %s21
    %s22 = sphi 0, %s19
    %s23 = sphi 0, %s22
    %s39 = sphi 0, %s23
    %s43 = sphi 0, %s43
    %s45 = sphi 0, %s43
    %s46 = sphi 0, %s45
    %s60 = sphi 0, %s46
    %s64 = sphi 0, %s64
    %s66 = sphi 0, %s64
    %s67 = sphi 0, %s66
    %s81 = sphi 0, %s67
    %s87 = sphi 0, %s89
    %s90 = sphi 0, %s87
    %s91 = sphi 0, %s90
    %s107 = sphi 0, %s91
  $region4: #{block_forward.5} parent=0 // loop_header_branch
    %12 = sbr.rel (%p10) target = $region8
  $region5: #{block_forward.5} parent=0 // loop_body
    %s14 = ssub.s32 %s9, 1
    %s15 = ssub.s32 %s9, 2
    %s16 = sadd.s32 %s9, 1
    %s17 = ssub.s32 %s9, %s16
    %p18 = scmp.eq.s32.totalorder %s17, 0
    %s20 = sadd.s32 %s19, 1
    %s21 = scalar_select %p18, %s19, %s20
    %p24 = pneg %p18
    %p25 = scmp.eq.s32.totalorder %s9, 1
    %p26 = por %p24, %p25
    %p27 = scmp.ne.s32.totalorder %s19, %s22
    %p28 = scmp.eq.s32.totalorder %s9, 0
    %p29 = por %p27, %p28
    %p30 = scmp.ne.s32.totalorder %s19, %s22
    %p31 = scmp.eq.s32.totalorder %s14, 1
    %p32 = por %p30, %p31
    %p33 = scmp.ne.s32.totalorder %s22, %s23
    %p34 = scmp.eq.s32.totalorder %s14, 0
    %p35 = por %p33, %p34
    %p36 = scmp.ne.s32.totalorder %s22, %s23
    %p37 = scmp.eq.s32.totalorder %s15, 1
    %p38 = por %p36, %p37
    %p40 = scmp.ne.s32.totalorder %s23, %s39
    %p41 = scmp.eq.s32.totalorder %s15, 0
    %p42 = por %p40, %p41
    %s44 = sadd.s32 %s43, 1
    %p47 = scmp.eq.s32.totalorder %s9, 1
    %p48 = scmp.ne.s32.totalorder %s43, %s45
    %p49 = scmp.eq.s32.totalorder %s9, 0
    %p50 = por %p48, %p49
    %p51 = scmp.ne.s32.totalorder %s43, %s45
    %p52 = scmp.eq.s32.totalorder %s14, 1
    %p53 = por %p51, %p52
    %p54 = scmp.ne.s32.totalorder %s45, %s46
    %p55 = scmp.eq.s32.totalorder %s14, 0
    %p56 = por %p54, %p55
    %p57 = scmp.ne.s32.totalorder %s45, %s46
    %p58 = scmp.eq.s32.totalorder %s15, 1
    %p59 = por %p57, %p58
    %p61 = scmp.ne.s32.totalorder %s46, %s60
    %p62 = scmp.eq.s32.totalorder %s15, 0
    %p63 = por %p61, %p62
    %s65 = sadd.s32 %s64, 1
    %p68 = scmp.eq.s32.totalorder %s9, 1
    %p69 = scmp.ne.s32.totalorder %s64, %s66
    %p70 = scmp.eq.s32.totalorder %s9, 0
    %p71 = por %p69, %p70
    %p72 = scmp.ne.s32.totalorder %s64, %s66
    %p73 = scmp.eq.s32.totalorder %s14, 1
    %p74 = por %p72, %p73
    %p75 = scmp.ne.s32.totalorder %s66, %s67
    %p76 = scmp.eq.s32.totalorder %s14, 0
    %p77 = por %p75, %p76
    %p78 = scmp.ne.s32.totalorder %s66, %s67
    %p79 = scmp.eq.s32.totalorder %s15, 1
    %p80 = por %p78, %p79
    %p82 = scmp.ne.s32.totalorder %s67, %s81
    %p83 = scmp.eq.s32.totalorder %s15, 0
    %p84 = por %p82, %p83
    %s85 = ssub.s32 %s9, %s16
    %p86 = scmp.eq.s32.totalorder %s85, 0
    %s88 = sadd.s32 %s87, 1
    %s89 = scalar_select %p86, %s87, %s88
    %p92 = pneg %p86
    %p93 = scmp.eq.s32.totalorder %s9, 1
    %p94 = por %p92, %p93
    %p95 = scmp.ne.s32.totalorder %s87, %s90
    %p96 = scmp.eq.s32.totalorder %s9, 0
    %p97 = por %p95, %p96
    %p98 = scmp.ne.s32.totalorder %s87, %s90
    %p99 = scmp.eq.s32.totalorder %s14, 1
    %p100 = por %p98, %p99
    %p101 = scmp.ne.s32.totalorder %s90, %s91
    %p102 = scmp.eq.s32.totalorder %s14, 0
    %p103 = por %p101, %p102
    %p104 = scmp.ne.s32.totalorder %s90, %s91
    %p105 = scmp.eq.s32.totalorder %s15, 1
    %p106 = por %p104, %p105
    %p108 = scmp.ne.s32.totalorder %s91, %s107
    %p109 = scmp.eq.s32.totalorder %s15, 0
    %p110 = por %p108, %p109
    %p111 = scmp.le.s32.totalorder 1, %s9
    %p112 = scmp.lt.s32.totalorder %s9, 3
    %p113 = pnand %p111, %p112
    %p114 = pneg %p113
    // Predicated region
    $region9: #{block_forward.5} parent=5 // pred_check
      _
    $region10: #{block_forward.5} parent=5 // pred_check_branch
      %116 = sbr.rel (%p113) target = $region12
    $region11: #{block_forward.5} parent=5 // pred_region
      %s117 = ssub.s32 %s9, 1
      // Predicated region
      $region13: #{block_forward.5} parent=11 // pred_check
        %p118 = pneg %p56
      $region14: #{block_forward.5} parent=11 // pred_check_branch
        %120 = sbr.rel (%p118) target = $region16
      $region15: #{block_forward.5} parent=11 // pred_region
        _
      $region16: #{block_forward.5} parent=11 // pred_fallthru
        _
      // Predicated region
      $region17: #{block_forward.5} parent=11 // pred_check
        %p121 = pneg %p77
      $region18: #{block_forward.5} parent=11 // pred_check_branch
        %123 = sbr.rel (%p121) target = $region20
      $region19: #{block_forward.5} parent=11 // pred_region
        _
      $region20: #{block_forward.5} parent=11 // pred_fallthru
        _
    $region12: #{block_forward.5} parent=5 // pred_fallthru
      _
    %p124 = scmp.lt.s32.totalorder %s9, 2
    // Predicated region
    $region21: #{block_forward.5} parent=5 // pred_check
      %p125 = pneg %p124
    $region22: #{block_forward.5} parent=5 // pred_check_branch
      %127 = sbr.rel (%p125) target = $region24
    $region23: #{block_forward.5} parent=5 // pred_region
      // Predicated region
      $region25: #{block_forward.5} parent=23 // pred_check
        %p128 = pneg %p29
      $region26: #{block_forward.5} parent=23 // pred_check_branch
        %130 = sbr.rel (%p128) target = $region28
      $region27: #{block_forward.5} parent=23 // pred_region
        %p131 = scmp.lt.s32.totalorder %s9, 1
        %s132 = scalar_select %p131, %s9, 1
        %s133 = smul.addr %s132, 18
        %s134 = smul.addr %s133, 8
        %s135 = scalar_lea.vmem %s0, %s134
      $region28: #{block_forward.5} parent=23 // pred_fallthru
        _
    $region24: #{block_forward.5} parent=5 // pred_fallthru
      _
    %p136 = scmp.le.s32.totalorder 1, %s9
    %p137 = scmp.lt.s32.totalorder %s9, 3
    %p138 = pnand %p136, %p137
    %p139 = pneg %p138
    // Predicated region
    $region29: #{block_forward.5} parent=5 // pred_check
      _
    $region30: #{block_forward.5} parent=5 // pred_check_branch
      %141 = sbr.rel (%p138) target = $region32
    $region31: #{block_forward.5} parent=5 // pred_region
      %s142 = ssub.s32 %s9, 1
      %p143 = scmp.lt.s32.totalorder %s14, 1
      %s144 = scalar_select %p143, %s14, 1
      %s145 = smul.addr %s144, 18
      %s146 = smul.addr %s145, 8
      %s147 = scalar_lea.vmem %s0, %s146
      %p148 = pneg %p35
      %p149 = pneg %p32
      %p150 = pneg %p56
      %p151 = pneg %p53
      %p152 = pneg %p77
      %p153 = pneg %p74
      %p154 = pneg %p103
      %p155 = pneg %p100
      %p156 = scmp.lt.s32.totalorder %s14, 1
      %s157 = scalar_select %p156, %s14, 1
      %s158 = smul.addr %s157, 18
      %s159 = smul.addr %s158, 8
      %s160 = scalar_lea.vmem %s3, %s159
      %p161 = scmp.lt.s32.totalorder %s14, 1
      %s162 = scalar_select %p161, %s14, 1
      %s163 = smul.addr %s162, 18
      %s164 = smul.addr %s163, 8
      %s165 = scalar_lea.vmem %s0, %s164
      %p166 = scmp.lt.s32.totalorder %s14, 1
      %s167 = scalar_select %p166, %s14, 1
      %s168 = smul.addr %s167, 18
      %s169 = smul.addr %s168, 8
      %s170 = scalar_lea.vmem %s3, %s169
      %v171 = vld [vmem:[%s165] sm:$0xff]
      %v172 = vld [vmem:[%s165 + $0x8] sm:$0xff]
      %v173 = vld [vmem:[%s165 + $0x10] sm:$0xff]
      %v174 = vld [vmem:[%s165 + $0x18] sm:$0xff]
      %v175 = vld [vmem:[%s165 + $0x20] sm:$0xff]
      %v176 = vld [vmem:[%s165 + $0x28] sm:$0xff]
      %v177 = vld [vmem:[%s165 + $0x30] sm:$0xff]
      %v178 = vld [vmem:[%s165 + $0x38] sm:$0xff]
      %v179 = vld [vmem:[%s165 + $0x40] sm:$0xff]
      %v180 = vld [vmem:[%s165 + $0x48] sm:$0xff]
      %v181 = vld [vmem:[%s165 + $0x50] sm:$0xff]
      %v182 = vld [vmem:[%s165 + $0x58] sm:$0xff]
      %v183 = vld [vmem:[%s165 + $0x60] sm:$0xff]
      %v184 = vld [vmem:[%s165 + $0x68] sm:$0xff]
      %v185 = vld [vmem:[%s165 + $0x70] sm:$0xff]
      %v186 = vld [vmem:[%s165 + $0x78] sm:$0xff]
      %v187 = vld [vmem:[%s165 + $0x80] sm:$0xff]
      %v188 = vld [vmem:[%s165 + $0x88] sm:$0xff]
      %v189 = vld [vmem:[%s1] sm:$0x1]
      %v191 = vlaneseq
      %v192 = vshrl.u32 %v191, 7
      %v193 = vsub.s32 0, %v192
      %v194 = vrot.slane %v189, %v193
      %v196 = vmul.f32 %v171, %v194
      %v197 = vmul.f32 %v172, %v194
      %v198 = vmul.f32 %v173, %v194
      %v199 = vmul.f32 %v174, %v194
      %v200 = vmul.f32 %v175, %v194
      %v201 = vmul.f32 %v176, %v194
      %v202 = vmul.f32 %v177, %v194
      %v203 = vmul.f32 %v178, %v194
      %v204 = vmul.f32 %v179, %v194
      %v205 = vmul.f32 %v180, %v194
      %v206 = vmul.f32 %v181, %v194
      %v207 = vmul.f32 %v182, %v194
      %v208 = vmul.f32 %v183, %v194
      %v209 = vmul.f32 %v184, %v194
      %v210 = vmul.f32 %v185, %v194
      %v211 = vmul.f32 %v186, %v194
      %v212 = vmul.f32 %v187, %v194
      %v213 = vmul.f32 %v188, %v194
      %v214 = vld [vmem:[%s2] sm:$0x1]
      %v216 = vlaneseq
      %v217 = vshrl.u32 %v216, 7
      %v218 = vsub.s32 0, %v217
      %v219 = vrot.slane %v214, %v218
      %v221 = vadd.f32 %v196, %v219
      %v222 = vadd.f32 %v197, %v219
      %v223 = vadd.f32 %v198, %v219
      %v224 = vadd.f32 %v199, %v219
      %v225 = vadd.f32 %v200, %v219
      %v226 = vadd.f32 %v201, %v219
      %v227 = vadd.f32 %v202, %v219
      %v228 = vadd.f32 %v203, %v219
      %v229 = vadd.f32 %v204, %v219
      %v230 = vadd.f32 %v205, %v219
      %v231 = vadd.f32 %v206, %v219
      %v232 = vadd.f32 %v207, %v219
      %v233 = vadd.f32 %v208, %v219
      %v234 = vadd.f32 %v209, %v219
      %v235 = vadd.f32 %v210, %v219
      %v236 = vadd.f32 %v211, %v219
      %v237 = vadd.f32 %v212, %v219
      %v238 = vadd.f32 %v213, %v219
      %v239 = vmax.f32 %v221, 0.0
      %v240 = vmax.f32 %v222, 0.0
      %v241 = vmax.f32 %v223, 0.0
      %v242 = vmax.f32 %v224, 0.0
      %v243 = vmax.f32 %v225, 0.0
      %v244 = vmax.f32 %v226, 0.0
      %v245 = vmax.f32 %v227, 0.0
      %v246 = vmax.f32 %v228, 0.0
      %v247 = vmax.f32 %v229, 0.0
      %v248 = vmax.f32 %v230, 0.0
      %v249 = vmax.f32 %v231, 0.0
      %v250 = vmax.f32 %v232, 0.0
      %v251 = vmax.f32 %v233, 0.0
      %v252 = vmax.f32 %v234, 0.0
      %v253 = vmax.f32 %v235, 0.0
      %v254 = vmax.f32 %v236, 0.0
      %v255 = vmax.f32 %v237, 0.0
      %v256 = vmax.f32 %v238, 0.0
      %vm257 = vcmask 64512
      %258 = vst.msk [vmem:[%s170] sm:$0xff] %vm257, %v239
      %259 = vst.msk [vmem:[%s170 + $0x8] sm:$0xff] %vm257, %v240
      %260 = vst.msk [vmem:[%s170 + $0x10] sm:$0xff] %vm257, %v241
      %261 = vst.msk [vmem:[%s170 + $0x18] sm:$0xff] %vm257, %v242
      %262 = vst.msk [vmem:[%s170 + $0x20] sm:$0xff] %vm257, %v243
      %263 = vst.msk [vmem:[%s170 + $0x28] sm:$0xff] %vm257, %v244
      %264 = vst.msk [vmem:[%s170 + $0x30] sm:$0xff] %vm257, %v245
      %265 = vst.msk [vmem:[%s170 + $0x38] sm:$0xff] %vm257, %v246
      %266 = vst.msk [vmem:[%s170 + $0x40] sm:$0xff] %vm257, %v247
      %267 = vst.msk [vmem:[%s170 + $0x48] sm:$0xff] %vm257, %v248
      %268 = vst.msk [vmem:[%s170 + $0x50] sm:$0xff] %vm257, %v249
      %269 = vst.msk [vmem:[%s170 + $0x58] sm:$0xff] %vm257, %v250
      %270 = vst.msk [vmem:[%s170 + $0x60] sm:$0xff] %vm257, %v251
      %271 = vst.msk [vmem:[%s170 + $0x68] sm:$0xff] %vm257, %v252
      %272 = vst.msk [vmem:[%s170 + $0x70] sm:$0xff] %vm257, %v253
      %273 = vst.msk [vmem:[%s170 + $0x78] sm:$0xff] %vm257, %v254
      %274 = vst.msk [vmem:[%s170 + $0x80] sm:$0xff] %vm257, %v255
      %275 = vst.msk [vmem:[%s170 + $0x88] sm:$0xff] %vm257, %v256
      %p276 = scmp.lt.s32.totalorder %s14, 1
      %s277 = scalar_select %p276, %s14, 1
      %s278 = smul.addr %s277, 18
      %s279 = smul.addr %s278, 8
      %s280 = scalar_lea.vmem %s3, %s279
      // Predicated region
      $region33: #{block_forward.5} parent=31 // pred_check
        %p281 = pneg %p100
      $region34: #{block_forward.5} parent=31 // pred_check_branch
        %283 = sbr.rel (%p281) target = $region36
      $region35: #{block_forward.5} parent=31 // pred_region
        _
      $region36: #{block_forward.5} parent=31 // pred_fallthru
        _
    $region32: #{block_forward.5} parent=5 // pred_fallthru
      _
    %p284 = scmp.le.s32.totalorder 2, %s9
    // Predicated region
    $region37: #{block_forward.5} parent=5 // pred_check
      %p285 = pneg %p284
    $region38: #{block_forward.5} parent=5 // pred_check_branch
      %287 = sbr.rel (%p285) target = $region40
    $region39: #{block_forward.5} parent=5 // pred_region
      %s288 = ssub.s32 %s9, 2
      // Predicated region
      $region41: #{block_forward.5} parent=39 // pred_check
        %p289 = pneg %p106
      $region42: #{block_forward.5} parent=39 // pred_check_branch
        %291 = sbr.rel (%p289) target = $region44
      $region43: #{block_forward.5} parent=39 // pred_region
        %p292 = scmp.lt.s32.totalorder %s15, 1
        %s293 = scalar_select %p292, %s15, 1
        %s294 = smul.addr %s293, 18
        %s295 = smul.addr %s294, 8
        %s296 = scalar_lea.vmem %s3, %s295
      $region44: #{block_forward.5} parent=39 // pred_fallthru
        _
    $region40: #{block_forward.5} parent=5 // pred_fallthru
      _
  $region6: #{block_forward.5} parent=0 // loop_footer
    %s13 = sadd.s32 1, %s9
  $region7: #{block_forward.5} parent=0 // loop_footer_branch
    %8 = sbr.rel target = $region3
  $region8: #{block_forward.5} parent=0 // loop_exit
    _

// kernel: block_forward.3
$region0: #{block_forward.3}
  #allocation0 [shape = 'u32[]', space=smem, size = 0x4, offset = 0x4, fixed_abs, tag = 'smem constant byte address 0x4 - core index']
  #allocation1 [shape = 'u32[144,128]{1,0:T(1,128)}', space=vmem, size = 0x12000, scoped, tag = 'internal scratch']
  %s0 = inlined_call_operand.vmem [shape: f32[2,16,16,4], index: 0, kind: input, shape index: {}]
  %s1 = inlined_call_operand.vmem [shape: f32[36,8], index: 1, kind: input, shape index: {}]
  %s2 = inlined_call_operand.vmem [shape: f32[2,196,8], index: 2, kind: output, shape index: {0}]
  %s3 = inlined_call_operand.vmem [shape: f32[2,8], index: 3, kind: output, shape index: {1}]
  %4 = xla_tuple %s2, %s3
  %s5 = sld [smem:[#allocation0]]
  $region53: #{block_forward.3} parent=0
    _
  %s7 = ssub.s32 1, %s5
  %s8 = scalar_select 0, %s7, %s5
  loop: start=0, step=1, limit=4
  $region2: #{block_forward.3} parent=0 // loop_pre_header
    _
  $region3: #{block_forward.3} parent=0 // loop_header
    %s10 = sphi 0, %s14
    %p11 = scmp.ge.s32.totalorder %s10, 4
    %s20 = sphi 0, %s22
    %s23 = sphi 0, %s20
    %s24 = sphi 0, %s23
    %s40 = sphi 0, %s24
    %s44 = sphi 0, %s44
    %s46 = sphi 0, %s44
    %s47 = sphi 0, %s46
    %s61 = sphi 0, %s47
    %s67 = sphi 0, %s69
    %s70 = sphi 0, %s67
    %s71 = sphi 0, %s70
    %s87 = sphi 0, %s71
    %s91 = sphi 0, %s91
    %s93 = sphi 0, %s91
    %s94 = sphi 0, %s93
    %s108 = sphi 0, %s94
  $region4: #{block_forward.3} parent=0 // loop_header_branch
    %13 = sbr.rel (%p11) target = $region8
  $region5: #{block_forward.3} parent=0 // loop_body
    %s15 = ssub.s32 %s10, 1
    %s16 = ssub.s32 %s10, 2
    %s17 = sadd.s32 %s10, 1
    %s18 = ssub.s32 %s10, %s17
    %p19 = scmp.eq.s32.totalorder %s18, 0
    %s21 = sadd.s32 %s20, 1
    %s22 = scalar_select %p19, %s20, %s21
    %p25 = pneg %p19
    %p26 = scmp.eq.s32.totalorder %s10, 1
    %p27 = por %p25, %p26
    %p28 = scmp.ne.s32.totalorder %s20, %s23
    %p29 = scmp.eq.s32.totalorder %s10, 0
    %p30 = por %p28, %p29
    %p31 = scmp.ne.s32.totalorder %s20, %s23
    %p32 = scmp.eq.s32.totalorder %s15, 1
    %p33 = por %p31, %p32
    %p34 = scmp.ne.s32.totalorder %s23, %s24
    %p35 = scmp.eq.s32.totalorder %s15, 0
    %p36 = por %p34, %p35
    %p37 = scmp.ne.s32.totalorder %s23, %s24
    %p38 = scmp.eq.s32.totalorder %s16, 1
    %p39 = por %p37, %p38
    %p41 = scmp.ne.s32.totalorder %s24, %s40
    %p42 = scmp.eq.s32.totalorder %s16, 0
    %p43 = por %p41, %p42
    %s45 = sadd.s32 %s44, 1
    %p48 = scmp.eq.s32.totalorder %s10, 1
    %p49 = scmp.ne.s32.totalorder %s44, %s46
    %p50 = scmp.eq.s32.totalorder %s10, 0
    %p51 = por %p49, %p50
    %p52 = scmp.ne.s32.totalorder %s44, %s46
    %p53 = scmp.eq.s32.totalorder %s15, 1
    %p54 = por %p52, %p53
    %p55 = scmp.ne.s32.totalorder %s46, %s47
    %p56 = scmp.eq.s32.totalorder %s15, 0
    %p57 = por %p55, %p56
    %p58 = scmp.ne.s32.totalorder %s46, %s47
    %p59 = scmp.eq.s32.totalorder %s16, 1
    %p60 = por %p58, %p59
    %p62 = scmp.ne.s32.totalorder %s47, %s61
    %p63 = scmp.eq.s32.totalorder %s16, 0
    %p64 = por %p62, %p63
    %s65 = ssub.s32 %s10, %s17
    %p66 = scmp.eq.s32.totalorder %s65, 0
    %s68 = sadd.s32 %s67, 1
    %s69 = scalar_select %p66, %s67, %s68
    %p72 = pneg %p66
    %p73 = scmp.eq.s32.totalorder %s10, 1
    %p74 = por %p72, %p73
    %p75 = scmp.ne.s32.totalorder %s67, %s70
    %p76 = scmp.eq.s32.totalorder %s10, 0
    %p77 = por %p75, %p76
    %p78 = scmp.ne.s32.totalorder %s67, %s70
    %p79 = scmp.eq.s32.totalorder %s15, 1
    %p80 = por %p78, %p79
    %p81 = scmp.ne.s32.totalorder %s70, %s71
    %p82 = scmp.eq.s32.totalorder %s15, 0
    %p83 = por %p81, %p82
    %p84 = scmp.ne.s32.totalorder %s70, %s71
    %p85 = scmp.eq.s32.totalorder %s16, 1
    %p86 = por %p84, %p85
    %p88 = scmp.ne.s32.totalorder %s71, %s87
    %p89 = scmp.eq.s32.totalorder %s16, 0
    %p90 = por %p88, %p89
    %s92 = sadd.s32 %s91, 1
    %p95 = scmp.eq.s32.totalorder %s10, 1
    %p96 = scmp.ne.s32.totalorder %s91, %s93
    %p97 = scmp.eq.s32.totalorder %s10, 0
    %p98 = por %p96, %p97
    %p99 = scmp.ne.s32.totalorder %s91, %s93
    %p100 = scmp.eq.s32.totalorder %s15, 1
    %p101 = por %p99, %p100
    %p102 = scmp.ne.s32.totalorder %s93, %s94
    %p103 = scmp.eq.s32.totalorder %s15, 0
    %p104 = por %p102, %p103
    %p105 = scmp.ne.s32.totalorder %s93, %s94
    %p106 = scmp.eq.s32.totalorder %s16, 1
    %p107 = por %p105, %p106
    %p109 = scmp.ne.s32.totalorder %s94, %s108
    %p110 = scmp.eq.s32.totalorder %s16, 0
    %p111 = por %p109, %p110
    %p112 = scmp.le.s32.totalorder 1, %s10
    %p113 = scmp.lt.s32.totalorder %s10, 3
    %p114 = pnand %p112, %p113
    %p115 = pneg %p114
    // Predicated region
    $region9: #{block_forward.3} parent=5 // pred_check
      _
    $region10: #{block_forward.3} parent=5 // pred_check_branch
      %117 = sbr.rel (%p114) target = $region12
    $region11: #{block_forward.3} parent=5 // pred_region
      %s118 = ssub.s32 %s10, 1
      // Predicated region
      $region13: #{block_forward.3} parent=11 // pred_check
        %p119 = pneg %p57
      $region14: #{block_forward.3} parent=11 // pred_check_branch
        %121 = sbr.rel (%p119) target = $region16
      $region15: #{block_forward.3} parent=11 // pred_region
        _
      $region16: #{block_forward.3} parent=11 // pred_fallthru
        _
    $region12: #{block_forward.3} parent=5 // pred_fallthru
      _
    %p122 = scmp.lt.s32.totalorder %s10, 2
    // Predicated region
    $region17: #{block_forward.3} parent=5 // pred_check
      %p123 = pneg %p122
    $region18: #{block_forward.3} parent=5 // pred_check_branch
      %125 = sbr.rel (%p123) target = $region20
    $region19: #{block_forward.3} parent=5 // pred_region
      // Predicated region
      $region21: #{block_forward.3} parent=19 // pred_check
        %p126 = pneg %p30
      $region22: #{block_forward.3} parent=19 // pred_check_branch
        %128 = sbr.rel (%p126) target = $region24
      $region23: #{block_forward.3} parent=19 // pred_region
        %p129 = scmp.lt.s32.totalorder %s10, 1
        %s130 = scalar_select %p129, %s10, 1
        %s131 = smul.addr %s130, 32
        %s132 = smul.addr %s131, 8
        %s133 = scalar_lea.vmem %s0, %s132
      $region24: #{block_forward.3} parent=19 // pred_fallthru
        _
    $region20: #{block_forward.3} parent=5 // pred_fallthru
      _
    %p134 = scmp.le.s32.totalorder 1, %s10
    %p135 = scmp.lt.s32.totalorder %s10, 3
    %p136 = pnand %p134, %p135
    %p137 = pneg %p136
    // Predicated region
    $region25: #{block_forward.3} parent=5 // pred_check
      _
    $region26: #{block_forward.3} parent=5 // pred_check_branch
      %139 = sbr.rel (%p136) target = $region28
    $region27: #{block_forward.3} parent=5 // pred_region
      %s140 = ssub.s32 %s10, 1
      %p141 = scmp.lt.s32.totalorder %s15, 1
      %s142 = scalar_select %p141, %s15, 1
      %s143 = smul.addr %s142, 32
      %s144 = smul.addr %s143, 8
      %s145 = scalar_lea.vmem %s0, %s144
      %p146 = pneg %p36
      %p147 = pneg %p33
      %p148 = pneg %p57
      %p149 = pneg %p54
      %p150 = pneg %p83
      %p151 = pneg %p80
      %p152 = scmp.lt.s32.totalorder %s15, 1
      %s153 = scalar_select %p152, %s15, 1
      %s154 = smul.addr %s153, 25
      %s155 = smul.addr %s154, 8
      %s156 = scalar_lea.vmem %s2, %s155
      %p157 = pneg %p104
      %p158 = pneg %p101
      %p159 = scmp.lt.s32.totalorder %s15, 1
      %s160 = scalar_select %p159, %s15, 1
      %s161 = smul.addr %s160, 32
      %s162 = smul.addr %s161, 8
      %s163 = scalar_lea.vmem %s0, %s162
      %p164 = scmp.lt.s32.totalorder %s15, 1
      %s165 = scalar_select %p164, %s15, 1
      %s166 = smul.addr %s165, 25
      %s167 = smul.addr %s166, 8
      %s168 = scalar_lea.vmem %s2, %s167
      %v169 = vld [vmem:[%s163] sm:$0xff]
      %v170 = vld [vmem:[%s163 + $0x8] sm:$0xff]
      %v171 = vld [vmem:[%s163 + $0x10] sm:$0xff]
      %v172 = vld [vmem:[%s163 + $0x18] sm:$0xff]
      %v173 = vld [vmem:[%s163 + $0x20] sm:$0xff]
      %v174 = vld [vmem:[%s163 + $0x28] sm:$0xff]
      %v175 = vld [vmem:[%s163 + $0x30] sm:$0xff]
      %v176 = vld [vmem:[%s163 + $0x38] sm:$0xff]
      %v177 = vld [vmem:[%s163 + $0x40] sm:$0xff]
      %v178 = vld [vmem:[%s163 + $0x48] sm:$0xff]
      %v179 = vld [vmem:[%s163 + $0x50] sm:$0xff]
      %v180 = vld [vmem:[%s163 + $0x58] sm:$0xff]
      %v181 = vld [vmem:[%s163 + $0x60] sm:$0xff]
      %v182 = vld [vmem:[%s163 + $0x68] sm:$0xff]
      %v183 = vld [vmem:[%s163 + $0x70] sm:$0xff]
      %v184 = vld [vmem:[%s163 + $0x78] sm:$0xff]
      %v185 = vld [vmem:[%s163 + $0x80] sm:$0xff]
      %v186 = vld [vmem:[%s163 + $0x88] sm:$0xff]
      %v187 = vld [vmem:[%s163 + $0x90] sm:$0xff]
      %v188 = vld [vmem:[%s163 + $0x98] sm:$0xff]
      %v189 = vld [vmem:[%s163 + $0xa0] sm:$0xff]
      %v190 = vld [vmem:[%s163 + $0xa8] sm:$0xff]
      %v191 = vld [vmem:[%s163 + $0xb0] sm:$0xff]
      %v192 = vld [vmem:[%s163 + $0xb8] sm:$0xff]
      %v193 = vld [vmem:[%s163 + $0xc0] sm:$0xff]
      %v194 = vld [vmem:[%s163 + $0xc8] sm:$0xff]
      %v195 = vld [vmem:[%s163 + $0xd0] sm:$0xff]
      %v196 = vld [vmem:[%s163 + $0xd8] sm:$0xff]
      %v197 = vld [vmem:[%s163 + $0xe0] sm:$0xff]
      %v198 = vld [vmem:[%s163 + $0xe8] sm:$0xff]
      %v199 = vld [vmem:[%s163 + $0xf0] sm:$0xff]
      %v200 = vld [vmem:[%s163 + $0xf8] sm:$0xff]
      %vm229 = vcmask 1046528
      %v230 = vrot.slane %v169, 1
      %v231 = vrot.slane %v170, 1
      %v232 = vsel %vm229, %v230, %v231
      %v233 = vrot.slane %v171, 1
      %v234 = vrot.slane %v172, 1
      %v235 = vsel %vm229, %v233, %v234
      %v236 = vrot.slane %v173, 1
      %v237 = vrot.slane %v174, 1
      %v238 = vsel %vm229, %v236, %v237
      %v239 = vrot.slane %v175, 1
      %v240 = vrot.slane %v176, 1
      %v241 = vsel %vm229, %v239, %v240
      %v242 = vrot.slane %v177, 1
      %v243 = vrot.slane %v178, 1
      %v244 = vsel %vm229, %v242, %v243
      %v245 = vrot.slane %v179, 1
      %v246 = vrot.slane %v180, 1
      %v247 = vsel %vm229, %v245, %v246
      %v248 = vrot.slane %v181, 1
      %v249 = vrot.slane %v182, 1
      %v250 = vsel %vm229, %v248, %v249
      %v251 = vrot.slane %v183, 1
      %v252 = vrot.slane %v184, 1
      %v253 = vsel %vm229, %v251, %v252
      %v254 = vrot.slane %v185, 1
      %v255 = vrot.slane %v186, 1
      %v256 = vsel %vm229, %v254, %v255
      %v257 = vrot.slane %v187, 1
      %v258 = vrot.slane %v188, 1
      %v259 = vsel %vm229, %v257, %v258
      %v260 = vrot.slane %v189, 1
      %v261 = vrot.slane %v190, 1
      %v262 = vsel %vm229, %v260, %v261
      %v263 = vrot.slane %v191, 1
      %v264 = vrot.slane %v192, 1
      %v265 = vsel %vm229, %v263, %v264
      %v266 = vrot.slane %v193, 1
      %v267 = vrot.slane %v194, 1
      %v268 = vsel %vm229, %v266, %v267
      %v269 = vrot.slane %v195, 1
      %v270 = vrot.slane %v196, 1
      %v271 = vsel %vm229, %v269, %v270
      %272 = vrot.lane.b32.xlu0 %v232, 4
      %v273 = vpop.permute.xlu0 %272
      %274 = vrot.lane.b32.xlu0 %v231, 4
      %v275 = vpop.permute.xlu0 %274
      %276 = vrot.lane.b32.xlu0 %v235, 4
      %v277 = vpop.permute.xlu0 %276
      %278 = vrot.lane.b32.xlu0 %v234, 4
      %v279 = vpop.permute.xlu0 %278
      %280 = vrot.lane.b32.xlu0 %v238, 4
      %v281 = vpop.permute.xlu0 %280
      %282 = vrot.lane.b32.xlu0 %v237, 4
      %v283 = vpop.permute.xlu0 %282
      %284 = vrot.lane.b32.xlu0 %v241, 4
      %v285 = vpop.permute.xlu0 %284
      %286 = vrot.lane.b32.xlu0 %v240, 4
      %v287 = vpop.permute.xlu0 %286
      %288 = vrot.lane.b32.xlu0 %v244, 4
      %v289 = vpop.permute.xlu0 %288
      %290 = vrot.lane.b32.xlu0 %v243, 4
      %v291 = vpop.permute.xlu0 %290
      %292 = vrot.lane.b32.xlu0 %v247, 4
      %v293 = vpop.permute.xlu0 %292
      %294 = vrot.lane.b32.xlu0 %v246, 4
      %v295 = vpop.permute.xlu0 %294
      %296 = vrot.lane.b32.xlu0 %v250, 4
      %v297 = vpop.permute.xlu0 %296
      %298 = vrot.lane.b32.xlu0 %v249, 4
      %v299 = vpop.permute.xlu0 %298
      %300 = vrot.lane.b32.xlu0 %v253, 4
      %v301 = vpop.permute.xlu0 %300
      %302 = vrot.lane.b32.xlu0 %v252, 4
      %v303 = vpop.permute.xlu0 %302
      %304 = vrot.lane.b32.xlu0 %v256, 4
      %v305 = vpop.permute.xlu0 %304
      %306 = vrot.lane.b32.xlu0 %v255, 4
      %v307 = vpop.permute.xlu0 %306
      %308 = vrot.lane.b32.xlu0 %v259, 4
      %v309 = vpop.permute.xlu0 %308
      %310 = vrot.lane.b32.xlu0 %v258, 4
      %v311 = vpop.permute.xlu0 %310
      %312 = vrot.lane.b32.xlu0 %v262, 4
      %v313 = vpop.permute.xlu0 %312
      %314 = vrot.lane.b32.xlu0 %v261, 4
      %v315 = vpop.permute.xlu0 %314
      %316 = vrot.lane.b32.xlu0 %v265, 4
      %v317 = vpop.permute.xlu0 %316
      %318 = vrot.lane.b32.xlu0 %v264, 4
      %v319 = vpop.permute.xlu0 %318
      %320 = vrot.lane.b32.xlu0 %v268, 4
      %v321 = vpop.permute.xlu0 %320
      %322 = vrot.lane.b32.xlu0 %v267, 4
      %v323 = vpop.permute.xlu0 %322
      %324 = vrot.lane.b32.xlu0 %v271, 4
      %v325 = vpop.permute.xlu0 %324
      %326 = vrot.lane.b32.xlu0 %v270, 4
      %v327 = vpop.permute.xlu0 %326
      %vm356 = vcmask 1045504
      %v357 = vrot.slane %v169, 2
      %v358 = vrot.slane %v170, 2
      %v359 = vsel %vm356, %v357, %v358
      %v360 = vrot.slane %v171, 2
      %v361 = vrot.slane %v172, 2
      %v362 = vsel %vm356, %v360, %v361
      %v363 = vrot.slane %v173, 2
      %v364 = vrot.slane %v174, 2
      %v365 = vsel %vm356, %v363, %v364
      %v366 = vrot.slane %v175, 2
      %v367 = vrot.slane %v176, 2
      %v368 = vsel %vm356, %v366, %v367
      %v369 = vrot.slane %v177, 2
      %v370 = vrot.slane %v178, 2
      %v371 = vsel %vm356, %v369, %v370
      %v372 = vrot.slane %v179, 2
      %v373 = vrot.slane %v180, 2
      %v374 = vsel %vm356, %v372, %v373
      %v375 = vrot.slane %v181, 2
      %v376 = vrot.slane %v182, 2
      %v377 = vsel %vm356, %v375, %v376
      %v378 = vrot.slane %v183, 2
      %v379 = vrot.slane %v184, 2
      %v380 = vsel %vm356, %v378, %v379
      %v381 = vrot.slane %v185, 2
      %v382 = vrot.slane %v186, 2
      %v383 = vsel %vm356, %v381, %v382
      %v384 = vrot.slane %v187, 2
      %v385 = vrot.slane %v188, 2
      %v386 = vsel %vm356, %v384, %v385
      %v387 = vrot.slane %v189, 2
      %v388 = vrot.slane %v190, 2
      %v389 = vsel %vm356, %v387, %v388
      %v390 = vrot.slane %v191, 2
      %v391 = vrot.slane %v192, 2
      %v392 = vsel %vm356, %v390, %v391
      %v393 = vrot.slane %v193, 2
      %v394 = vrot.slane %v194, 2
      %v395 = vsel %vm356, %v393, %v394
      %v396 = vrot.slane %v195, 2
      %v397 = vrot.slane %v196, 2
      %v398 = vsel %vm356, %v396, %v397
      %399 = vrot.lane.b32.xlu0 %v359, 8
      %v400 = vpop.permute.xlu0 %399
      %401 = vrot.lane.b32.xlu0 %v358, 8
      %v402 = vpop.permute.xlu0 %401
      %403 = vrot.lane.b32.xlu0 %v362, 8
      %v404 = vpop.permute.xlu0 %403
      %405 = vrot.lane.b32.xlu0 %v361, 8
      %v406 = vpop.permute.xlu0 %405
      %407 = vrot.lane.b32.xlu0 %v365, 8
      %v408 = vpop.permute.xlu0 %407
      %409 = vrot.lane.b32.xlu0 %v364, 8
      %v410 = vpop.permute.xlu0 %409
      %411 = vrot.lane.b32.xlu0 %v368, 8
      %v412 = vpop.permute.xlu0 %411
      %413 = vrot.lane.b32.xlu0 %v367, 8
      %v414 = vpop.permute.xlu0 %413
      %415 = vrot.lane.b32.xlu0 %v371, 8
      %v416 = vpop.permute.xlu0 %415
      %417 = vrot.lane.b32.xlu0 %v370, 8
      %v418 = vpop.permute.xlu0 %417
      %419 = vrot.lane.b32.xlu0 %v374, 8
      %v420 = vpop.permute.xlu0 %419
      %421 = vrot.lane.b32.xlu0 %v373, 8
      %v422 = vpop.permute.xlu0 %421
      %423 = vrot.lane.b32.xlu0 %v377, 8
      %v424 = vpop.permute.xlu0 %423
      %425 = vrot.lane.b32.xlu0 %v376, 8
      %v426 = vpop.permute.xlu0 %425
      %427 = vrot.lane.b32.xlu0 %v380, 8
      %v428 = vpop.permute.xlu0 %427
      %429 = vrot.lane.b32.xlu0 %v379, 8
      %v430 = vpop.permute.xlu0 %429
      %431 = vrot.lane.b32.xlu0 %v383, 8
      %v432 = vpop.permute.xlu0 %431
      %433 = vrot.lane.b32.xlu0 %v382, 8
      %v434 = vpop.permute.xlu0 %433
      %435 = vrot.lane.b32.xlu0 %v386, 8
      %v436 = vpop.permute.xlu0 %435
      %437 = vrot.lane.b32.xlu0 %v385, 8
      %v438 = vpop.permute.xlu0 %437
      %439 = vrot.lane.b32.xlu0 %v389, 8
      %v440 = vpop.permute.xlu0 %439
      %441 = vrot.lane.b32.xlu0 %v388, 8
      %v442 = vpop.permute.xlu0 %441
      %443 = vrot.lane.b32.xlu0 %v392, 8
      %v444 = vpop.permute.xlu0 %443
      %445 = vrot.lane.b32.xlu0 %v391, 8
      %v446 = vpop.permute.xlu0 %445
      %447 = vrot.lane.b32.xlu0 %v395, 8
      %v448 = vpop.permute.xlu0 %447
      %449 = vrot.lane.b32.xlu0 %v394, 8
      %v450 = vpop.permute.xlu0 %449
      %451 = vrot.lane.b32.xlu0 %v398, 8
      %v452 = vpop.permute.xlu0 %451
      %453 = vrot.lane.b32.xlu0 %v397, 8
      %v454 = vpop.permute.xlu0 %453
      %485 = vrot.lane.b32.xlu0 %v171, 12
      %v486 = vpop.permute.xlu0 %485
      %487 = vrot.lane.b32.xlu0 %v172, 12
      %v488 = vpop.permute.xlu0 %487
      %489 = vrot.lane.b32.xlu0 %v173, 12
      %v490 = vpop.permute.xlu0 %489
      %491 = vrot.lane.b32.xlu0 %v174, 12
      %v492 = vpop.permute.xlu0 %491
      %493 = vrot.lane.b32.xlu0 %v175, 12
      %v494 = vpop.permute.xlu0 %493
      %495 = vrot.lane.b32.xlu0 %v176, 12
      %v496 = vpop.permute.xlu0 %495
      %497 = vrot.lane.b32.xlu0 %v177, 12
      %v498 = vpop.permute.xlu0 %497
      %499 = vrot.lane.b32.xlu0 %v178, 12
      %v500 = vpop.permute.xlu0 %499
      %501 = vrot.lane.b32.xlu0 %v179, 12
      %v502 = vpop.permute.xlu0 %501
      %503 = vrot.lane.b32.xlu0 %v180, 12
      %v504 = vpop.permute.xlu0 %503
      %505 = vrot.lane.b32.xlu0 %v181, 12
      %v506 = vpop.permute.xlu0 %505
      %507 = vrot.lane.b32.xlu0 %v182, 12
      %v508 = vpop.permute.xlu0 %507
      %509 = vrot.lane.b32.xlu0 %v183, 12
      %v510 = vpop.permute.xlu0 %509
      %511 = vrot.lane.b32.xlu0 %v184, 12
      %v512 = vpop.permute.xlu0 %511
      %513 = vrot.lane.b32.xlu0 %v185, 12
      %v514 = vpop.permute.xlu0 %513
      %515 = vrot.lane.b32.xlu0 %v186, 12
      %v516 = vpop.permute.xlu0 %515
      %517 = vrot.lane.b32.xlu0 %v187, 12
      %v518 = vpop.permute.xlu0 %517
      %519 = vrot.lane.b32.xlu0 %v188, 12
      %v520 = vpop.permute.xlu0 %519
      %521 = vrot.lane.b32.xlu0 %v189, 12
      %v522 = vpop.permute.xlu0 %521
      %523 = vrot.lane.b32.xlu0 %v190, 12
      %v524 = vpop.permute.xlu0 %523
      %525 = vrot.lane.b32.xlu0 %v191, 12
      %v526 = vpop.permute.xlu0 %525
      %527 = vrot.lane.b32.xlu0 %v192, 12
      %v528 = vpop.permute.xlu0 %527
      %529 = vrot.lane.b32.xlu0 %v193, 12
      %v530 = vpop.permute.xlu0 %529
      %531 = vrot.lane.b32.xlu0 %v194, 12
      %v532 = vpop.permute.xlu0 %531
      %533 = vrot.lane.b32.xlu0 %v195, 12
      %v534 = vpop.permute.xlu0 %533
      %535 = vrot.lane.b32.xlu0 %v196, 12
      %v536 = vpop.permute.xlu0 %535
      %537 = vrot.lane.b32.xlu0 %v197, 12
      %v538 = vpop.permute.xlu0 %537
      %539 = vrot.lane.b32.xlu0 %v198, 12
      %v540 = vpop.permute.xlu0 %539
      %v569 = vrot.slane %v197, 1
      %v570 = vrot.slane %v198, 1
      %v571 = vsel %vm229, %v569, %v570
      %572 = vrot.lane.b32.xlu0 %v235, 16
      %v573 = vpop.permute.xlu0 %572
      %574 = vrot.lane.b32.xlu0 %v234, 16
      %v575 = vpop.permute.xlu0 %574
      %576 = vrot.lane.b32.xlu0 %v238, 16
      %v577 = vpop.permute.xlu0 %576
      %578 = vrot.lane.b32.xlu0 %v237, 16
      %v579 = vpop.permute.xlu0 %578
      %580 = vrot.lane.b32.xlu0 %v241, 16
      %v581 = vpop.permute.xlu0 %580
      %582 = vrot.lane.b32.xlu0 %v240, 16
      %v583 = vpop.permute.xlu0 %582
      %584 = vrot.lane.b32.xlu0 %v244, 16
      %v585 = vpop.permute.xlu0 %584
      %586 = vrot.lane.b32.xlu0 %v243, 16
      %v587 = vpop.permute.xlu0 %586
      %588 = vrot.lane.b32.xlu0 %v247, 16
      %v589 = vpop.permute.xlu0 %588
      %590 = vrot.lane.b32.xlu0 %v246, 16
      %v591 = vpop.permute.xlu0 %590
      %592 = vrot.lane.b32.xlu0 %v250, 16
      %v593 = vpop.permute.xlu0 %592
      %594 = vrot.lane.b32.xlu0 %v249, 16
      %v595 = vpop.permute.xlu0 %594
      %596 = vrot.lane.b32.xlu0 %v253, 16
      %v597 = vpop.permute.xlu0 %596
      %598 = vrot.lane.b32.xlu0 %v252, 16
      %v599 = vpop.permute.xlu0 %598
      %600 = vrot.lane.b32.xlu0 %v256, 16
      %v601 = vpop.permute.xlu0 %600
      %602 = vrot.lane.b32.xlu0 %v255, 16
      %v603 = vpop.permute.xlu0 %602
      %604 = vrot.lane.b32.xlu0 %v259, 16
      %v605 = vpop.permute.xlu0 %604
      %606 = vrot.lane.b32.xlu0 %v258, 16
      %v607 = vpop.permute.xlu0 %606
      %608 = vrot.lane.b32.xlu0 %v262, 16
      %v609 = vpop.permute.xlu0 %608
      %610 = vrot.lane.b32.xlu0 %v261, 16
      %v611 = vpop.permute.xlu0 %610
      %612 = vrot.lane.b32.xlu0 %v265, 16
      %v613 = vpop.permute.xlu0 %612
      %614 = vrot.lane.b32.xlu0 %v264, 16
      %v615 = vpop.permute.xlu0 %614
      %616 = vrot.lane.b32.xlu0 %v268, 16
      %v617 = vpop.permute.xlu0 %616
      %618 = vrot.lane.b32.xlu0 %v267, 16
      %v619 = vpop.permute.xlu0 %618
      %620 = vrot.lane.b32.xlu0 %v271, 16
      %v621 = vpop.permute.xlu0 %620
      %622 = vrot.lane.b32.xlu0 %v270, 16
      %v623 = vpop.permute.xlu0 %622
      %624 = vrot.lane.b32.xlu0 %v571, 16
      %v625 = vpop.permute.xlu0 %624
      %626 = vrot.lane.b32.xlu0 %v570, 16
      %v627 = vpop.permute.xlu0 %626
      %v656 = vrot.slane %v197, 2
      %v657 = vrot.slane %v198, 2
      %v658 = vsel %vm356, %v656, %v657
      %659 = vrot.lane.b32.xlu0 %v362, 20
      %v660 = vpop.permute.xlu0 %659
      %661 = vrot.lane.b32.xlu0 %v361, 20
      %v662 = vpop.permute.xlu0 %661
      %663 = vrot.lane.b32.xlu0 %v365, 20
      %v664 = vpop.permute.xlu0 %663
      %665 = vrot.lane.b32.xlu0 %v364, 20
      %v666 = vpop.permute.xlu0 %665
      %667 = vrot.lane.b32.xlu0 %v368, 20
      %v668 = vpop.permute.xlu0 %667
      %669 = vrot.lane.b32.xlu0 %v367, 20
      %v670 = vpop.permute.xlu0 %669
      %671 = vrot.lane.b32.xlu0 %v371, 20
      %v672 = vpop.permute.xlu0 %671
      %673 = vrot.lane.b32.xlu0 %v370, 20
      %v674 = vpop.permute.xlu0 %673
      %675 = vrot.lane.b32.xlu0 %v374, 20
      %v676 = vpop.permute.xlu0 %675
      %677 = vrot.lane.b32.xlu0 %v373, 20
      %v678 = vpop.permute.xlu0 %677
      %679 = vrot.lane.b32.xlu0 %v377, 20
      %v680 = vpop.permute.xlu0 %679
      %681 = vrot.lane.b32.xlu0 %v376, 20
      %v682 = vpop.permute.xlu0 %681
      %683 = vrot.lane.b32.xlu0 %v380, 20
      %v684 = vpop.permute.xlu0 %683
      %685 = vrot.lane.b32.xlu0 %v379, 20
      %v686 = vpop.permute.xlu0 %685
      %687 = vrot.lane.b32.xlu0 %v383, 20
      %v688 = vpop.permute.xlu0 %687
      %689 = vrot.lane.b32.xlu0 %v382, 20
      %v690 = vpop.permute.xlu0 %689
      %691 = vrot.lane.b32.xlu0 %v386, 20
      %v692 = vpop.permute.xlu0 %691
      %693 = vrot.lane.b32.xlu0 %v385, 20
      %v694 = vpop.permute.xlu0 %693
      %695 = vrot.lane.b32.xlu0 %v389, 20
      %v696 = vpop.permute.xlu0 %695
      %697 = vrot.lane.b32.xlu0 %v388, 20
      %v698 = vpop.permute.xlu0 %697
      %699 = vrot.lane.b32.xlu0 %v392, 20
      %v700 = vpop.permute.xlu0 %699
      %701 = vrot.lane.b32.xlu0 %v391, 20
      %v702 = vpop.permute.xlu0 %701
      %703 = vrot.lane.b32.xlu0 %v395, 20
      %v704 = vpop.permute.xlu0 %703
      %705 = vrot.lane.b32.xlu0 %v394, 20
      %v706 = vpop.permute.xlu0 %705
      %707 = vrot.lane.b32.xlu0 %v398, 20
      %v708 = vpop.permute.xlu0 %707
      %709 = vrot.lane.b32.xlu0 %v397, 20
      %v710 = vpop.permute.xlu0 %709
      %711 = vrot.lane.b32.xlu0 %v658, 20
      %v712 = vpop.permute.xlu0 %711
      %713 = vrot.lane.b32.xlu0 %v657, 20
      %v714 = vpop.permute.xlu0 %713
      %745 = vrot.lane.b32.xlu0 %v173, 24
      %v746 = vpop.permute.xlu0 %745
      %747 = vrot.lane.b32.xlu0 %v174, 24
      %v748 = vpop.permute.xlu0 %747
      %749 = vrot.lane.b32.xlu0 %v175, 24
      %v750 = vpop.permute.xlu0 %749
      %751 = vrot.lane.b32.xlu0 %v176, 24
      %v752 = vpop.permute.xlu0 %751
      %753 = vrot.lane.b32.xlu0 %v177, 24
      %v754 = vpop.permute.xlu0 %753
      %755 = vrot.lane.b32.xlu0 %v178, 24
      %v756 = vpop.permute.xlu0 %755
      %757 = vrot.lane.b32.xlu0 %v179, 24
      %v758 = vpop.permute.xlu0 %757
      %759 = vrot.lane.b32.xlu0 %v180, 24
      %v760 = vpop.permute.xlu0 %759
      %761 = vrot.lane.b32.xlu0 %v181, 24
      %v762 = vpop.permute.xlu0 %761
      %763 = vrot.lane.b32.xlu0 %v182, 24
      %v764 = vpop.permute.xlu0 %763
      %765 = vrot.lane.b32.xlu0 %v183, 24
      %v766 = vpop.permute.xlu0 %765
      %767 = vrot.lane.b32.xlu0 %v184, 24
      %v768 = vpop.permute.xlu0 %767
      %769 = vrot.lane.b32.xlu0 %v185, 24
      %v770 = vpop.permute.xlu0 %769
      %771 = vrot.lane.b32.xlu0 %v186, 24
      %v772 = vpop.permute.xlu0 %771
      %773 = vrot.lane.b32.xlu0 %v187, 24
      %v774 = vpop.permute.xlu0 %773
      %775 = vrot.lane.b32.xlu0 %v188, 24
      %v776 = vpop.permute.xlu0 %775
      %777 = vrot.lane.b32.xlu0 %v189, 24
      %v778 = vpop.permute.xlu0 %777
      %779 = vrot.lane.b32.xlu0 %v190, 24
      %v780 = vpop.permute.xlu0 %779
      %781 = vrot.lane.b32.xlu0 %v191, 24
      %v782 = vpop.permute.xlu0 %781
      %783 = vrot.lane.b32.xlu0 %v192, 24
      %v784 = vpop.permute.xlu0 %783
      %785 = vrot.lane.b32.xlu0 %v193, 24
      %v786 = vpop.permute.xlu0 %785
      %787 = vrot.lane.b32.xlu0 %v194, 24
      %v788 = vpop.permute.xlu0 %787
      %789 = vrot.lane.b32.xlu0 %v195, 24
      %v790 = vpop.permute.xlu0 %789
      %791 = vrot.lane.b32.xlu0 %v196, 24
      %v792 = vpop.permute.xlu0 %791
      %793 = vrot.lane.b32.xlu0 %v197, 24
      %v794 = vpop.permute.xlu0 %793
      %795 = vrot.lane.b32.xlu0 %v198, 24
      %v796 = vpop.permute.xlu0 %795
      %797 = vrot.lane.b32.xlu0 %v199, 24
      %v798 = vpop.permute.xlu0 %797
      %799 = vrot.lane.b32.xlu0 %v200, 24
      %v800 = vpop.permute.xlu0 %799
      %v829 = vrot.slane %v199, 1
      %v830 = vrot.slane %v200, 1
      %v831 = vsel %vm229, %v829, %v830
      %832 = vrot.lane.b32.xlu0 %v238, 28
      %v833 = vpop.permute.xlu0 %832
      %834 = vrot.lane.b32.xlu0 %v237, 28
      %v835 = vpop.permute.xlu0 %834
      %836 = vrot.lane.b32.xlu0 %v241, 28
      %v837 = vpop.permute.xlu0 %836
      %838 = vrot.lane.b32.xlu0 %v240, 28
      %v839 = vpop.permute.xlu0 %838
      %840 = vrot.lane.b32.xlu0 %v244, 28
      %v841 = vpop.permute.xlu0 %840
      %842 = vrot.lane.b32.xlu0 %v243, 28
      %v843 = vpop.permute.xlu0 %842
      %844 = vrot.lane.b32.xlu0 %v247, 28
      %v845 = vpop.permute.xlu0 %844
      %846 = vrot.lane.b32.xlu0 %v246, 28
      %v847 = vpop.permute.xlu0 %846
      %848 = vrot.lane.b32.xlu0 %v250, 28
      %v849 = vpop.permute.xlu0 %848
      %850 = vrot.lane.b32.xlu0 %v249, 28
      %v851 = vpop.permute.xlu0 %850
      %852 = vrot.lane.b32.xlu0 %v253, 28
      %v853 = vpop.permute.xlu0 %852
      %854 = vrot.lane.b32.xlu0 %v252, 28
      %v855 = vpop.permute.xlu0 %854
      %856 = vrot.lane.b32.xlu0 %v256, 28
      %v857 = vpop.permute.xlu0 %856
      %858 = vrot.lane.b32.xlu0 %v255, 28
      %v859 = vpop.permute.xlu0 %858
      %860 = vrot.lane.b32.xlu0 %v259, 28
      %v861 = vpop.permute.xlu0 %860
      %862 = vrot.lane.b32.xlu0 %v258, 28
      %v863 = vpop.permute.xlu0 %862
      %864 = vrot.lane.b32.xlu0 %v262, 28
      %v865 = vpop.permute.xlu0 %864
      %866 = vrot.lane.b32.xlu0 %v261, 28
      %v867 = vpop.permute.xlu0 %866
      %868 = vrot.lane.b32.xlu0 %v265, 28
      %v869 = vpop.permute.xlu0 %868
      %870 = vrot.lane.b32.xlu0 %v264, 28
      %v871 = vpop.permute.xlu0 %870
      %872 = vrot.lane.b32.xlu0 %v268, 28
      %v873 = vpop.permute.xlu0 %872
      %874 = vrot.lane.b32.xlu0 %v267, 28
      %v875 = vpop.permute.xlu0 %874
      %876 = vrot.lane.b32.xlu0 %v271, 28
      %v877 = vpop.permute.xlu0 %876
      %878 = vrot.lane.b32.xlu0 %v270, 28
      %v879 = vpop.permute.xlu0 %878
      %880 = vrot.lane.b32.xlu0 %v571, 28
      %v881 = vpop.permute.xlu0 %880
      %882 = vrot.lane.b32.xlu0 %v570, 28
      %v883 = vpop.permute.xlu0 %882
      %884 = vrot.lane.b32.xlu0 %v831, 28
      %v885 = vpop.permute.xlu0 %884
      %886 = vrot.lane.b32.xlu0 %v830, 28
      %v887 = vpop.permute.xlu0 %886
      %v916 = vrot.slane %v199, 2
      %v917 = vrot.slane %v200, 2
      %v918 = vsel %vm356, %v916, %v917
      %919 = vrot.lane.b32.xlu0 %v365, 32
      %v920 = vpop.permute.xlu0 %919
      %921 = vrot.lane.b32.xlu0 %v364, 32
      %v922 = vpop.permute.xlu0 %921
      %923 = vrot.lane.b32.xlu0 %v368, 32
      %v924 = vpop.permute.xlu0 %923
      %925 = vrot.lane.b32.xlu0 %v367, 32
      %v926 = vpop.permute.xlu0 %925
      %927 = vrot.lane.b32.xlu0 %v371, 32
      %v928 = vpop.permute.xlu0 %927
      %929 = vrot.lane.b32.xlu0 %v370, 32
      %v930 = vpop.permute.xlu0 %929
      %931 = vrot.lane.b32.xlu0 %v374, 32
      %v932 = vpop.permute.xlu0 %931
      %933 = vrot.lane.b32.xlu0 %v373, 32
      %v934 = vpop.permute.xlu0 %933
      %935 = vrot.lane.b32.xlu0 %v377, 32
      %v936 = vpop.permute.xlu0 %935
      %937 = vrot.lane.b32.xlu0 %v376, 32
      %v938 = vpop.permute.xlu0 %937
      %939 = vrot.lane.b32.xlu0 %v380, 32
      %v940 = vpop.permute.xlu0 %939
      %941 = vrot.lane.b32.xlu0 %v379, 32
      %v942 = vpop.permute.xlu0 %941
      %943 = vrot.lane.b32.xlu0 %v383, 32
      %v944 = vpop.permute.xlu0 %943
      %945 = vrot.lane.b32.xlu0 %v382, 32
      %v946 = vpop.permute.xlu0 %945
      %947 = vrot.lane.b32.xlu0 %v386, 32
      %v948 = vpop.permute.xlu0 %947
      %949 = vrot.lane.b32.xlu0 %v385, 32
      %v950 = vpop.permute.xlu0 %949
      %951 = vrot.lane.b32.xlu0 %v389, 32
      %v952 = vpop.permute.xlu0 %951
      %953 = vrot.lane.b32.xlu0 %v388, 32
      %v954 = vpop.permute.xlu0 %953
      %955 = vrot.lane.b32.xlu0 %v392, 32
      %v956 = vpop.permute.xlu0 %955
      %957 = vrot.lane.b32.xlu0 %v391, 32
      %v958 = vpop.permute.xlu0 %957
      %959 = vrot.lane.b32.xlu0 %v395, 32
      %v960 = vpop.permute.xlu0 %959
      %961 = vrot.lane.b32.xlu0 %v394, 32
      %v962 = vpop.permute.xlu0 %961
      %963 = vrot.lane.b32.xlu0 %v398, 32
      %v964 = vpop.permute.xlu0 %963
      %965 = vrot.lane.b32.xlu0 %v397, 32
      %v966 = vpop.permute.xlu0 %965
      %967 = vrot.lane.b32.xlu0 %v658, 32
      %v968 = vpop.permute.xlu0 %967
      %969 = vrot.lane.b32.xlu0 %v657, 32
      %v970 = vpop.permute.xlu0 %969
      %971 = vrot.lane.b32.xlu0 %v918, 32
      %v972 = vpop.permute.xlu0 %971
      %973 = vrot.lane.b32.xlu0 %v917, 32
      %v974 = vpop.permute.xlu0 %973
      %vm1003 = vcmask 31744
      %v1004 = vsel %vm1003, %v169, %v273
      %v1005 = vsel %vm1003, %v170, %v275
      %v1006 = vsel %vm1003, %v171, %v277
      %v1007 = vsel %vm1003, %v172, %v279
      %v1008 = vsel %vm1003, %v173, %v281
      %v1009 = vsel %vm1003, %v174, %v283
      %v1010 = vsel %vm1003, %v175, %v285
      %v1011 = vsel %vm1003, %v176, %v287
      %v1012 = vsel %vm1003, %v177, %v289
      %v1013 = vsel %vm1003, %v178, %v291
      %v1014 = vsel %vm1003, %v179, %v293
      %v1015 = vsel %vm1003, %v180, %v295
      %v1016 = vsel %vm1003, %v181, %v297
      %v1017 = vsel %vm1003, %v182, %v299
      %v1018 = vsel %vm1003, %v183, %v301
      %v1019 = vsel %vm1003, %v184, %v303
      %v1020 = vsel %vm1003, %v185, %v305
      %v1021 = vsel %vm1003, %v186, %v307
      %v1022 = vsel %vm1003, %v187, %v309
      %v1023 = vsel %vm1003, %v188, %v311
      %v1024 = vsel %vm1003, %v189, %v313
      %v1025 = vsel %vm1003, %v190, %v315
      %v1026 = vsel %vm1003, %v191, %v317
      %v1027 = vsel %vm1003, %v192, %v319
      %v1028 = vsel %vm1003, %v193, %v321
      %v1029 = vsel %vm1003, %v194, %v323
      %v1030 = vsel %vm1003, %v195, %v325
      %v1031 = vsel %vm1003, %v196, %v327
      %vm1032 = vcmask 64512
      %v1033 = vsel %vm1032, %v1004, %v400
      %v1034 = vsel %vm1032, %v1005, %v402
      %v1035 = vsel %vm1032, %v1006, %v404
      %v1036 = vsel %vm1032, %v1007, %v406
      %v1037 = vsel %vm1032, %v1008, %v408
      %v1038 = vsel %vm1032, %v1009, %v410
      %v1039 = vsel %vm1032, %v1010, %v412
      %v1040 = vsel %vm1032, %v1011, %v414
      %v1041 = vsel %vm1032, %v1012, %v416
      %v1042 = vsel %vm1032, %v1013, %v418
      %v1043 = vsel %vm1032, %v1014, %v420
      %v1044 = vsel %vm1032, %v1015, %v422
      %v1045 = vsel %vm1032, %v1016, %v424
      %v1046 = vsel %vm1032, %v1017, %v426
      %v1047 = vsel %vm1032, %v1018, %v428
      %v1048 = vsel %vm1032, %v1019, %v430
      %v1049 = vsel %vm1032, %v1020, %v432
      %v1050 = vsel %vm1032, %v1021, %v434
      %v1051 = vsel %vm1032, %v1022, %v436
      %v1052 = vsel %vm1032, %v1023, %v438
      %v1053 = vsel %vm1032, %v1024, %v440
      %v1054 = vsel %vm1032, %v1025, %v442
      %v1055 = vsel %vm1032, %v1026, %v444
      %v1056 = vsel %vm1032, %v1027, %v446
      %v1057 = vsel %vm1032, %v1028, %v448
      %v1058 = vsel %vm1032, %v1029, %v450
      %v1059 = vsel %vm1032, %v1030, %v452
      %v1060 = vsel %vm1032, %v1031, %v454
      %vm1061 = vcmask 97280
      %v1062 = vsel %vm1061, %v1033, %v486
      %v1063 = vsel %vm1061, %v1034, %v488
      %v1064 = vsel %vm1061, %v1035, %v490
      %v1065 = vsel %vm1061, %v1036, %v492
      %v1066 = vsel %vm1061, %v1037, %v494
      %v1067 = vsel %vm1061, %v1038, %v496
      %v1068 = vsel %vm1061, %v1039, %v498
      %v1069 = vsel %vm1061, %v1040, %v500
      %v1070 = vsel %vm1061, %v1041, %v502
      %v1071 = vsel %vm1061, %v1042, %v504
      %v1072 = vsel %vm1061, %v1043, %v506
      %v1073 = vsel %vm1061, %v1044, %v508
      %v1074 = vsel %vm1061, %v1045, %v510
      %v1075 = vsel %vm1061, %v1046, %v512
      %v1076 = vsel %vm1061, %v1047, %v514
      %v1077 = vsel %vm1061, %v1048, %v516
      %v1078 = vsel %vm1061, %v1049, %v518
      %v1079 = vsel %vm1061, %v1050, %v520
      %v1080 = vsel %vm1061, %v1051, %v522
      %v1081 = vsel %vm1061, %v1052, %v524
      %v1082 = vsel %vm1061, %v1053, %v526
      %v1083 = vsel %vm1061, %v1054, %v528
      %v1084 = vsel %vm1061, %v1055, %v530
      %v1085 = vsel %vm1061, %v1056, %v532
      %v1086 = vsel %vm1061, %v1057, %v534
      %v1087 = vsel %vm1061, %v1058, %v536
      %v1088 = vsel %vm1061, %v1059, %v538
      %v1089 = vsel %vm1061, %v1060, %v540
      %vm1090 = vcmask 130048
      %v1091 = vsel %vm1090, %v1062, %v573
      %v1092 = vsel %vm1090, %v1063, %v575
      %v1093 = vsel %vm1090, %v1064, %v577
      %v1094 = vsel %vm1090, %v1065, %v579
      %v1095 = vsel %vm1090, %v1066, %v581
      %v1096 = vsel %vm1090, %v1067, %v583
      %v1097 = vsel %vm1090, %v1068, %v585
      %v1098 = vsel %vm1090, %v1069, %v587
      %v1099 = vsel %vm1090, %v1070, %v589
      %v1100 = vsel %vm1090, %v1071, %v591
      %v1101 = vsel %vm1090, %v1072, %v593
      %v1102 = vsel %vm1090, %v1073, %v595
      %v1103 = vsel %vm1090, %v1074, %v597
      %v1104 = vsel %vm1090, %v1075, %v599
      %v1105 = vsel %vm1090, %v1076, %v601
      %v1106 = vsel %vm1090, %v1077, %v603
      %v1107 = vsel %vm1090, %v1078, %v605
      %v1108 = vsel %vm1090, %v1079, %v607
      %v1109 = vsel %vm1090, %v1080, %v609
      %v1110 = vsel %vm1090, %v1081, %v611
      %v1111 = vsel %vm1090, %v1082, %v613
      %v1112 = vsel %vm1090, %v1083, %v615
      %v1113 = vsel %vm1090, %v1084, %v617
      %v1114 = vsel %vm1090, %v1085, %v619
      %v1115 = vsel %vm1090, %v1086, %v621
      %v1116 = vsel %vm1090, %v1087, %v623
      %v1117 = vsel %vm1090, %v1088, %v625
      %v1118 = vsel %vm1090, %v1089, %v627
      %vm1119 = vcmask 162816
      %v1120 = vsel %vm1119, %v1091, %v660
      %v1121 = vsel %vm1119, %v1092, %v662
      %v1122 = vsel %vm1119, %v1093, %v664
      %v1123 = vsel %vm1119, %v1094, %v666
      %v1124 = vsel %vm1119, %v1095, %v668
      %v1125 = vsel %vm1119, %v1096, %v670
      %v1126 = vsel %vm1119, %v1097, %v672
      %v1127 = vsel %vm1119, %v1098, %v674
      %v1128 = vsel %vm1119, %v1099, %v676
      %v1129 = vsel %vm1119, %v1100, %v678
      %v1130 = vsel %vm1119, %v1101, %v680
      %v1131 = vsel %vm1119, %v1102, %v682
      %v1132 = vsel %vm1119, %v1103, %v684
      %v1133 = vsel %vm1119, %v1104, %v686
      %v1134 = vsel %vm1119, %v1105, %v688
      %v1135 = vsel %vm1119, %v1106, %v690
      %v1136 = vsel %vm1119, %v1107, %v692
      %v1137 = vsel %vm1119, %v1108, %v694
      %v1138 = vsel %vm1119, %v1109, %v696
      %v1139 = vsel %vm1119, %v1110, %v698
      %v1140 = vsel %vm1119, %v1111, %v700
      %v1141 = vsel %vm1119, %v1112, %v702
      %v1142 = vsel %vm1119, %v1113, %v704
      %v1143 = vsel %vm1119, %v1114, %v706
      %v1144 = vsel %vm1119, %v1115, %v708
      %v1145 = vsel %vm1119, %v1116, %v710
      %v1146 = vsel %vm1119, %v1117, %v712
      %v1147 = vsel %vm1119, %v1118, %v714
      %vm1148 = vcmask 195584
      %v1149 = vsel %vm1148, %v1120, %v746
      %v1150 = vsel %vm1148, %v1121, %v748
      %v1151 = vsel %vm1148, %v1122, %v750
      %v1152 = vsel %vm1148, %v1123, %v752
      %v1153 = vsel %vm1148, %v1124, %v754
      %v1154 = vsel %vm1148, %v1125, %v756
      %v1155 = vsel %vm1148, %v1126, %v758
      %v1156 = vsel %vm1148, %v1127, %v760
      %v1157 = vsel %vm1148, %v1128, %v762
      %v1158 = vsel %vm1148, %v1129, %v764
      %v1159 = vsel %vm1148, %v1130, %v766
      %v1160 = vsel %vm1148, %v1131, %v768
      %v1161 = vsel %vm1148, %v1132, %v770
      %v1162 = vsel %vm1148, %v1133, %v772
      %v1163 = vsel %vm1148, %v1134, %v774
      %v1164 = vsel %vm1148, %v1135, %v776
      %v1165 = vsel %vm1148, %v1136, %v778
      %v1166 = vsel %vm1148, %v1137, %v780
      %v1167 = vsel %vm1148, %v1138, %v782
      %v1168 = vsel %vm1148, %v1139, %v784
      %v1169 = vsel %vm1148, %v1140, %v786
      %v1170 = vsel %vm1148, %v1141, %v788
      %v1171 = vsel %vm1148, %v1142, %v790
      %v1172 = vsel %vm1148, %v1143, %v792
      %v1173 = vsel %vm1148, %v1144, %v794
      %v1174 = vsel %vm1148, %v1145, %v796
      %v1175 = vsel %vm1148, %v1146, %v798
      %v1176 = vsel %vm1148, %v1147, %v800
      %vm1177 = vcmask 228352
      %v1178 = vsel %vm1177, %v1149, %v833
      %v1179 = vsel %vm1177, %v1150, %v835
      %v1180 = vsel %vm1177, %v1151, %v837
      %v1181 = vsel %vm1177, %v1152, %v839
      %v1182 = vsel %vm1177, %v1153, %v841
      %v1183 = vsel %vm1177, %v1154, %v843
      %v1184 = vsel %vm1177, %v1155, %v845
      %v1185 = vsel %vm1177, %v1156, %v847
      %v1186 = vsel %vm1177, %v1157, %v849
      %v1187 = vsel %vm1177, %v1158, %v851
      %v1188 = vsel %vm1177, %v1159, %v853
      %v1189 = vsel %vm1177, %v1160, %v855
      %v1190 = vsel %vm1177, %v1161, %v857
      %v1191 = vsel %vm1177, %v1162, %v859
      %v1192 = vsel %vm1177, %v1163, %v861
      %v1193 = vsel %vm1177, %v1164, %v863
      %v1194 = vsel %vm1177, %v1165, %v865
      %v1195 = vsel %vm1177, %v1166, %v867
      %v1196 = vsel %vm1177, %v1167, %v869
      %v1197 = vsel %vm1177, %v1168, %v871
      %v1198 = vsel %vm1177, %v1169, %v873
      %v1199 = vsel %vm1177, %v1170, %v875
      %v1200 = vsel %vm1177, %v1171, %v877
      %v1201 = vsel %vm1177, %v1172, %v879
      %v1202 = vsel %vm1177, %v1173, %v881
      %v1203 = vsel %vm1177, %v1174, %v883
      %v1204 = vsel %vm1177, %v1175, %v885
      %v1205 = vsel %vm1177, %v1176, %v887
      %vm1206 = vcmask 261120
      %v1207 = vsel %vm1206, %v1178, %v920
      %v1208 = vsel %vm1206, %v1179, %v922
      %v1209 = vsel %vm1206, %v1180, %v924
      %v1210 = vsel %vm1206, %v1181, %v926
      %v1211 = vsel %vm1206, %v1182, %v928
      %v1212 = vsel %vm1206, %v1183, %v930
      %v1213 = vsel %vm1206, %v1184, %v932
      %v1214 = vsel %vm1206, %v1185, %v934
      %v1215 = vsel %vm1206, %v1186, %v936
      %v1216 = vsel %vm1206, %v1187, %v938
      %v1217 = vsel %vm1206, %v1188, %v940
      %v1218 = vsel %vm1206, %v1189, %v942
      %v1219 = vsel %vm1206, %v1190, %v944
      %v1220 = vsel %vm1206, %v1191, %v946
      %v1221 = vsel %vm1206, %v1192, %v948
      %v1222 = vsel %vm1206, %v1193, %v950
      %v1223 = vsel %vm1206, %v1194, %v952
      %v1224 = vsel %vm1206, %v1195, %v954
      %v1225 = vsel %vm1206, %v1196, %v956
      %v1226 = vsel %vm1206, %v1197, %v958
      %v1227 = vsel %vm1206, %v1198, %v960
      %v1228 = vsel %vm1206, %v1199, %v962
      %v1229 = vsel %vm1206, %v1200, %v964
      %v1230 = vsel %vm1206, %v1201, %v966
      %v1231 = vsel %vm1206, %v1202, %v968
      %v1232 = vsel %vm1206, %v1203, %v970
      %v1233 = vsel %vm1206, %v1204, %v972
      %v1234 = vsel %vm1206, %v1205, %v974
      %v1263 = vcombine.high %v1207, %v1207
      %v1265 = vunpack.c.l.s4 1983009808
      %v1266 = vunpack.c.0.s8 %v1265
      %v1267 = vlaneseq
      %v1268 = vshrl.u32 %v1267, 7
      %v1269 = vsub.s32 %v1266, %v1268
      %v1270 = vrot.slane %v1207, %v1269
      %v1272 = vunpack.c.l.s4 1983009808
      %v1273 = vunpack.c.0.s8 %v1272
      %v1274 = vlaneseq
      %v1275 = vshrl.u32 %v1274, 7
      %v1276 = vsub.s32 %v1273, %v1275
      %v1277 = vrot.slane %v1263, %v1276
      %v1278 = vcombine.high %v1270, %v1270
      %v1279 = vcombine.high %v1277, %v1277
      %v1280 = vcombine.high %v1208, %v1208
      %v1282 = vunpack.c.l.s4 1983009808
      %v1283 = vunpack.c.0.s8 %v1282
      %v1284 = vlaneseq
      %v1285 = vshrl.u32 %v1284, 7
      %v1286 = vsub.s32 %v1283, %v1285
      %v1287 = vrot.slane %v1208, %v1286
      %v1289 = vunpack.c.l.s4 1983009808
      %v1290 = vunpack.c.0.s8 %v1289
      %v1291 = vlaneseq
      %v1292 = vshrl.u32 %v1291, 7
      %v1293 = vsub.s32 %v1290, %v1292
      %v1294 = vrot.slane %v1280, %v1293
      %v1295 = vcombine.high %v1287, %v1287
      %v1296 = vcombine.high %v1209, %v1209
      %v1298 = vunpack.c.l.s4 1983009808
      %v1299 = vunpack.c.0.s8 %v1298
      %v1300 = vlaneseq
      %v1301 = vshrl.u32 %v1300, 7
      %v1302 = vsub.s32 %v1299, %v1301
      %v1303 = vrot.slane %v1209, %v1302
      %v1305 = vunpack.c.l.s4 1983009808
      %v1306 = vunpack.c.0.s8 %v1305
      %v1307 = vlaneseq
      %v1308 = vshrl.u32 %v1307, 7
      %v1309 = vsub.s32 %v1306, %v1308
      %v1310 = vrot.slane %v1296, %v1309
      %v1311 = vcombine.high %v1303, %v1303
      %v1312 = vcombine.high %v1310, %v1310
      %v1313 = vcombine.high %v1210, %v1210
      %v1315 = vunpack.c.l.s4 1983009808
      %v1316 = vunpack.c.0.s8 %v1315
      %v1317 = vlaneseq
      %v1318 = vshrl.u32 %v1317, 7
      %v1319 = vsub.s32 %v1316, %v1318
      %v1320 = vrot.slane %v1210, %v1319
      %v1322 = vunpack.c.l.s4 1983009808
      %v1323 = vunpack.c.0.s8 %v1322
      %v1324 = vlaneseq
      %v1325 = vshrl.u32 %v1324, 7
      %v1326 = vsub.s32 %v1323, %v1325
      %v1327 = vrot.slane %v1313, %v1326
      %v1328 = vcombine.high %v1320, %v1320
      %v1329 = vcombine.high %v1211, %v1211
      %v1331 = vunpack.c.l.s4 1983009808
      %v1332 = vunpack.c.0.s8 %v1331
      %v1333 = vlaneseq
      %v1334 = vshrl.u32 %v1333, 7
      %v1335 = vsub.s32 %v1332, %v1334
      %v1336 = vrot.slane %v1211, %v1335
      %v1338 = vunpack.c.l.s4 1983009808
      %v1339 = vunpack.c.0.s8 %v1338
      %v1340 = vlaneseq
      %v1341 = vshrl.u32 %v1340, 7
      %v1342 = vsub.s32 %v1339, %v1341
      %v1343 = vrot.slane %v1329, %v1342
      %v1344 = vcombine.high %v1336, %v1336
      %v1345 = vcombine.high %v1343, %v1343
      %v1346 = vcombine.high %v1212, %v1212
      %v1348 = vunpack.c.l.s4 1983009808
      %v1349 = vunpack.c.0.s8 %v1348
      %v1350 = vlaneseq
      %v1351 = vshrl.u32 %v1350, 7
      %v1352 = vsub.s32 %v1349, %v1351
      %v1353 = vrot.slane %v1212, %v1352
      %v1355 = vunpack.c.l.s4 1983009808
      %v1356 = vunpack.c.0.s8 %v1355
      %v1357 = vlaneseq
      %v1358 = vshrl.u32 %v1357, 7
      %v1359 = vsub.s32 %v1356, %v1358
      %v1360 = vrot.slane %v1346, %v1359
      %v1361 = vcombine.high %v1353, %v1353
      %v1362 = vcombine.high %v1213, %v1213
      %v1364 = vunpack.c.l.s4 1983009808
      %v1365 = vunpack.c.0.s8 %v1364
      %v1366 = vlaneseq
      %v1367 = vshrl.u32 %v1366, 7
      %v1368 = vsub.s32 %v1365, %v1367
      %v1369 = vrot.slane %v1213, %v1368
      %v1371 = vunpack.c.l.s4 1983009808
      %v1372 = vunpack.c.0.s8 %v1371
      %v1373 = vlaneseq
      %v1374 = vshrl.u32 %v1373, 7
      %v1375 = vsub.s32 %v1372, %v1374
      %v1376 = vrot.slane %v1362, %v1375
      %v1377 = vcombine.high %v1369, %v1369
      %v1378 = vcombine.high %v1376, %v1376
      %v1379 = vcombine.high %v1214, %v1214
      %v1381 = vunpack.c.l.s4 1983009808
      %v1382 = vunpack.c.0.s8 %v1381
      %v1383 = vlaneseq
      %v1384 = vshrl.u32 %v1383, 7
      %v1385 = vsub.s32 %v1382, %v1384
      %v1386 = vrot.slane %v1214, %v1385
      %v1388 = vunpack.c.l.s4 1983009808
      %v1389 = vunpack.c.0.s8 %v1388
      %v1390 = vlaneseq
      %v1391 = vshrl.u32 %v1390, 7
      %v1392 = vsub.s32 %v1389, %v1391
      %v1393 = vrot.slane %v1379, %v1392
      %v1394 = vcombine.high %v1386, %v1386
      %v1395 = vcombine.high %v1215, %v1215
      %v1397 = vunpack.c.l.s4 1983009808
      %v1398 = vunpack.c.0.s8 %v1397
      %v1399 = vlaneseq
      %v1400 = vshrl.u32 %v1399, 7
      %v1401 = vsub.s32 %v1398, %v1400
      %v1402 = vrot.slane %v1215, %v1401
      %v1404 = vunpack.c.l.s4 1983009808
      %v1405 = vunpack.c.0.s8 %v1404
      %v1406 = vlaneseq
      %v1407 = vshrl.u32 %v1406, 7
      %v1408 = vsub.s32 %v1405, %v1407
      %v1409 = vrot.slane %v1395, %v1408
      %v1410 = vcombine.high %v1402, %v1402
      %v1411 = vcombine.high %v1409, %v1409
      %v1412 = vcombine.high %v1216, %v1216
      %v1414 = vunpack.c.l.s4 1983009808
      %v1415 = vunpack.c.0.s8 %v1414
      %v1416 = vlaneseq
      %v1417 = vshrl.u32 %v1416, 7
      %v1418 = vsub.s32 %v1415, %v1417
      %v1419 = vrot.slane %v1216, %v1418
      %v1421 = vunpack.c.l.s4 1983009808
      %v1422 = vunpack.c.0.s8 %v1421
      %v1423 = vlaneseq
      %v1424 = vshrl.u32 %v1423, 7
      %v1425 = vsub.s32 %v1422, %v1424
      %v1426 = vrot.slane %v1412, %v1425
      %v1427 = vcombine.high %v1419, %v1419
      %v1428 = vcombine.high %v1217, %v1217
      %v1430 = vunpack.c.l.s4 1983009808
      %v1431 = vunpack.c.0.s8 %v1430
      %v1432 = vlaneseq
      %v1433 = vshrl.u32 %v1432, 7
      %v1434 = vsub.s32 %v1431, %v1433
      %v1435 = vrot.slane %v1217, %v1434
      %v1437 = vunpack.c.l.s4 1983009808
      %v1438 = vunpack.c.0.s8 %v1437
      %v1439 = vlaneseq
      %v1440 = vshrl.u32 %v1439, 7
      %v1441 = vsub.s32 %v1438, %v1440
      %v1442 = vrot.slane %v1428, %v1441
      %v1443 = vcombine.high %v1435, %v1435
      %v1444 = vcombine.high %v1442, %v1442
      %v1445 = vcombine.high %v1218, %v1218
      %v1447 = vunpack.c.l.s4 1983009808
      %v1448 = vunpack.c.0.s8 %v1447
      %v1449 = vlaneseq
      %v1450 = vshrl.u32 %v1449, 7
      %v1451 = vsub.s32 %v1448, %v1450
      %v1452 = vrot.slane %v1218, %v1451
      %v1454 = vunpack.c.l.s4 1983009808
      %v1455 = vunpack.c.0.s8 %v1454
      %v1456 = vlaneseq
      %v1457 = vshrl.u32 %v1456, 7
      %v1458 = vsub.s32 %v1455, %v1457
      %v1459 = vrot.slane %v1445, %v1458
      %v1460 = vcombine.high %v1452, %v1452
      %v1461 = vcombine.high %v1219, %v1219
      %v1463 = vunpack.c.l.s4 1983009808
      %v1464 = vunpack.c.0.s8 %v1463
      %v1465 = vlaneseq
      %v1466 = vshrl.u32 %v1465, 7
      %v1467 = vsub.s32 %v1464, %v1466
      %v1468 = vrot.slane %v1219, %v1467
      %v1470 = vunpack.c.l.s4 1983009808
      %v1471 = vunpack.c.0.s8 %v1470
      %v1472 = vlaneseq
      %v1473 = vshrl.u32 %v1472, 7
      %v1474 = vsub.s32 %v1471, %v1473
      %v1475 = vrot.slane %v1461, %v1474
      %v1476 = vcombine.high %v1468, %v1468
      %v1477 = vcombine.high %v1475, %v1475
      %v1478 = vcombine.high %v1220, %v1220
      %v1480 = vunpack.c.l.s4 1983009808
      %v1481 = vunpack.c.0.s8 %v1480
      %v1482 = vlaneseq
      %v1483 = vshrl.u32 %v1482, 7
      %v1484 = vsub.s32 %v1481, %v1483
      %v1485 = vrot.slane %v1220, %v1484
      %v1487 = vunpack.c.l.s4 1983009808
      %v1488 = vunpack.c.0.s8 %v1487
      %v1489 = vlaneseq
      %v1490 = vshrl.u32 %v1489, 7
      %v1491 = vsub.s32 %v1488, %v1490
      %v1492 = vrot.slane %v1478, %v1491
      %v1493 = vcombine.high %v1485, %v1485
      %v1494 = vcombine.high %v1221, %v1221
      %v1496 = vunpack.c.l.s4 1983009808
      %v1497 = vunpack.c.0.s8 %v1496
      %v1498 = vlaneseq
      %v1499 = vshrl.u32 %v1498, 7
      %v1500 = vsub.s32 %v1497, %v1499
      %v1501 = vrot.slane %v1221, %v1500
      %v1503 = vunpack.c.l.s4 1983009808
      %v1504 = vunpack.c.0.s8 %v1503
      %v1505 = vlaneseq
      %v1506 = vshrl.u32 %v1505, 7
      %v1507 = vsub.s32 %v1504, %v1506
      %v1508 = vrot.slane %v1494, %v1507
      %v1509 = vcombine.high %v1501, %v1501
      %v1510 = vcombine.high %v1508, %v1508
      %v1511 = vcombine.high %v1222, %v1222
      %v1513 = vunpack.c.l.s4 1983009808
      %v1514 = vunpack.c.0.s8 %v1513
      %v1515 = vlaneseq
      %v1516 = vshrl.u32 %v1515, 7
      %v1517 = vsub.s32 %v1514, %v1516
      %v1518 = vrot.slane %v1222, %v1517
      %v1520 = vunpack.c.l.s4 1983009808
      %v1521 = vunpack.c.0.s8 %v1520
      %v1522 = vlaneseq
      %v1523 = vshrl.u32 %v1522, 7
      %v1524 = vsub.s32 %v1521, %v1523
      %v1525 = vrot.slane %v1511, %v1524
      %v1526 = vcombine.high %v1518, %v1518
      %v1527 = vcombine.high %v1223, %v1223
      %v1529 = vunpack.c.l.s4 1983009808
      %v1530 = vunpack.c.0.s8 %v1529
      %v1531 = vlaneseq
      %v1532 = vshrl.u32 %v1531, 7
      %v1533 = vsub.s32 %v1530, %v1532
      %v1534 = vrot.slane %v1223, %v1533
      %v1536 = vunpack.c.l.s4 1983009808
      %v1537 = vunpack.c.0.s8 %v1536
      %v1538 = vlaneseq
      %v1539 = vshrl.u32 %v1538, 7
      %v1540 = vsub.s32 %v1537, %v1539
      %v1541 = vrot.slane %v1527, %v1540
      %v1542 = vcombine.high %v1534, %v1534
      %v1543 = vcombine.high %v1541, %v1541
      %v1544 = vcombine.high %v1224, %v1224
      %v1546 = vunpack.c.l.s4 1983009808
      %v1547 = vunpack.c.0.s8 %v1546
      %v1548 = vlaneseq
      %v1549 = vshrl.u32 %v1548, 7
      %v1550 = vsub.s32 %v1547, %v1549
      %v1551 = vrot.slane %v1224, %v1550
      %v1553 = vunpack.c.l.s4 1983009808
      %v1554 = vunpack.c.0.s8 %v1553
      %v1555 = vlaneseq
      %v1556 = vshrl.u32 %v1555, 7
      %v1557 = vsub.s32 %v1554, %v1556
      %v1558 = vrot.slane %v1544, %v1557
      %v1559 = vcombine.high %v1551, %v1551
      %v1560 = vcombine.high %v1225, %v1225
      %v1562 = vunpack.c.l.s4 1983009808
      %v1563 = vunpack.c.0.s8 %v1562
      %v1564 = vlaneseq
      %v1565 = vshrl.u32 %v1564, 7
      %v1566 = vsub.s32 %v1563, %v1565
      %v1567 = vrot.slane %v1225, %v1566
      %v1569 = vunpack.c.l.s4 1983009808
      %v1570 = vunpack.c.0.s8 %v1569
      %v1571 = vlaneseq
      %v1572 = vshrl.u32 %v1571, 7
      %v1573 = vsub.s32 %v1570, %v1572
      %v1574 = vrot.slane %v1560, %v1573
      %v1575 = vcombine.high %v1567, %v1567
      %v1576 = vcombine.high %v1574, %v1574
      %v1577 = vcombine.high %v1226, %v1226
      %v1579 = vunpack.c.l.s4 1983009808
      %v1580 = vunpack.c.0.s8 %v1579
      %v1581 = vlaneseq
      %v1582 = vshrl.u32 %v1581, 7
      %v1583 = vsub.s32 %v1580, %v1582
      %v1584 = vrot.slane %v1226, %v1583
      %v1586 = vunpack.c.l.s4 1983009808
      %v1587 = vunpack.c.0.s8 %v1586
      %v1588 = vlaneseq
      %v1589 = vshrl.u32 %v1588, 7
      %v1590 = vsub.s32 %v1587, %v1589
      %v1591 = vrot.slane %v1577, %v1590
      %v1592 = vcombine.high %v1584, %v1584
      %v1593 = vcombine.high %v1227, %v1227
      %v1595 = vunpack.c.l.s4 1983009808
      %v1596 = vunpack.c.0.s8 %v1595
      %v1597 = vlaneseq
      %v1598 = vshrl.u32 %v1597, 7
      %v1599 = vsub.s32 %v1596, %v1598
      %v1600 = vrot.slane %v1227, %v1599
      %v1602 = vunpack.c.l.s4 1983009808
      %v1603 = vunpack.c.0.s8 %v1602
      %v1604 = vlaneseq
      %v1605 = vshrl.u32 %v1604, 7
      %v1606 = vsub.s32 %v1603, %v1605
      %v1607 = vrot.slane %v1593, %v1606
      %v1608 = vcombine.high %v1600, %v1600
      %v1609 = vcombine.high %v1607, %v1607
      %v1610 = vcombine.high %v1228, %v1228
      %v1612 = vunpack.c.l.s4 1983009808
      %v1613 = vunpack.c.0.s8 %v1612
      %v1614 = vlaneseq
      %v1615 = vshrl.u32 %v1614, 7
      %v1616 = vsub.s32 %v1613, %v1615
      %v1617 = vrot.slane %v1228, %v1616
      %v1619 = vunpack.c.l.s4 1983009808
      %v1620 = vunpack.c.0.s8 %v1619
      %v1621 = vlaneseq
      %v1622 = vshrl.u32 %v1621, 7
      %v1623 = vsub.s32 %v1620, %v1622
      %v1624 = vrot.slane %v1610, %v1623
      %v1625 = vcombine.high %v1617, %v1617
      %v1626 = vcombine.high %v1229, %v1229
      %v1628 = vunpack.c.l.s4 1983009808
      %v1629 = vunpack.c.0.s8 %v1628
      %v1630 = vlaneseq
      %v1631 = vshrl.u32 %v1630, 7
      %v1632 = vsub.s32 %v1629, %v1631
      %v1633 = vrot.slane %v1229, %v1632
      %v1635 = vunpack.c.l.s4 1983009808
      %v1636 = vunpack.c.0.s8 %v1635
      %v1637 = vlaneseq
      %v1638 = vshrl.u32 %v1637, 7
      %v1639 = vsub.s32 %v1636, %v1638
      %v1640 = vrot.slane %v1626, %v1639
      %v1641 = vcombine.high %v1633, %v1633
      %v1642 = vcombine.high %v1640, %v1640
      %v1643 = vcombine.high %v1230, %v1230
      %v1645 = vunpack.c.l.s4 1983009808
      %v1646 = vunpack.c.0.s8 %v1645
      %v1647 = vlaneseq
      %v1648 = vshrl.u32 %v1647, 7
      %v1649 = vsub.s32 %v1646, %v1648
      %v1650 = vrot.slane %v1230, %v1649
      %v1652 = vunpack.c.l.s4 1983009808
      %v1653 = vunpack.c.0.s8 %v1652
      %v1654 = vlaneseq
      %v1655 = vshrl.u32 %v1654, 7
      %v1656 = vsub.s32 %v1653, %v1655
      %v1657 = vrot.slane %v1643, %v1656
      %v1658 = vcombine.high %v1650, %v1650
      %v1659 = vcombine.high %v1231, %v1231
      %v1661 = vunpack.c.l.s4 1983009808
      %v1662 = vunpack.c.0.s8 %v1661
      %v1663 = vlaneseq
      %v1664 = vshrl.u32 %v1663, 7
      %v1665 = vsub.s32 %v1662, %v1664
      %v1666 = vrot.slane %v1231, %v1665
      %v1668 = vunpack.c.l.s4 1983009808
      %v1669 = vunpack.c.0.s8 %v1668
      %v1670 = vlaneseq
      %v1671 = vshrl.u32 %v1670, 7
      %v1672 = vsub.s32 %v1669, %v1671
      %v1673 = vrot.slane %v1659, %v1672
      %v1674 = vcombine.high %v1666, %v1666
      %v1675 = vcombine.high %v1673, %v1673
      %v1676 = vcombine.high %v1232, %v1232
      %v1678 = vunpack.c.l.s4 1983009808
      %v1679 = vunpack.c.0.s8 %v1678
      %v1680 = vlaneseq
      %v1681 = vshrl.u32 %v1680, 7
      %v1682 = vsub.s32 %v1679, %v1681
      %v1683 = vrot.slane %v1232, %v1682
      %v1685 = vunpack.c.l.s4 1983009808
      %v1686 = vunpack.c.0.s8 %v1685
      %v1687 = vlaneseq
      %v1688 = vshrl.u32 %v1687, 7
      %v1689 = vsub.s32 %v1686, %v1688
      %v1690 = vrot.slane %v1676, %v1689
      %v1691 = vcombine.high %v1683, %v1683
      %v1692 = vcombine.high %v1233, %v1233
      %v1694 = vunpack.c.l.s4 1983009808
      %v1695 = vunpack.c.0.s8 %v1694
      %v1696 = vlaneseq
      %v1697 = vshrl.u32 %v1696, 7
      %v1698 = vsub.s32 %v1695, %v1697
      %v1699 = vrot.slane %v1233, %v1698
      %v1701 = vunpack.c.l.s4 1983009808
      %v1702 = vunpack.c.0.s8 %v1701
      %v1703 = vlaneseq
      %v1704 = vshrl.u32 %v1703, 7
      %v1705 = vsub.s32 %v1702, %v1704
      %v1706 = vrot.slane %v1692, %v1705
      %v1707 = vcombine.high %v1699, %v1699
      %v1708 = vcombine.high %v1706, %v1706
      %v1709 = vcombine.high %v1234, %v1234
      %v1711 = vunpack.c.l.s4 1983009808
      %v1712 = vunpack.c.0.s8 %v1711
      %v1713 = vlaneseq
      %v1714 = vshrl.u32 %v1713, 7
      %v1715 = vsub.s32 %v1712, %v1714
      %v1716 = vrot.slane %v1234, %v1715
      %v1718 = vunpack.c.l.s4 1983009808
      %v1719 = vunpack.c.0.s8 %v1718
      %v1720 = vlaneseq
      %v1721 = vshrl.u32 %v1720, 7
      %v1722 = vsub.s32 %v1719, %v1721
      %v1723 = vrot.slane %v1709, %v1722
      %v1724 = vcombine.high %v1716, %v1716
      %v1725 = vld [vmem:[%s1] sm:$0xff]
      %v1726 = vld [vmem:[%s1 + $0x8] sm:$0xff]
      %v1727 = vld [vmem:[%s1 + $0x10] sm:$0xff]
      %v1728 = vld [vmem:[%s1 + $0x18] sm:$0xff]
      %v1729 = vld [vmem:[%s1 + $0x20] sm:$0xf]
      %v1730 = vcombine.low %v1270, %v1278
      %v1731 = vcombine.low %v1277, %v1279
      %v1733 = vunpack.c.l.s4 1983009808
      %v1734 = vunpack.c.0.s8 %v1733
      %v1735 = vlaneseq
      %v1736 = vshrl.u32 %v1735, 7
      %v1737 = vsub.s32 %v1734, %v1736
      %v1738 = vrot.slane %v1730, %v1737
      %v1740 = vunpack.c.l.s4 1983009808
      %v1741 = vunpack.c.0.s8 %v1740
      %v1742 = vlaneseq
      %v1743 = vshrl.u32 %v1742, 7
      %v1744 = vsub.s32 %v1741, %v1743
      %v1745 = vrot.slane %v1731, %v1744
      %v1746 = vcombine.low %v1738, %v1745
      %v1747 = vcombine.low %v1287, %v1295
      %v1748 = vcombine.low %v1294, %v1303
      %v1750 = vunpack.c.l.s4 1983009808
      %v1751 = vunpack.c.0.s8 %v1750
      %v1752 = vlaneseq
      %v1753 = vshrl.u32 %v1752, 7
      %v1754 = vsub.s32 %v1751, %v1753
      %v1755 = vrot.slane %v1747, %v1754
      %v1757 = vunpack.c.l.s4 1983009808
      %v1758 = vunpack.c.0.s8 %v1757
      %v1759 = vlaneseq
      %v1760 = vshrl.u32 %v1759, 7
      %v1761 = vsub.s32 %v1758, %v1760
      %v1762 = vrot.slane %v1748, %v1761
      %v1763 = vcombine.low %v1755, %v1762
      %v1764 = vcombine.low %v1311, %v1310
      %v1765 = vcombine.low %v1312, %v1320
      %v1767 = vunpack.c.l.s4 1983009808
      %v1768 = vunpack.c.0.s8 %v1767
      %v1769 = vlaneseq
      %v1770 = vshrl.u32 %v1769, 7
      %v1771 = vsub.s32 %v1768, %v1770
      %v1772 = vrot.slane %v1764, %v1771
      %v1774 = vunpack.c.l.s4 1983009808
      %v1775 = vunpack.c.0.s8 %v1774
      %v1776 = vlaneseq
      %v1777 = vshrl.u32 %v1776, 7
      %v1778 = vsub.s32 %v1775, %v1777
      %v1779 = vrot.slane %v1765, %v1778
      %v1780 = vcombine.low %v1772, %v1779
      %v1781 = vcombine.low %v1328, %v1327
      %v1782 = vcombine.low %v1336, %v1344
      %v1784 = vunpack.c.l.s4 1983009808
      %v1785 = vunpack.c.0.s8 %v1784
      %v1786 = vlaneseq
      %v1787 = vshrl.u32 %v1786, 7
      %v1788 = vsub.s32 %v1785, %v1787
      %v1789 = vrot.slane %v1781, %v1788
      %v1791 = vunpack.c.l.s4 1983009808
      %v1792 = vunpack.c.0.s8 %v1791
      %v1793 = vlaneseq
      %v1794 = vshrl.u32 %v1793, 7
      %v1795 = vsub.s32 %v1792, %v1794
      %v1796 = vrot.slane %v1782, %v1795
      %v1797 = vcombine.low %v1789, %v1796
      %v1798 = vcombine.low %v1343, %v1345
      %v1799 = vcombine.low %v1353, %v1361
      %v1801 = vunpack.c.l.s4 1983009808
      %v1802 = vunpack.c.0.s8 %v1801
      %v1803 = vlaneseq
      %v1804 = vshrl.u32 %v1803, 7
      %v1805 = vsub.s32 %v1802, %v1804
      %v1806 = vrot.slane %v1798, %v1805
      %v1808 = vunpack.c.l.s4 1983009808
      %v1809 = vunpack.c.0.s8 %v1808
      %v1810 = vlaneseq
      %v1811 = vshrl.u32 %v1810, 7
      %v1812 = vsub.s32 %v1809, %v1811
      %v1813 = vrot.slane %v1799, %v1812
      %v1814 = vcombine.low %v1806, %v1813
      %v1815 = vcombine.low %v1360, %v1369
      %v1816 = vcombine.low %v1377, %v1376
      %v1818 = vunpack.c.l.s4 1983009808
      %v1819 = vunpack.c.0.s8 %v1818
      %v1820 = vlaneseq
      %v1821 = vshrl.u32 %v1820, 7
      %v1822 = vsub.s32 %v1819, %v1821
      %v1823 = vrot.slane %v1815, %v1822
      %v1825 = vunpack.c.l.s4 1983009808
      %v1826 = vunpack.c.0.s8 %v1825
      %v1827 = vlaneseq
      %v1828 = vshrl.u32 %v1827, 7
      %v1829 = vsub.s32 %v1826, %v1828
      %v1830 = vrot.slane %v1816, %v1829
      %v1831 = vcombine.low %v1823, %v1830
      %v1832 = vcombine.low %v1378, %v1386
      %v1833 = vcombine.low %v1394, %v1393
      %v1835 = vunpack.c.l.s4 1983009808
      %v1836 = vunpack.c.0.s8 %v1835
      %v1837 = vlaneseq
      %v1838 = vshrl.u32 %v1837, 7
      %v1839 = vsub.s32 %v1836, %v1838
      %v1840 = vrot.slane %v1832, %v1839
      %v1842 = vunpack.c.l.s4 1983009808
      %v1843 = vunpack.c.0.s8 %v1842
      %v1844 = vlaneseq
      %v1845 = vshrl.u32 %v1844, 7
      %v1846 = vsub.s32 %v1843, %v1845
      %v1847 = vrot.slane %v1833, %v1846
      %v1848 = vcombine.low %v1840, %v1847
      %v1849 = vcombine.low %v1402, %v1410
      %v1850 = vcombine.low %v1409, %v1411
      %v1852 = vunpack.c.l.s4 1983009808
      %v1853 = vunpack.c.0.s8 %v1852
      %v1854 = vlaneseq
      %v1855 = vshrl.u32 %v1854, 7
      %v1856 = vsub.s32 %v1853, %v1855
      %v1857 = vrot.slane %v1849, %v1856
      %v1859 = vunpack.c.l.s4 1983009808
      %v1860 = vunpack.c.0.s8 %v1859
      %v1861 = vlaneseq
      %v1862 = vshrl.u32 %v1861, 7
      %v1863 = vsub.s32 %v1860, %v1862
      %v1864 = vrot.slane %v1850, %v1863
      %v1865 = vcombine.low %v1857, %v1864
      %v1866 = vcombine.low %v1419, %v1427
      %v1867 = vcombine.low %v1426, %v1435
      %v1869 = vunpack.c.l.s4 1983009808
      %v1870 = vunpack.c.0.s8 %v1869
      %v1871 = vlaneseq
      %v1872 = vshrl.u32 %v1871, 7
      %v1873 = vsub.s32 %v1870, %v1872
      %v1874 = vrot.slane %v1866, %v1873
      %v1876 = vunpack.c.l.s4 1983009808
      %v1877 = vunpack.c.0.s8 %v1876
      %v1878 = vlaneseq
      %v1879 = vshrl.u32 %v1878, 7
      %v1880 = vsub.s32 %v1877, %v1879
      %v1881 = vrot.slane %v1867, %v1880
      %v1882 = vcombine.low %v1874, %v1881
      %v1883 = vcombine.low %v1443, %v1442
      %v1884 = vcombine.low %v1444, %v1452
      %v1886 = vunpack.c.l.s4 1983009808
      %v1887 = vunpack.c.0.s8 %v1886
      %v1888 = vlaneseq
      %v1889 = vshrl.u32 %v1888, 7
      %v1890 = vsub.s32 %v1887, %v1889
      %v1891 = vrot.slane %v1883, %v1890
      %v1893 = vunpack.c.l.s4 1983009808
      %v1894 = vunpack.c.0.s8 %v1893
      %v1895 = vlaneseq
      %v1896 = vshrl.u32 %v1895, 7
      %v1897 = vsub.s32 %v1894, %v1896
      %v1898 = vrot.slane %v1884, %v1897
      %v1899 = vcombine.low %v1891, %v1898
      %v1900 = vcombine.low %v1460, %v1459
      %v1901 = vcombine.low %v1468, %v1476
      %v1903 = vunpack.c.l.s4 1983009808
      %v1904 = vunpack.c.0.s8 %v1903
      %v1905 = vlaneseq
      %v1906 = vshrl.u32 %v1905, 7
      %v1907 = vsub.s32 %v1904, %v1906
      %v1908 = vrot.slane %v1900, %v1907
      %v1910 = vunpack.c.l.s4 1983009808
      %v1911 = vunpack.c.0.s8 %v1910
      %v1912 = vlaneseq
      %v1913 = vshrl.u32 %v1912, 7
      %v1914 = vsub.s32 %v1911, %v1913
      %v1915 = vrot.slane %v1901, %v1914
      %v1916 = vcombine.low %v1908, %v1915
      %v1917 = vcombine.low %v1475, %v1477
      %v1918 = vcombine.low %v1485, %v1493
      %v1920 = vunpack.c.l.s4 1983009808
      %v1921 = vunpack.c.0.s8 %v1920
      %v1922 = vlaneseq
      %v1923 = vshrl.u32 %v1922, 7
      %v1924 = vsub.s32 %v1921, %v1923
      %v1925 = vrot.slane %v1917, %v1924
      %v1927 = vunpack.c.l.s4 1983009808
      %v1928 = vunpack.c.0.s8 %v1927
      %v1929 = vlaneseq
      %v1930 = vshrl.u32 %v1929, 7
      %v1931 = vsub.s32 %v1928, %v1930
      %v1932 = vrot.slane %v1918, %v1931
      %v1933 = vcombine.low %v1925, %v1932
      %v1934 = vcombine.low %v1492, %v1501
      %v1935 = vcombine.low %v1509, %v1508
      %v1937 = vunpack.c.l.s4 1983009808
      %v1938 = vunpack.c.0.s8 %v1937
      %v1939 = vlaneseq
      %v1940 = vshrl.u32 %v1939, 7
      %v1941 = vsub.s32 %v1938, %v1940
      %v1942 = vrot.slane %v1934, %v1941
      %v1944 = vunpack.c.l.s4 1983009808
      %v1945 = vunpack.c.0.s8 %v1944
      %v1946 = vlaneseq
      %v1947 = vshrl.u32 %v1946, 7
      %v1948 = vsub.s32 %v1945, %v1947
      %v1949 = vrot.slane %v1935, %v1948
      %v1950 = vcombine.low %v1942, %v1949
      %v1951 = vcombine.low %v1510, %v1518
      %v1952 = vcombine.low %v1526, %v1525
      %v1954 = vunpack.c.l.s4 1983009808
      %v1955 = vunpack.c.0.s8 %v1954
      %v1956 = vlaneseq
      %v1957 = vshrl.u32 %v1956, 7
      %v1958 = vsub.s32 %v1955, %v1957
      %v1959 = vrot.slane %v1951, %v1958
      %v1961 = vunpack.c.l.s4 1983009808
      %v1962 = vunpack.c.0.s8 %v1961
      %v1963 = vlaneseq
      %v1964 = vshrl.u32 %v1963, 7
      %v1965 = vsub.s32 %v1962, %v1964
      %v1966 = vrot.slane %v1952, %v1965
      %v1967 = vcombine.low %v1959, %v1966
      %v1968 = vcombine.low %v1534, %v1542
      %v1969 = vcombine.low %v1541, %v1543
      %v1971 = vunpack.c.l.s4 1983009808
      %v1972 = vunpack.c.0.s8 %v1971
      %v1973 = vlaneseq
      %v1974 = vshrl.u32 %v1973, 7
      %v1975 = vsub.s32 %v1972, %v1974
      %v1976 = vrot.slane %v1968, %v1975
      %v1978 = vunpack.c.l.s4 1983009808
      %v1979 = vunpack.c.0.s8 %v1978
      %v1980 = vlaneseq
      %v1981 = vshrl.u32 %v1980, 7
      %v1982 = vsub.s32 %v1979, %v1981
      %v1983 = vrot.slane %v1969, %v1982
      %v1984 = vcombine.low %v1976, %v1983
      %v1985 = vcombine.low %v1551, %v1559
      %v1986 = vcombine.low %v1558, %v1567
      %v1988 = vunpack.c.l.s4 1983009808
      %v1989 = vunpack.c.0.s8 %v1988
      %v1990 = vlaneseq
      %v1991 = vshrl.u32 %v1990, 7
      %v1992 = vsub.s32 %v1989, %v1991
      %v1993 = vrot.slane %v1985, %v1992
      %v1995 = vunpack.c.l.s4 1983009808
      %v1996 = vunpack.c.0.s8 %v1995
      %v1997 = vlaneseq
      %v1998 = vshrl.u32 %v1997, 7
      %v1999 = vsub.s32 %v1996, %v1998
      %v2000 = vrot.slane %v1986, %v1999
      %v2001 = vcombine.low %v1993, %v2000
      %v2002 = vcombine.low %v1575, %v1574
      %v2003 = vcombine.low %v1576, %v1584
      %v2005 = vunpack.c.l.s4 1983009808
      %v2006 = vunpack.c.0.s8 %v2005
      %v2007 = vlaneseq
      %v2008 = vshrl.u32 %v2007, 7
      %v2009 = vsub.s32 %v2006, %v2008
      %v2010 = vrot.slane %v2002, %v2009
      %v2012 = vunpack.c.l.s4 1983009808
      %v2013 = vunpack.c.0.s8 %v2012
      %v2014 = vlaneseq
      %v2015 = vshrl.u32 %v2014, 7
      %v2016 = vsub.s32 %v2013, %v2015
      %v2017 = vrot.slane %v2003, %v2016
      %v2018 = vcombine.low %v2010, %v2017
      %v2019 = vcombine.low %v1592, %v1591
      %v2020 = vcombine.low %v1600, %v1608
      %v2022 = vunpack.c.l.s4 1983009808
      %v2023 = vunpack.c.0.s8 %v2022
      %v2024 = vlaneseq
      %v2025 = vshrl.u32 %v2024, 7
      %v2026 = vsub.s32 %v2023, %v2025
      %v2027 = vrot.slane %v2019, %v2026
      %v2029 = vunpack.c.l.s4 1983009808
      %v2030 = vunpack.c.0.s8 %v2029
      %v2031 = vlaneseq
      %v2032 = vshrl.u32 %v2031, 7
      %v2033 = vsub.s32 %v2030, %v2032
      %v2034 = vrot.slane %v2020, %v2033
      %v2035 = vcombine.low %v2027, %v2034
      %v2036 = vcombine.low %v1607, %v1609
      %v2037 = vcombine.low %v1617, %v1625
      %v2039 = vunpack.c.l.s4 1983009808
      %v2040 = vunpack.c.0.s8 %v2039
      %v2041 = vlaneseq
      %v2042 = vshrl.u32 %v2041, 7
      %v2043 = vsub.s32 %v2040, %v2042
      %v2044 = vrot.slane %v2036, %v2043
      %v2046 = vunpack.c.l.s4 1983009808
      %v2047 = vunpack.c.0.s8 %v2046
      %v2048 = vlaneseq
      %v2049 = vshrl.u32 %v2048, 7
      %v2050 = vsub.s32 %v2047, %v2049
      %v2051 = vrot.slane %v2037, %v2050
      %v2052 = vcombine.low %v2044, %v2051
      %v2053 = vcombine.low %v1624, %v1633
      %v2054 = vcombine.low %v1641, %v1640
      %v2056 = vunpack.c.l.s4 1983009808
      %v2057 = vunpack.c.0.s8 %v2056
      %v2058 = vlaneseq
      %v2059 = vshrl.u32 %v2058, 7
      %v2060 = vsub.s32 %v2057, %v2059
      %v2061 = vrot.slane %v2053, %v2060
      %v2063 = vunpack.c.l.s4 1983009808
      %v2064 = vunpack.c.0.s8 %v2063
      %v2065 = vlaneseq
      %v2066 = vshrl.u32 %v2065, 7
      %v2067 = vsub.s32 %v2064, %v2066
      %v2068 = vrot.slane %v2054, %v2067
      %v2069 = vcombine.low %v2061, %v2068
      %v2070 = vcombine.low %v1642, %v1650
      %v2071 = vcombine.low %v1658, %v1657
      %v2073 = vunpack.c.l.s4 1983009808
      %v2074 = vunpack.c.0.s8 %v2073
      %v2075 = vlaneseq
      %v2076 = vshrl.u32 %v2075, 7
      %v2077 = vsub.s32 %v2074, %v2076
      %v2078 = vrot.slane %v2070, %v2077
      %v2080 = vunpack.c.l.s4 1983009808
      %v2081 = vunpack.c.0.s8 %v2080
      %v2082 = vlaneseq
      %v2083 = vshrl.u32 %v2082, 7
      %v2084 = vsub.s32 %v2081, %v2083
      %v2085 = vrot.slane %v2071, %v2084
      %v2086 = vcombine.low %v2078, %v2085
      %v2087 = vcombine.low %v1666, %v1674
      %v2088 = vcombine.low %v1673, %v1675
      %v2090 = vunpack.c.l.s4 1983009808
      %v2091 = vunpack.c.0.s8 %v2090
      %v2092 = vlaneseq
      %v2093 = vshrl.u32 %v2092, 7
      %v2094 = vsub.s32 %v2091, %v2093
      %v2095 = vrot.slane %v2087, %v2094
      %v2097 = vunpack.c.l.s4 1983009808
      %v2098 = vunpack.c.0.s8 %v2097
      %v2099 = vlaneseq
      %v2100 = vshrl.u32 %v2099, 7
      %v2101 = vsub.s32 %v2098, %v2100
      %v2102 = vrot.slane %v2088, %v2101
      %v2103 = vcombine.low %v2095, %v2102
      %v2104 = vcombine.low %v1683, %v1691
      %v2105 = vcombine.low %v1690, %v1699
      %v2107 = vunpack.c.l.s4 1983009808
      %v2108 = vunpack.c.0.s8 %v2107
      %v2109 = vlaneseq
      %v2110 = vshrl.u32 %v2109, 7
      %v2111 = vsub.s32 %v2108, %v2110
      %v2112 = vrot.slane %v2104, %v2111
      %v2114 = vunpack.c.l.s4 1983009808
      %v2115 = vunpack.c.0.s8 %v2114
      %v2116 = vlaneseq
      %v2117 = vshrl.u32 %v2116, 7
      %v2118 = vsub.s32 %v2115, %v2117
      %v2119 = vrot.slane %v2105, %v2118
      %v2120 = vcombine.low %v2112, %v2119
      %v2121 = vcombine.low %v1707, %v1706
      %v2122 = vcombine.low %v1708, %v1716
      %v2124 = vunpack.c.l.s4 1983009808
      %v2125 = vunpack.c.0.s8 %v2124
      %v2126 = vlaneseq
      %v2127 = vshrl.u32 %v2126, 7
      %v2128 = vsub.s32 %v2125, %v2127
      %v2129 = vrot.slane %v2121, %v2128
      %v2131 = vunpack.c.l.s4 1983009808
      %v2132 = vunpack.c.0.s8 %v2131
      %v2133 = vlaneseq
      %v2134 = vshrl.u32 %v2133, 7
      %v2135 = vsub.s32 %v2132, %v2134
      %v2136 = vrot.slane %v2122, %v2135
      %v2137 = vcombine.low %v2129, %v2136
      %v2138 = vcombine.low %v1724, %v1723
      %v2140 = vunpack.c.l.s4 1983009808
      %v2141 = vunpack.c.0.s8 %v2140
      %v2142 = vlaneseq
      %v2143 = vshrl.u32 %v2142, 7
      %v2144 = vsub.s32 %v2141, %v2143
      %v2145 = vrot.slane %v2138, %v2144
      %vm2146 = vcmask 293888
      %v2147 = vsel %vm2146, %v1746, 0
      %v2149 = vsel %vm2146, %v1763, 0
      %v2151 = vsel %vm2146, %v1780, 0
      %v2153 = vsel %vm2146, %v1797, 0
      %v2155 = vsel %vm2146, %v1814, 0
      %v2157 = vsel %vm2146, %v1831, 0
      %v2159 = vsel %vm2146, %v1848, 0
      %v2161 = vsel %vm2146, %v1865, 0
      %v2163 = vsel %vm2146, %v1882, 0
      %v2165 = vsel %vm2146, %v1899, 0
      %v2167 = vsel %vm2146, %v1916, 0
      %v2169 = vsel %vm2146, %v1933, 0
      %v2171 = vsel %vm2146, %v1950, 0
      %v2173 = vsel %vm2146, %v1967, 0
      %v2175 = vsel %vm2146, %v1984, 0
      %v2177 = vsel %vm2146, %v2001, 0
      %v2179 = vsel %vm2146, %v2018, 0
      %v2181 = vsel %vm2146, %v2035, 0
      %v2183 = vsel %vm2146, %v2052, 0
      %v2185 = vsel %vm2146, %v2069, 0
      %v2187 = vsel %vm2146, %v2086, 0
      %v2189 = vsel %vm2146, %v2103, 0
      %v2191 = vsel %vm2146, %v2120, 0
      %v2193 = vsel %vm2146, %v2137, 0
      %v2195 = vsel %vm2146, %v2145, 0
      %vm2197 = vcmask 1043456
      %v2199 = vsel %vm2197, %v1729, 0
      %2201 = vmatprep.subr.mxu0 0.0
      %2202 = vmatpush1.msra.mxu0 %v1725
      %2203 = vmatprep.subr.mxu0 0.0
      %2204 = vmatpush1.msra.mxu0 %v1726
      %2205 = vmatprep.subr.mxu0 0.0
      %2206 = vmatpush1.msra.mxu0 %v1727
      %2207 = vmatprep.subr.mxu0 0.0
      %2208 = vmatpush1.msra.mxu0 %v1728
      %2209 = vmatprep.subr.mxu0 0.0
      %2210 = vmatpush1.msra.mxu0 %v2199
      %2211 = vmatprep.subr.mxu0 0.0
      %2212 = vmatpush1.msra.mxu0 0.0
      %2213 = vmatprep.subr.mxu0 0.0
      %2214 = vmatpush1.msra.mxu0 0.0
      %2215 = vmatprep.subr.mxu0 0.0
      %2216 = vmatpush1.msra.mxu0 0.0
      %2217 = vmatprep.subr.mxu0 0.0
      %2218 = vmatpush1.msra.mxu0 0.0
      %2219 = vmatprep.subr.mxu0 0.0
      %2220 = vmatpush1.msra.mxu0 0.0
      %2221 = vmatprep.subr.mxu0 0.0
      %2222 = vmatpush1.msra.mxu0 0.0
      %2223 = vmatprep.subr.mxu0 0.0
      %2224 = vmatpush1.msra.mxu0 0.0
      %2225 = vmatprep.subr.mxu0 0.0
      %2226 = vmatpush1.msra.mxu0 0.0
      %2227 = vmatprep.subr.mxu0 0.0
      %2228 = vmatpush1.msra.mxu0 0.0
      %2229 = vmatprep.subr.mxu0 0.0
      %2230 = vmatpush1.msra.mxu0 0.0
      %2231 = vmatprep.subr.mxu0 0.0
      %2232 = vmatpush1.msra.mxu0 0.0
      %2233 = vmatprep.subr.mxu0 0.0
      %2234 = vmatpush1.msra.mxu0 0.0
      %2235 = vmatprep.subr.mxu0 0.0
      %2236 = vmatpush1.msra.mxu0 0.0
      %2237 = vmatprep.subr.mxu0 0.0
      %2238 = vmatpush1.msra.mxu0 0.0
      %2239 = vmatprep.subr.mxu0 0.0
      %2240 = vmatpush1.msra.mxu0 0.0
      %2241 = vmatprep.subr.mxu0 0.0
      %2242 = vmatpush1.msra.mxu0 0.0
      %2243 = vmatprep.subr.mxu0 0.0
      %2244 = vmatpush1.msra.mxu0 0.0
      %2245 = vmatprep.subr.mxu0 0.0
      %2246 = vmatpush1.msra.mxu0 0.0
      %2247 = vmatprep.subr.mxu0 0.0
      %2248 = vmatpush1.msra.mxu0 0.0
      %2249 = vmatprep.subr.mxu0 0.0
      %2250 = vmatpush1.msra.mxu0 0.0
      %2251 = vmatprep.subr.mxu0 0.0
      %2252 = vmatpush1.msra.mxu0 0.0
      %2253 = vmatprep.subr.mxu0 0.0
      %2254 = vmatpush1.msra.mxu0 0.0
      %2255 = vmatprep.subr.mxu0 0.0
      %2256 = vmatpush1.msra.mxu0 0.0
      %2257 = vmatprep.subr.mxu0 0.0
      %2258 = vmatpush1.msra.mxu0 0.0
      %2259 = vmatprep.subr.mxu0 0.0
      %2260 = vmatpush1.msra.mxu0 0.0
      %2261 = vmatprep.subr.mxu0 0.0
      %2262 = vmatpush1.msra.mxu0 0.0
      %2263 = vmatprep.subr.mxu0 0.0
      %2264 = vmatpush1.msra.mxu0 0.0
      %2265 = vmatprep.mubr.f32.mxu0 0.0
      %2266 = vmatmul.mubr.f32.gmra.mrb[0].mxu0 %v2147
      %v2267 = vpop.f32.mrb[0].mxu0
      %v2268 = vadd.f32 0.0, %v2267
      %v2269 = vpop.f32.mrb[0].mxu0
      %2270 = vmatprep.mubr.f32.mxu0 0.0
      %2271 = vmatmul.mubr.f32.gmra.mrb[0].mxu0 %v2149
      %v2272 = vpop.f32.mrb[0].mxu0
      %v2273 = vadd.f32 0.0, %v2272
      %v2274 = vpop.f32.mrb[0].mxu0
      %2275 = vmatprep.mubr.f32.mxu0 0.0
      %2276 = vmatmul.mubr.f32.gmra.mrb[0].mxu0 %v2151
      %v2277 = vpop.f32.mrb[0].mxu0
      %v2278 = vadd.f32 0.0, %v2277
      %v2279 = vpop.f32.mrb[0].mxu0
      %2280 = vmatprep.mubr.f32.mxu0 0.0
      %2281 = vmatmul.mubr.f32.gmra.mrb[0].mxu0 %v2153
      %v2282 = vpop.f32.mrb[0].mxu0
      %v2283 = vadd.f32 0.0, %v2282
      %v2284 = vpop.f32.mrb[0].mxu0
      %2285 = vmatprep.mubr.f32.mxu0 0.0
      %2286 = vmatmul.mubr.f32.gmra.mrb[0].mxu0 %v2155
      %v2287 = vpop.f32.mrb[0].mxu0
      %v2288 = vadd.f32 0.0, %v2287
      %v2289 = vpop.f32.mrb[0].mxu0
      %2290 = vmatprep.mubr.f32.mxu0 0.0
      %2291 = vmatmul.mubr.f32.gmra.mrb[0].mxu0 %v2157
      %v2292 = vpop.f32.mrb[0].mxu0
      %v2293 = vadd.f32 0.0, %v2292
      %v2294 = vpop.f32.mrb[0].mxu0
      %2295 = vmatprep.mubr.f32.mxu0 0.0
      %2296 = vmatmul.mubr.f32.gmra.mrb[0].mxu0 %v2159
      %v2297 = vpop.f32.mrb[0].mxu0
      %v2298 = vadd.f32 0.0, %v2297
      %v2299 = vpop.f32.mrb[0].mxu0
      %2300 = vmatprep.mubr.f32.mxu0 0.0
      %2301 = vmatmul.mubr.f32.gmra.mrb[0].mxu0 %v2161
      %v2302 = vpop.f32.mrb[0].mxu0
      %v2303 = vadd.f32 0.0, %v2302
      %v2304 = vpop.f32.mrb[0].mxu0
      %2305 = vmatprep.mubr.f32.mxu0 0.0
      %2306 = vmatmul.mubr.f32.gmra.mrb[0].mxu0 %v2163
      %v2307 = vpop.f32.mrb[0].mxu0
      %v2308 = vadd.f32 0.0, %v2307
      %v2309 = vpop.f32.mrb[0].mxu0
      %2310 = vmatprep.mubr.f32.mxu0 0.0
      %2311 = vmatmul.mubr.f32.gmra.mrb[0].mxu0 %v2165
      %v2312 = vpop.f32.mrb[0].mxu0
      %v2313 = vadd.f32 0.0, %v2312
      %v2314 = vpop.f32.mrb[0].mxu0
      %2315 = vmatprep.mubr.f32.mxu0 0.0
      %2316 = vmatmul.mubr.f32.gmra.mrb[0].mxu0 %v2167
      %v2317 = vpop.f32.mrb[0].mxu0
      %v2318 = vadd.f32 0.0, %v2317
      %v2319 = vpop.f32.mrb[0].mxu0
      %2320 = vmatprep.mubr.f32.mxu0 0.0
      %2321 = vmatmul.mubr.f32.gmra.mrb[0].mxu0 %v2169
      %v2322 = vpop.f32.mrb[0].mxu0
      %v2323 = vadd.f32 0.0, %v2322
      %v2324 = vpop.f32.mrb[0].mxu0
      %2325 = vmatprep.mubr.f32.mxu0 0.0
      %2326 = vmatmul.mubr.f32.gmra.mrb[0].mxu0 %v2171
      %v2327 = vpop.f32.mrb[0].mxu0
      %v2328 = vadd.f32 0.0, %v2327
      %v2329 = vpop.f32.mrb[0].mxu0
      %2330 = vmatprep.mubr.f32.mxu0 0.0
      %2331 = vmatmul.mubr.f32.gmra.mrb[0].mxu0 %v2173
      %v2332 = vpop.f32.mrb[0].mxu0
      %v2333 = vadd.f32 0.0, %v2332
      %v2334 = vpop.f32.mrb[0].mxu0
      %2335 = vmatprep.mubr.f32.mxu0 0.0
      %2336 = vmatmul.mubr.f32.gmra.mrb[0].mxu0 %v2175
      %v2337 = vpop.f32.mrb[0].mxu0
      %v2338 = vadd.f32 0.0, %v2337
      %v2339 = vpop.f32.mrb[0].mxu0
      %2340 = vmatprep.mubr.f32.mxu0 0.0
      %2341 = vmatmul.mubr.f32.gmra.mrb[0].mxu0 %v2177
      %v2342 = vpop.f32.mrb[0].mxu0
      %v2343 = vadd.f32 0.0, %v2342
      %v2344 = vpop.f32.mrb[0].mxu0
      %2345 = vmatprep.mubr.f32.mxu0 0.0
      %2346 = vmatmul.mubr.f32.gmra.mrb[0].mxu0 %v2179
      %v2347 = vpop.f32.mrb[0].mxu0
      %v2348 = vadd.f32 0.0, %v2347
      %v2349 = vpop.f32.mrb[0].mxu0
      %2350 = vmatprep.mubr.f32.mxu0 0.0
      %2351 = vmatmul.mubr.f32.gmra.mrb[0].mxu0 %v2181
      %v2352 = vpop.f32.mrb[0].mxu0
      %v2353 = vadd.f32 0.0, %v2352
      %v2354 = vpop.f32.mrb[0].mxu0
      %2355 = vmatprep.mubr.f32.mxu0 0.0
      %2356 = vmatmul.mubr.f32.gmra.mrb[0].mxu0 %v2183
      %v2357 = vpop.f32.mrb[0].mxu0
      %v2358 = vadd.f32 0.0, %v2357
      %v2359 = vpop.f32.mrb[0].mxu0
      %2360 = vmatprep.mubr.f32.mxu0 0.0
      %2361 = vmatmul.mubr.f32.gmra.mrb[0].mxu0 %v2185
      %v2362 = vpop.f32.mrb[0].mxu0
      %v2363 = vadd.f32 0.0, %v2362
      %v2364 = vpop.f32.mrb[0].mxu0
      %2365 = vmatprep.mubr.f32.mxu0 0.0
      %2366 = vmatmul.mubr.f32.gmra.mrb[0].mxu0 %v2187
      %v2367 = vpop.f32.mrb[0].mxu0
      %v2368 = vadd.f32 0.0, %v2367
      %v2369 = vpop.f32.mrb[0].mxu0
      %2370 = vmatprep.mubr.f32.mxu0 0.0
      %2371 = vmatmul.mubr.f32.gmra.mrb[0].mxu0 %v2189
      %v2372 = vpop.f32.mrb[0].mxu0
      %v2373 = vadd.f32 0.0, %v2372
      %v2374 = vpop.f32.mrb[0].mxu0
      %2375 = vmatprep.mubr.f32.mxu0 0.0
      %2376 = vmatmul.mubr.f32.gmra.mrb[0].mxu0 %v2191
      %v2377 = vpop.f32.mrb[0].mxu0
      %v2378 = vadd.f32 0.0, %v2377
      %v2379 = vpop.f32.mrb[0].mxu0
      %2380 = vmatprep.mubr.f32.mxu0 0.0
      %2381 = vmatmul.mubr.f32.gmra.mrb[0].mxu0 %v2193
      %v2382 = vpop.f32.mrb[0].mxu0
      %v2383 = vadd.f32 0.0, %v2382
      %v2384 = vpop.f32.mrb[0].mxu0
      %2385 = vmatprep.mubr.f32.mxu0 0.0
      %2386 = vmatmul.mubr.f32.gmra.mrb[0].mxu0 %v2195
      %v2387 = vpop.f32.mrb[0].mxu0
      %v2388 = vadd.f32 0.0, %v2387
      %v2389 = vpop.f32.mrb[0].mxu0
      %2390 = vdwg.mxu0
      %2391 = vst.msk [vmem:[%s168] sm:$0xff] %vm1032, %v2268
      %2392 = vst.msk [vmem:[%s168 + $0x8] sm:$0xff] %vm1032, %v2273
      %2393 = vst.msk [vmem:[%s168 + $0x10] sm:$0xff] %vm1032, %v2278
      %2394 = vst.msk [vmem:[%s168 + $0x18] sm:$0xff] %vm1032, %v2283
      %2395 = vst.msk [vmem:[%s168 + $0x20] sm:$0xff] %vm1032, %v2288
      %2396 = vst.msk [vmem:[%s168 + $0x28] sm:$0xff] %vm1032, %v2293
      %2397 = vst.msk [vmem:[%s168 + $0x30] sm:$0xff] %vm1032, %v2298
      %2398 = vst.msk [vmem:[%s168 + $0x38] sm:$0xff] %vm1032, %v2303
      %2399 = vst.msk [vmem:[%s168 + $0x40] sm:$0xff] %vm1032, %v2308
      %2400 = vst.msk [vmem:[%s168 + $0x48] sm:$0xff] %vm1032, %v2313
      %2401 = vst.msk [vmem:[%s168 + $0x50] sm:$0xff] %vm1032, %v2318
      %2402 = vst.msk [vmem:[%s168 + $0x58] sm:$0xff] %vm1032, %v2323
      %2403 = vst.msk [vmem:[%s168 + $0x60] sm:$0xff] %vm1032, %v2328
      %2404 = vst.msk [vmem:[%s168 + $0x68] sm:$0xff] %vm1032, %v2333
      %2405 = vst.msk [vmem:[%s168 + $0x70] sm:$0xff] %vm1032, %v2338
      %2406 = vst.msk [vmem:[%s168 + $0x78] sm:$0xff] %vm1032, %v2343
      %2407 = vst.msk [vmem:[%s168 + $0x80] sm:$0xff] %vm1032, %v2348
      %2408 = vst.msk [vmem:[%s168 + $0x88] sm:$0xff] %vm1032, %v2353
      %2409 = vst.msk [vmem:[%s168 + $0x90] sm:$0xff] %vm1032, %v2358
      %2410 = vst.msk [vmem:[%s168 + $0x98] sm:$0xff] %vm1032, %v2363
      %2411 = vst.msk [vmem:[%s168 + $0xa0] sm:$0xff] %vm1032, %v2368
      %2412 = vst.msk [vmem:[%s168 + $0xa8] sm:$0xff] %vm1032, %v2373
      %2413 = vst.msk [vmem:[%s168 + $0xb0] sm:$0xff] %vm1032, %v2378
      %2414 = vst.msk [vmem:[%s168 + $0xb8] sm:$0xff] %vm1032, %v2383
      %vm2415 = vcmask 60416
      %2416 = vst.msk [vmem:[%s168 + $0xc0] sm:$0xf] %vm2415, %v2388
      %p2417 = scmp.eq.s32.totalorder %s15, 0
      // Predicated region
      $region29: #{block_forward.3} parent=27 // pred_check
        %p2418 = pneg %p2417
      $region30: #{block_forward.3} parent=27 // pred_check_branch
        %2420 = sbr.rel (%p2418) target = $region32
      $region31: #{block_forward.3} parent=27 // pred_region
        %vm2421 = vcmask 58368
        %2422 = vst.msk [vmem:[%s3] sm:$0x3] %vm2421, 0.0
      $region32: #{block_forward.3} parent=27 // pred_fallthru
        _
      %v2423 = vsel %vm1032, %v2268, 0.0
      %v2424 = vsel %vm1032, %v2273, 0.0
      %v2425 = vadd.f32 %v2423, %v2424
      %v2426 = vsel %vm1032, %v2278, 0.0
      %v2427 = vadd.f32 %v2425, %v2426
      %v2428 = vsel %vm1032, %v2283, 0.0
      %v2429 = vadd.f32 %v2427, %v2428
      %v2430 = vsel %vm1032, %v2288, 0.0
      %v2431 = vadd.f32 %v2429, %v2430
      %v2432 = vsel %vm1032, %v2293, 0.0
      %v2433 = vadd.f32 %v2431, %v2432
      %v2434 = vsel %vm1032, %v2298, 0.0
      %v2435 = vadd.f32 %v2433, %v2434
      %v2436 = vsel %vm1032, %v2303, 0.0
      %v2437 = vadd.f32 %v2435, %v2436
      %v2438 = vsel %vm1032, %v2308, 0.0
      %v2439 = vadd.f32 %v2437, %v2438
      %v2440 = vsel %vm1032, %v2313, 0.0
      %v2441 = vadd.f32 %v2439, %v2440
      %v2442 = vsel %vm1032, %v2318, 0.0
      %v2443 = vadd.f32 %v2441, %v2442
      %v2444 = vsel %vm1032, %v2323, 0.0
      %v2445 = vadd.f32 %v2443, %v2444
      %v2446 = vsel %vm1032, %v2328, 0.0
      %v2447 = vadd.f32 %v2445, %v2446
      %v2448 = vsel %vm1032, %v2333, 0.0
      %v2449 = vadd.f32 %v2447, %v2448
      %v2450 = vsel %vm1032, %v2338, 0.0
      %v2451 = vadd.f32 %v2449, %v2450
      %v2452 = vsel %vm1032, %v2343, 0.0
      %v2453 = vadd.f32 %v2451, %v2452
      %v2454 = vsel %vm1032, %v2348, 0.0
      %v2455 = vadd.f32 %v2453, %v2454
      %v2456 = vsel %vm1032, %v2353, 0.0
      %v2457 = vadd.f32 %v2455, %v2456
      %v2458 = vsel %vm1032, %v2358, 0.0
      %v2459 = vadd.f32 %v2457, %v2458
      %v2460 = vsel %vm1032, %v2363, 0.0
      %v2461 = vadd.f32 %v2459, %v2460
      %v2462 = vsel %vm1032, %v2368, 0.0
      %v2463 = vadd.f32 %v2461, %v2462
      %v2464 = vsel %vm1032, %v2373, 0.0
      %v2465 = vadd.f32 %v2463, %v2464
      %v2466 = vsel %vm1032, %v2378, 0.0
      %v2467 = vadd.f32 %v2465, %v2466
      %v2468 = vsel %vm1032, %v2383, 0.0
      %v2469 = vadd.f32 %v2467, %v2468
      %v2470 = vsel %vm2415, %v2388, 0.0
      %v2471 = vadd.f32 %v2469, %v2470
      %v2472 = vrot.slane %v2471, 4
      %v2473 = vadd.f32 %v2471, %v2472
      %v2474 = vrot.slane %v2473, 2
      %v2475 = vadd.f32 %v2473, %v2474
      %v2476 = vrot.slane %v2475, 1
      %v2477 = vadd.f32 %v2475, %v2476
      %v2478 = vmul.f32 %v2268, %v2268
      %v2479 = vmul.f32 %v2273, %v2273
      %v2480 = vmul.f32 %v2278, %v2278
      %v2481 = vmul.f32 %v2283, %v2283
      %v2482 = vmul.f32 %v2288, %v2288
      %v2483 = vmul.f32 %v2293, %v2293
      %v2484 = vmul.f32 %v2298, %v2298
      %v2485 = vmul.f32 %v2303, %v2303
      %v2486 = vmul.f32 %v2308, %v2308
      %v2487 = vmul.f32 %v2313, %v2313
      %v2488 = vmul.f32 %v2318, %v2318
      %v2489 = vmul.f32 %v2323, %v2323
      %v2490 = vmul.f32 %v2328, %v2328
      %v2491 = vmul.f32 %v2333, %v2333
      %v2492 = vmul.f32 %v2338, %v2338
      %v2493 = vmul.f32 %v2343, %v2343
      %v2494 = vmul.f32 %v2348, %v2348
      %v2495 = vmul.f32 %v2353, %v2353
      %v2496 = vmul.f32 %v2358, %v2358
      %v2497 = vmul.f32 %v2363, %v2363
      %v2498 = vmul.f32 %v2368, %v2368
      %v2499 = vmul.f32 %v2373, %v2373
      %v2500 = vmul.f32 %v2378, %v2378
      %v2501 = vmul.f32 %v2383, %v2383
      %v2502 = vmul.f32 %v2388, %v2388
      %v2503 = vsel %vm1032, %v2478, 0.0
      %v2504 = vsel %vm1032, %v2479, 0.0
      %v2505 = vadd.f32 %v2503, %v2504
      %v2506 = vsel %vm1032, %v2480, 0.0
      %v2507 = vadd.f32 %v2505, %v2506
      %v2508 = vsel %vm1032, %v2481, 0.0
      %v2509 = vadd.f32 %v2507, %v2508
      %v2510 = vsel %vm1032, %v2482, 0.0
      %v2511 = vadd.f32 %v2509, %v2510
      %v2512 = vsel %vm1032, %v2483, 0.0
      %v2513 = vadd.f32 %v2511, %v2512
      %v2514 = vsel %vm1032, %v2484, 0.0
      %v2515 = vadd.f32 %v2513, %v2514
      %v2516 = vsel %vm1032, %v2485, 0.0
      %v2517 = vadd.f32 %v2515, %v2516
      %v2518 = vsel %vm1032, %v2486, 0.0
      %v2519 = vadd.f32 %v2517, %v2518
      %v2520 = vsel %vm1032, %v2487, 0.0
      %v2521 = vadd.f32 %v2519, %v2520
      %v2522 = vsel %vm1032, %v2488, 0.0
      %v2523 = vadd.f32 %v2521, %v2522
      %v2524 = vsel %vm1032, %v2489, 0.0
      %v2525 = vadd.f32 %v2523, %v2524
      %v2526 = vsel %vm1032, %v2490, 0.0
      %v2527 = vadd.f32 %v2525, %v2526
      %v2528 = vsel %vm1032, %v2491, 0.0
      %v2529 = vadd.f32 %v2527, %v2528
      %v2530 = vsel %vm1032, %v2492, 0.0
      %v2531 = vadd.f32 %v2529, %v2530
      %v2532 = vsel %vm1032, %v2493, 0.0
      %v2533 = vadd.f32 %v2531, %v2532
      %v2534 = vsel %vm1032, %v2494, 0.0
      %v2535 = vadd.f32 %v2533, %v2534
      %v2536 = vsel %vm1032, %v2495, 0.0
      %v2537 = vadd.f32 %v2535, %v2536
      %v2538 = vsel %vm1032, %v2496, 0.0
      %v2539 = vadd.f32 %v2537, %v2538
      %v2540 = vsel %vm1032, %v2497, 0.0
      %v2541 = vadd.f32 %v2539, %v2540
      %v2542 = vsel %vm1032, %v2498, 0.0
      %v2543 = vadd.f32 %v2541, %v2542
      %v2544 = vsel %vm1032, %v2499, 0.0
      %v2545 = vadd.f32 %v2543, %v2544
      %v2546 = vsel %vm1032, %v2500, 0.0
      %v2547 = vadd.f32 %v2545, %v2546
      %v2548 = vsel %vm1032, %v2501, 0.0
      %v2549 = vadd.f32 %v2547, %v2548
      %v2550 = vsel %vm2415, %v2502, 0.0
      %v2551 = vadd.f32 %v2549, %v2550
      %v2552 = vrot.slane %v2551, 4
      %v2553 = vadd.f32 %v2551, %v2552
      %v2554 = vrot.slane %v2553, 2
      %v2555 = vadd.f32 %v2553, %v2554
      %v2556 = vrot.slane %v2555, 1
      %v2557 = vadd.f32 %v2555, %v2556
      %v2558 = vld [vmem:[%s3] sm:$0x3]
      %vm2559 = vcmask 1040384
      %v2560 = vsel %vm2559, %v2477, %v2557
      %v2561 = vadd.f32 %v2558, %v2560
      %vm2562 = vcmask 58368
      %2563 = vst.msk [vmem:[%s3] sm:$0x3] %vm2562, %v2561
      %p2564 = scmp.lt.s32.totalorder %s15, 1
      %s2565 = scalar_select %p2564, %s15, 1
      %s2566 = smul.addr %s2565, 25
      %s2567 = smul.addr %s2566, 8
      %s2568 = scalar_lea.vmem %s2, %s2567
      // Predicated region
      $region33: #{block_forward.3} parent=27 // pred_check
        %p2569 = pneg %p80
      $region34: #{block_forward.3} parent=27 // pred_check_branch
        %2571 = sbr.rel (%p2569) target = $region36
      $region35: #{block_forward.3} parent=27 // pred_region
        _
      $region36: #{block_forward.3} parent=27 // pred_fallthru
        _
      // Predicated region
      $region37: #{block_forward.3} parent=27 // pred_check
        %p2572 = pneg %p101
      $region38: #{block_forward.3} parent=27 // pred_check_branch
        %2574 = sbr.rel (%p2572) target = $region40
      $region39: #{block_forward.3} parent=27 // pred_region
        _
      $region40: #{block_forward.3} parent=27 // pred_fallthru
        _
      // Predicated region
      $region41: #{block_forward.3} parent=27 // pred_check
        %p2575 = pneg %p101
      $region42: #{block_forward.3} parent=27 // pred_check_branch
        %2577 = sbr.rel (%p2575) target = $region44
      $region43: #{block_forward.3} parent=27 // pred_region
        _
      $region44: #{block_forward.3} parent=27 // pred_fallthru
        _
    $region28: #{block_forward.3} parent=5 // pred_fallthru
      _
    %p2578 = scmp.le.s32.totalorder 2, %s10
    // Predicated region
    $region45: #{block_forward.3} parent=5 // pred_check
      %p2579 = pneg %p2578
    $region46: #{block_forward.3} parent=5 // pred_check_branch
      %2581 = sbr.rel (%p2579) target = $region48
    $region47: #{block_forward.3} parent=5 // pred_region
      %s2582 = ssub.s32 %s10, 2
      // Predicated region
      $region49: #{block_forward.3} parent=47 // pred_check
        %p2583 = pneg %p86
      $region50: #{block_forward.3} parent=47 // pred_check_branch
        %2585 = sbr.rel (%p2583) target = $region52
      $region51: #{block_forward.3} parent=47 // pred_region
        %p2586 = scmp.lt.s32.totalorder %s16, 1
        %s2587 = scalar_select %p2586, %s16, 1
        %s2588 = smul.addr %s2587, 25
        %s2589 = smul.addr %s2588, 8
        %s2590 = scalar_lea.vmem %s2, %s2589
      $region52: #{block_forward.3} parent=47 // pred_fallthru
        _
    $region48: #{block_forward.3} parent=5 // pred_fallthru
      _
  $region6: #{block_forward.3} parent=0 // loop_footer
    %s14 = sadd.s32 1, %s10
  $region7: #{block_forward.3} parent=0 // loop_footer_branch
    %9 = sbr.rel target = $region3
  $region8: #{block_forward.3} parent=0 // loop_exit
    _

// kernel: block_forward.4
$region0: #{block_forward.4}
  #allocation0 [shape = 'u32[]', space=smem, size = 0x4, offset = 0x4, fixed_abs, tag = 'smem constant byte address 0x4 - core index']
  #allocation1 [shape = 'u32[144,128]{1,0:T(1,128)}', space=vmem, size = 0x12000, scoped, tag = 'internal scratch']
  %s0 = inlined_call_operand.vmem [shape: f32[2,196,8], index: 0, kind: input, shape index: {}]
  %s1 = inlined_call_operand.vmem [shape: f32[1,8], index: 1, kind: input, shape index: {}]
  %s2 = inlined_call_operand.vmem [shape: f32[1,8], index: 2, kind: input, shape index: {}]
  %s3 = inlined_call_operand.vmem [shape: f32[72,8], index: 3, kind: input, shape index: {}]
  %s4 = inlined_call_operand.vmem [shape: f32[2,144,8], index: 4, kind: output, shape index: {0}]
  %s5 = inlined_call_operand.vmem [shape: f32[2,8], index: 5, kind: output, shape index: {1}]
  %6 = xla_tuple %s4, %s5
  %s7 = sld [smem:[#allocation0]]
  $region61: #{block_forward.4} parent=0
    _
  %s9 = ssub.s32 1, %s7
  %s10 = scalar_select 0, %s9, %s7
  loop: start=0, step=1, limit=4
  $region2: #{block_forward.4} parent=0 // loop_pre_header
    _
  $region3: #{block_forward.4} parent=0 // loop_header
    %s12 = sphi 0, %s16
    %p13 = scmp.ge.s32.totalorder %s12, 4
    %s22 = sphi 0, %s24
    %s25 = sphi 0, %s22
    %s26 = sphi 0, %s25
    %s42 = sphi 0, %s26
    %s46 = sphi 0, %s46
    %s48 = sphi 0, %s46
    %s49 = sphi 0, %s48
    %s63 = sphi 0, %s49
    %s67 = sphi 0, %s67
    %s69 = sphi 0, %s67
    %s70 = sphi 0, %s69
    %s84 = sphi 0, %s70
    %s88 = sphi 0, %s88
    %s90 = sphi 0, %s88
    %s91 = sphi 0, %s90
    %s105 = sphi 0, %s91
    %s111 = sphi 0, %s113
    %s114 = sphi 0, %s111
    %s115 = sphi 0, %s114
    %s131 = sphi 0, %s115
    %s135 = sphi 0, %s135
    %s137 = sphi 0, %s135
    %s138 = sphi 0, %s137
    %s152 = sphi 0, %s138
  $region4: #{block_forward.4} parent=0 // loop_header_branch
    %15 = sbr.rel (%p13) target = $region8
  $region5: #{block_forward.4} parent=0 // loop_body
    %s17 = ssub.s32 %s12, 1
    %s18 = ssub.s32 %s12, 2
    %s19 = sadd.s32 %s12, 1
    %s20 = ssub.s32 %s12, %s19
    %p21 = scmp.eq.s32.totalorder %s20, 0
    %s23 = sadd.s32 %s22, 1
    %s24 = scalar_select %p21, %s22, %s23
    %p27 = pneg %p21
    %p28 = scmp.eq.s32.totalorder %s12, 1
    %p29 = por %p27, %p28
    %p30 = scmp.ne.s32.totalorder %s22, %s25
    %p31 = scmp.eq.s32.totalorder %s12, 0
    %p32 = por %p30, %p31
    %p33 = scmp.ne.s32.totalorder %s22, %s25
    %p34 = scmp.eq.s32.totalorder %s17, 1
    %p35 = por %p33, %p34
    %p36 = scmp.ne.s32.totalorder %s25, %s26
    %p37 = scmp.eq.s32.totalorder %s17, 0
    %p38 = por %p36, %p37
    %p39 = scmp.ne.s32.totalorder %s25, %s26
    %p40 = scmp.eq.s32.totalorder %s18, 1
    %p41 = por %p39, %p40
    %p43 = scmp.ne.s32.totalorder %s26, %s42
    %p44 = scmp.eq.s32.totalorder %s18, 0
    %p45 = por %p43, %p44
    %s47 = sadd.s32 %s46, 1
    %p50 = scmp.eq.s32.totalorder %s12, 1
    %p51 = scmp.ne.s32.totalorder %s46, %s48
    %p52 = scmp.eq.s32.totalorder %s12, 0
    %p53 = por %p51, %p52
    %p54 = scmp.ne.s32.totalorder %s46, %s48
    %p55 = scmp.eq.s32.totalorder %s17, 1
    %p56 = por %p54, %p55
    %p57 = scmp.ne.s32.totalorder %s48, %s49
    %p58 = scmp.eq.s32.totalorder %s17, 0
    %p59 = por %p57, %p58
    %p60 = scmp.ne.s32.totalorder %s48, %s49
    %p61 = scmp.eq.s32.totalorder %s18, 1
    %p62 = por %p60, %p61
    %p64 = scmp.ne.s32.totalorder %s49, %s63
    %p65 = scmp.eq.s32.totalorder %s18, 0
    %p66 = por %p64, %p65
    %s68 = sadd.s32 %s67, 1
    %p71 = scmp.eq.s32.totalorder %s12, 1
    %p72 = scmp.ne.s32.totalorder %s67, %s69
    %p73 = scmp.eq.s32.totalorder %s12, 0
    %p74 = por %p72, %p73
    %p75 = scmp.ne.s32.totalorder %s67, %s69
    %p76 = scmp.eq.s32.totalorder %s17, 1
    %p77 = por %p75, %p76
    %p78 = scmp.ne.s32.totalorder %s69, %s70
    %p79 = scmp.eq.s32.totalorder %s17, 0
    %p80 = por %p78, %p79
    %p81 = scmp.ne.s32.totalorder %s69, %s70
    %p82 = scmp.eq.s32.totalorder %s18, 1
    %p83 = por %p81, %p82
    %p85 = scmp.ne.s32.totalorder %s70, %s84
    %p86 = scmp.eq.s32.totalorder %s18, 0
    %p87 = por %p85, %p86
    %s89 = sadd.s32 %s88, 1
    %p92 = scmp.eq.s32.totalorder %s12, 1
    %p93 = scmp.ne.s32.totalorder %s88, %s90
    %p94 = scmp.eq.s32.totalorder %s12, 0
    %p95 = por %p93, %p94
    %p96 = scmp.ne.s32.totalorder %s88, %s90
    %p97 = scmp.eq.s32.totalorder %s17, 1
    %p98 = por %p96, %p97
    %p99 = scmp.ne.s32.totalorder %s90, %s91
    %p100 = scmp.eq.s32.totalorder %s17, 0
    %p101 = por %p99, %p100
    %p102 = scmp.ne.s32.totalorder %s90, %s91
    %p103 = scmp.eq.s32.totalorder %s18, 1
    %p104 = por %p102, %p103
    %p106 = scmp.ne.s32.totalorder %s91, %s105
    %p107 = scmp.eq.s32.totalorder %s18, 0
    %p108 = por %p106, %p107
    %s109 = ssub.s32 %s12, %s19
    %p110 = scmp.eq.s32.totalorder %s109, 0
    %s112 = sadd.s32 %s111, 1
    %s113 = scalar_select %p110, %s111, %s112
    %p116 = pneg %p110
    %p117 = scmp.eq.s32.totalorder %s12, 1
    %p118 = por %p116, %p117
    %p119 = scmp.ne.s32.totalorder %s111, %s114
    %p120 = scmp.eq.s32.totalorder %s12, 0
    %p121 = por %p119, %p120
    %p122 = scmp.ne.s32.totalorder %s111, %s114
    %p123 = scmp.eq.s32.totalorder %s17, 1
    %p124 = por %p122, %p123
    %p125 = scmp.ne.s32.totalorder %s114, %s115
    %p126 = scmp.eq.s32.totalorder %s17, 0
    %p127 = por %p125, %p126
    %p128 = scmp.ne.s32.totalorder %s114, %s115
    %p129 = scmp.eq.s32.totalorder %s18, 1
    %p130 = por %p128, %p129
    %p132 = scmp.ne.s32.totalorder %s115, %s131
    %p133 = scmp.eq.s32.totalorder %s18, 0
    %p134 = por %p132, %p133
    %s136 = sadd.s32 %s135, 1
    %p139 = scmp.eq.s32.totalorder %s12, 1
    %p140 = scmp.ne.s32.totalorder %s135, %s137
    %p141 = scmp.eq.s32.totalorder %s12, 0
    %p142 = por %p140, %p141
    %p143 = scmp.ne.s32.totalorder %s135, %s137
    %p144 = scmp.eq.s32.totalorder %s17, 1
    %p145 = por %p143, %p144
    %p146 = scmp.ne.s32.totalorder %s137, %s138
    %p147 = scmp.eq.s32.totalorder %s17, 0
    %p148 = por %p146, %p147
    %p149 = scmp.ne.s32.totalorder %s137, %s138
    %p150 = scmp.eq.s32.totalorder %s18, 1
    %p151 = por %p149, %p150
    %p153 = scmp.ne.s32.totalorder %s138, %s152
    %p154 = scmp.eq.s32.totalorder %s18, 0
    %p155 = por %p153, %p154
    %p156 = scmp.le.s32.totalorder 1, %s12
    %p157 = scmp.lt.s32.totalorder %s12, 3
    %p158 = pnand %p156, %p157
    %p159 = pneg %p158
    // Predicated region
    $region9: #{block_forward.4} parent=5 // pred_check
      _
    $region10: #{block_forward.4} parent=5 // pred_check_branch
      %161 = sbr.rel (%p158) target = $region12
    $region11: #{block_forward.4} parent=5 // pred_region
      %s162 = ssub.s32 %s12, 1
      // Predicated region
      $region13: #{block_forward.4} parent=11 // pred_check
        %p163 = pneg %p59
      $region14: #{block_forward.4} parent=11 // pred_check_branch
        %165 = sbr.rel (%p163) target = $region16
      $region15: #{block_forward.4} parent=11 // pred_region
        _
      $region16: #{block_forward.4} parent=11 // pred_fallthru
        _
      // Predicated region
      $region17: #{block_forward.4} parent=11 // pred_check
        %p166 = pneg %p80
      $region18: #{block_forward.4} parent=11 // pred_check_branch
        %168 = sbr.rel (%p166) target = $region20
      $region19: #{block_forward.4} parent=11 // pred_region
        _
      $region20: #{block_forward.4} parent=11 // pred_fallthru
        _
      // Predicated region
      $region21: #{block_forward.4} parent=11 // pred_check
        %p169 = pneg %p101
      $region22: #{block_forward.4} parent=11 // pred_check_branch
        %171 = sbr.rel (%p169) target = $region24
      $region23: #{block_forward.4} parent=11 // pred_region
        _
      $region24: #{block_forward.4} parent=11 // pred_fallthru
        _
    $region12: #{block_forward.4} parent=5 // pred_fallthru
      _
    %p172 = scmp.lt.s32.totalorder %s12, 2
    // Predicated region
    $region25: #{block_forward.4} parent=5 // pred_check
      %p173 = pneg %p172
    $region26: #{block_forward.4} parent=5 // pred_check_branch
      %175 = sbr.rel (%p173) target = $region28
    $region27: #{block_forward.4} parent=5 // pred_region
      // Predicated region
      $region29: #{block_forward.4} parent=27 // pred_check
        %p176 = pneg %p32
      $region30: #{block_forward.4} parent=27 // pred_check_branch
        %178 = sbr.rel (%p176) target = $region32
      $region31: #{block_forward.4} parent=27 // pred_region
        %p179 = scmp.lt.s32.totalorder %s12, 1
        %s180 = scalar_select %p179, %s12, 1
        %s181 = smul.addr %s180, 25
        %s182 = smul.addr %s181, 8
        %s183 = scalar_lea.vmem %s0, %s182
      $region32: #{block_forward.4} parent=27 // pred_fallthru
        _
    $region28: #{block_forward.4} parent=5 // pred_fallthru
      _
    %p184 = scmp.le.s32.totalorder 1, %s12
    %p185 = scmp.lt.s32.totalorder %s12, 3
    %p186 = pnand %p184, %p185
    %p187 = pneg %p186
    // Predicated region
    $region33: #{block_forward.4} parent=5 // pred_check
      _
    $region34: #{block_forward.4} parent=5 // pred_check_branch
      %189 = sbr.rel (%p186) target = $region36
    $region35: #{block_forward.4} parent=5 // pred_region
      %s190 = ssub.s32 %s12, 1
      %p191 = scmp.lt.s32.totalorder %s17, 1
      %s192 = scalar_select %p191, %s17, 1
      %s193 = smul.addr %s192, 25
      %s194 = smul.addr %s193, 8
      %s195 = scalar_lea.vmem %s0, %s194
      %p196 = pneg %p38
      %p197 = pneg %p35
      %p198 = pneg %p59
      %p199 = pneg %p56
      %p200 = pneg %p80
      %p201 = pneg %p77
      %p202 = pneg %p101
      %p203 = pneg %p98
      %p204 = pneg %p127
      %p205 = pneg %p124
      %p206 = scmp.lt.s32.totalorder %s17, 1
      %s207 = scalar_select %p206, %s17, 1
      %s208 = smul.addr %s207, 18
      %s209 = smul.addr %s208, 8
      %s210 = scalar_lea.vmem %s4, %s209
      %p211 = pneg %p148
      %p212 = pneg %p145
      %p213 = scmp.lt.s32.totalorder %s17, 1
      %s214 = scalar_select %p213, %s17, 1
      %s215 = smul.addr %s214, 25
      %s216 = smul.addr %s215, 8
      %s217 = scalar_lea.vmem %s0, %s216
      %p218 = scmp.lt.s32.totalorder %s17, 1
      %s219 = scalar_select %p218, %s17, 1
      %s220 = smul.addr %s219, 18
      %s221 = smul.addr %s220, 8
      %s222 = scalar_lea.vmem %s4, %s221
      %v223 = vld [vmem:[%s217] sm:$0xff]
      %v224 = vld [vmem:[%s217 + $0x8] sm:$0xff]
      %v225 = vld [vmem:[%s217 + $0x10] sm:$0xff]
      %v226 = vld [vmem:[%s217 + $0x18] sm:$0xff]
      %v227 = vld [vmem:[%s217 + $0x20] sm:$0xff]
      %v228 = vld [vmem:[%s217 + $0x28] sm:$0xff]
      %v229 = vld [vmem:[%s217 + $0x30] sm:$0xff]
      %v230 = vld [vmem:[%s217 + $0x38] sm:$0xff]
      %v231 = vld [vmem:[%s217 + $0x40] sm:$0xff]
      %v232 = vld [vmem:[%s217 + $0x48] sm:$0xff]
      %v233 = vld [vmem:[%s217 + $0x50] sm:$0xff]
      %v234 = vld [vmem:[%s217 + $0x58] sm:$0xff]
      %v235 = vld [vmem:[%s217 + $0x60] sm:$0xff]
      %v236 = vld [vmem:[%s217 + $0x68] sm:$0xff]
      %v237 = vld [vmem:[%s217 + $0x70] sm:$0xff]
      %v238 = vld [vmem:[%s217 + $0x78] sm:$0xff]
      %v239 = vld [vmem:[%s217 + $0x80] sm:$0xff]
      %v240 = vld [vmem:[%s217 + $0x88] sm:$0xff]
      %v241 = vld [vmem:[%s217 + $0x90] sm:$0xff]
      %v242 = vld [vmem:[%s217 + $0x98] sm:$0xff]
      %v243 = vld [vmem:[%s217 + $0xa0] sm:$0xff]
      %v244 = vld [vmem:[%s217 + $0xa8] sm:$0xff]
      %v245 = vld [vmem:[%s217 + $0xb0] sm:$0xff]
      %v246 = vld [vmem:[%s217 + $0xb8] sm:$0xff]
      %v247 = vld [vmem:[%s217 + $0xc0] sm:$0xf]
      %v248 = vld [vmem:[%s1] sm:$0x1]
      %v250 = vlaneseq
      %v251 = vshrl.u32 %v250, 7
      %v252 = vsub.s32 0, %v251
      %v253 = vrot.slane %v248, %v252
      %v255 = vmul.f32 %v223, %v253
      %v256 = vmul.f32 %v224, %v253
      %v257 = vmul.f32 %v225, %v253
      %v258 = vmul.f32 %v226, %v253
      %v259 = vmul.f32 %v227, %v253
      %v260 = vmul.f32 %v228, %v253
      %v261 = vmul.f32 %v229, %v253
      %v262 = vmul.f32 %v230, %v253
      %v263 = vmul.f32 %v231, %v253
      %v264 = vmul.f32 %v232, %v253
      %v265 = vmul.f32 %v233, %v253
      %v266 = vmul.f32 %v234, %v253
      %v267 = vmul.f32 %v235, %v253
      %v268 = vmul.f32 %v236, %v253
      %v269 = vmul.f32 %v237, %v253
      %v270 = vmul.f32 %v238, %v253
      %v271 = vmul.f32 %v239, %v253
      %v272 = vmul.f32 %v240, %v253
      %v273 = vmul.f32 %v241, %v253
      %v274 = vmul.f32 %v242, %v253
      %v275 = vmul.f32 %v243, %v253
      %v276 = vmul.f32 %v244, %v253
      %v277 = vmul.f32 %v245, %v253
      %v278 = vmul.f32 %v246, %v253
      %v279 = vmul.f32 %v247, %v253
      %v280 = vld [vmem:[%s2] sm:$0x1]
      %v282 = vlaneseq
      %v283 = vshrl.u32 %v282, 7
      %v284 = vsub.s32 0, %v283
      %v285 = vrot.slane %v280, %v284
      %v287 = vadd.f32 %v255, %v285
      %v288 = vadd.f32 %v256, %v285
      %v289 = vadd.f32 %v257, %v285
      %v290 = vadd.f32 %v258, %v285
      %v291 = vadd.f32 %v259, %v285
      %v292 = vadd.f32 %v260, %v285
      %v293 = vadd.f32 %v261, %v285
      %v294 = vadd.f32 %v262, %v285
      %v295 = vadd.f32 %v263, %v285
      %v296 = vadd.f32 %v264, %v285
      %v297 = vadd.f32 %v265, %v285
      %v298 = vadd.f32 %v266, %v285
      %v299 = vadd.f32 %v267, %v285
      %v300 = vadd.f32 %v268, %v285
      %v301 = vadd.f32 %v269, %v285
      %v302 = vadd.f32 %v270, %v285
      %v303 = vadd.f32 %v271, %v285
      %v304 = vadd.f32 %v272, %v285
      %v305 = vadd.f32 %v273, %v285
      %v306 = vadd.f32 %v274, %v285
      %v307 = vadd.f32 %v275, %v285
      %v308 = vadd.f32 %v276, %v285
      %v309 = vadd.f32 %v277, %v285
      %v310 = vadd.f32 %v278, %v285
      %v311 = vadd.f32 %v279, %v285
      %v312 = vmax.f32 %v287, 0.0
      %v313 = vmax.f32 %v288, 0.0
      %v314 = vmax.f32 %v289, 0.0
      %v315 = vmax.f32 %v290, 0.0
      %v316 = vmax.f32 %v291, 0.0
      %v317 = vmax.f32 %v292, 0.0
      %v318 = vmax.f32 %v293, 0.0
      %v319 = vmax.f32 %v294, 0.0
      %v320 = vmax.f32 %v295, 0.0
      %v321 = vmax.f32 %v296, 0.0
      %v322 = vmax.f32 %v297, 0.0
      %v323 = vmax.f32 %v298, 0.0
      %v324 = vmax.f32 %v299, 0.0
      %v325 = vmax.f32 %v300, 0.0
      %v326 = vmax.f32 %v301, 0.0
      %v327 = vmax.f32 %v302, 0.0
      %v328 = vmax.f32 %v303, 0.0
      %v329 = vmax.f32 %v304, 0.0
      %v330 = vmax.f32 %v305, 0.0
      %v331 = vmax.f32 %v306, 0.0
      %v332 = vmax.f32 %v307, 0.0
      %v333 = vmax.f32 %v308, 0.0
      %v334 = vmax.f32 %v309, 0.0
      %v335 = vmax.f32 %v310, 0.0
      %v336 = vmax.f32 %v311, 0.0
      %v362 = vcombine.high %v312, %v312
      %v364 = vunpack.c.l.s4 1983009808
      %v365 = vunpack.c.0.s8 %v364
      %v366 = vlaneseq
      %v367 = vshrl.u32 %v366, 7
      %v368 = vsub.s32 %v365, %v367
      %v369 = vrot.slane %v312, %v368
      %v371 = vunpack.c.l.s4 1983009808
      %v372 = vunpack.c.0.s8 %v371
      %v373 = vlaneseq
      %v374 = vshrl.u32 %v373, 7
      %v375 = vsub.s32 %v372, %v374
      %v376 = vrot.slane %v362, %v375
      %v377 = vcombine.high %v369, %v369
      %v378 = vcombine.high %v376, %v376
      %v379 = vcombine.high %v313, %v313
      %v381 = vunpack.c.l.s4 1983009808
      %v382 = vunpack.c.0.s8 %v381
      %v383 = vlaneseq
      %v384 = vshrl.u32 %v383, 7
      %v385 = vsub.s32 %v382, %v384
      %v386 = vrot.slane %v313, %v385
      %v388 = vunpack.c.l.s4 1983009808
      %v389 = vunpack.c.0.s8 %v388
      %v390 = vlaneseq
      %v391 = vshrl.u32 %v390, 7
      %v392 = vsub.s32 %v389, %v391
      %v393 = vrot.slane %v379, %v392
      %v394 = vcombine.high %v386, %v386
      %v395 = vcombine.high %v393, %v393
      %v396 = vcombine.high %v314, %v314
      %v398 = vunpack.c.l.s4 1983009808
      %v399 = vunpack.c.0.s8 %v398
      %v400 = vlaneseq
      %v401 = vshrl.u32 %v400, 7
      %v402 = vsub.s32 %v399, %v401
      %v403 = vrot.slane %v314, %v402
      %v405 = vunpack.c.l.s4 1983009808
      %v406 = vunpack.c.0.s8 %v405
      %v407 = vlaneseq
      %v408 = vshrl.u32 %v407, 7
      %v409 = vsub.s32 %v406, %v408
      %v410 = vrot.slane %v396, %v409
      %v411 = vcombine.high %v403, %v403
      %v412 = vcombine.high %v410, %v410
      %v413 = vcombine.high %v315, %v315
      %v415 = vunpack.c.l.s4 1983009808
      %v416 = vunpack.c.0.s8 %v415
      %v417 = vlaneseq
      %v418 = vshrl.u32 %v417, 7
      %v419 = vsub.s32 %v416, %v418
      %v420 = vrot.slane %v315, %v419
      %v422 = vunpack.c.l.s4 1983009808
      %v423 = vunpack.c.0.s8 %v422
      %v424 = vlaneseq
      %v425 = vshrl.u32 %v424, 7
      %v426 = vsub.s32 %v423, %v425
      %v427 = vrot.slane %v413, %v426
      %v428 = vcombine.high %v420, %v420
      %v429 = vcombine.high %v427, %v427
      %v430 = vcombine.high %v316, %v316
      %v432 = vunpack.c.l.s4 1983009808
      %v433 = vunpack.c.0.s8 %v432
      %v434 = vlaneseq
      %v435 = vshrl.u32 %v434, 7
      %v436 = vsub.s32 %v433, %v435
      %v437 = vrot.slane %v316, %v436
      %v439 = vunpack.c.l.s4 1983009808
      %v440 = vunpack.c.0.s8 %v439
      %v441 = vlaneseq
      %v442 = vshrl.u32 %v441, 7
      %v443 = vsub.s32 %v440, %v442
      %v444 = vrot.slane %v430, %v443
      %v445 = vcombine.high %v437, %v437
      %v446 = vcombine.high %v444, %v444
      %v447 = vcombine.high %v317, %v317
      %v449 = vunpack.c.l.s4 1983009808
      %v450 = vunpack.c.0.s8 %v449
      %v451 = vlaneseq
      %v452 = vshrl.u32 %v451, 7
      %v453 = vsub.s32 %v450, %v452
      %v454 = vrot.slane %v317, %v453
      %v456 = vunpack.c.l.s4 1983009808
      %v457 = vunpack.c.0.s8 %v456
      %v458 = vlaneseq
      %v459 = vshrl.u32 %v458, 7
      %v460 = vsub.s32 %v457, %v459
      %v461 = vrot.slane %v447, %v460
      %v462 = vcombine.high %v454, %v454
      %v463 = vcombine.high %v461, %v461
      %v464 = vcombine.high %v318, %v318
      %v466 = vunpack.c.l.s4 1983009808
      %v467 = vunpack.c.0.s8 %v466
      %v468 = vlaneseq
      %v469 = vshrl.u32 %v468, 7
      %v470 = vsub.s32 %v467, %v469
      %v471 = vrot.slane %v318, %v470
      %v473 = vunpack.c.l.s4 1983009808
      %v474 = vunpack.c.0.s8 %v473
      %v475 = vlaneseq
      %v476 = vshrl.u32 %v475, 7
      %v477 = vsub.s32 %v474, %v476
      %v478 = vrot.slane %v464, %v477
      %v479 = vcombine.high %v471, %v471
      %v480 = vcombine.high %v478, %v478
      %v481 = vcombine.high %v319, %v319
      %v483 = vunpack.c.l.s4 1983009808
      %v484 = vunpack.c.0.s8 %v483
      %v485 = vlaneseq
      %v486 = vshrl.u32 %v485, 7
      %v487 = vsub.s32 %v484, %v486
      %v488 = vrot.slane %v319, %v487
      %v490 = vunpack.c.l.s4 1983009808
      %v491 = vunpack.c.0.s8 %v490
      %v492 = vlaneseq
      %v493 = vshrl.u32 %v492, 7
      %v494 = vsub.s32 %v491, %v493
      %v495 = vrot.slane %v481, %v494
      %v496 = vcombine.high %v488, %v488
      %v497 = vcombine.high %v495, %v495
      %v498 = vcombine.high %v320, %v320
      %v500 = vunpack.c.l.s4 1983009808
      %v501 = vunpack.c.0.s8 %v500
      %v502 = vlaneseq
      %v503 = vshrl.u32 %v502, 7
      %v504 = vsub.s32 %v501, %v503
      %v505 = vrot.slane %v320, %v504
      %v507 = vunpack.c.l.s4 1983009808
      %v508 = vunpack.c.0.s8 %v507
      %v509 = vlaneseq
      %v510 = vshrl.u32 %v509, 7
      %v511 = vsub.s32 %v508, %v510
      %v512 = vrot.slane %v498, %v511
      %v513 = vcombine.high %v505, %v505
      %v514 = vcombine.high %v512, %v512
      %v515 = vcombine.high %v321, %v321
      %v517 = vunpack.c.l.s4 1983009808
      %v518 = vunpack.c.0.s8 %v517
      %v519 = vlaneseq
      %v520 = vshrl.u32 %v519, 7
      %v521 = vsub.s32 %v518, %v520
      %v522 = vrot.slane %v321, %v521
      %v524 = vunpack.c.l.s4 1983009808
      %v525 = vunpack.c.0.s8 %v524
      %v526 = vlaneseq
      %v527 = vshrl.u32 %v526, 7
      %v528 = vsub.s32 %v525, %v527
      %v529 = vrot.slane %v515, %v528
      %v530 = vcombine.high %v522, %v522
      %v531 = vcombine.high %v529, %v529
      %v532 = vcombine.high %v322, %v322
      %v534 = vunpack.c.l.s4 1983009808
      %v535 = vunpack.c.0.s8 %v534
      %v536 = vlaneseq
      %v537 = vshrl.u32 %v536, 7
      %v538 = vsub.s32 %v535, %v537
      %v539 = vrot.slane %v322, %v538
      %v541 = vunpack.c.l.s4 1983009808
      %v542 = vunpack.c.0.s8 %v541
      %v543 = vlaneseq
      %v544 = vshrl.u32 %v543, 7
      %v545 = vsub.s32 %v542, %v544
      %v546 = vrot.slane %v532, %v545
      %v547 = vcombine.high %v539, %v539
      %v548 = vcombine.high %v546, %v546
      %v549 = vcombine.high %v323, %v323
      %v551 = vunpack.c.l.s4 1983009808
      %v552 = vunpack.c.0.s8 %v551
      %v553 = vlaneseq
      %v554 = vshrl.u32 %v553, 7
      %v555 = vsub.s32 %v552, %v554
      %v556 = vrot.slane %v323, %v555
      %v558 = vunpack.c.l.s4 1983009808
      %v559 = vunpack.c.0.s8 %v558
      %v560 = vlaneseq
      %v561 = vshrl.u32 %v560, 7
      %v562 = vsub.s32 %v559, %v561
      %v563 = vrot.slane %v549, %v562
      %v564 = vcombine.high %v556, %v556
      %v565 = vcombine.high %v563, %v563
      %v566 = vcombine.high %v324, %v324
      %v568 = vunpack.c.l.s4 1983009808
      %v569 = vunpack.c.0.s8 %v568
      %v570 = vlaneseq
      %v571 = vshrl.u32 %v570, 7
      %v572 = vsub.s32 %v569, %v571
      %v573 = vrot.slane %v324, %v572
      %v575 = vunpack.c.l.s4 1983009808
      %v576 = vunpack.c.0.s8 %v575
      %v577 = vlaneseq
      %v578 = vshrl.u32 %v577, 7
      %v579 = vsub.s32 %v576, %v578
      %v580 = vrot.slane %v566, %v579
      %v581 = vcombine.high %v573, %v573
      %v582 = vcombine.high %v580, %v580
      %v583 = vcombine.high %v325, %v325
      %v585 = vunpack.c.l.s4 1983009808
      %v586 = vunpack.c.0.s8 %v585
      %v587 = vlaneseq
      %v588 = vshrl.u32 %v587, 7
      %v589 = vsub.s32 %v586, %v588
      %v590 = vrot.slane %v325, %v589
      %v592 = vunpack.c.l.s4 1983009808
      %v593 = vunpack.c.0.s8 %v592
      %v594 = vlaneseq
      %v595 = vshrl.u32 %v594, 7
      %v596 = vsub.s32 %v593, %v595
      %v597 = vrot.slane %v583, %v596
      %v598 = vcombine.high %v590, %v590
      %v599 = vcombine.high %v597, %v597
      %v600 = vcombine.high %v326, %v326
      %v602 = vunpack.c.l.s4 1983009808
      %v603 = vunpack.c.0.s8 %v602
      %v604 = vlaneseq
      %v605 = vshrl.u32 %v604, 7
      %v606 = vsub.s32 %v603, %v605
      %v607 = vrot.slane %v326, %v606
      %v609 = vunpack.c.l.s4 1983009808
      %v610 = vunpack.c.0.s8 %v609
      %v611 = vlaneseq
      %v612 = vshrl.u32 %v611, 7
      %v613 = vsub.s32 %v610, %v612
      %v614 = vrot.slane %v600, %v613
      %v615 = vcombine.high %v607, %v607
      %v616 = vcombine.high %v614, %v614
      %v617 = vcombine.high %v327, %v327
      %v619 = vunpack.c.l.s4 1983009808
      %v620 = vunpack.c.0.s8 %v619
      %v621 = vlaneseq
      %v622 = vshrl.u32 %v621, 7
      %v623 = vsub.s32 %v620, %v622
      %v624 = vrot.slane %v327, %v623
      %v626 = vunpack.c.l.s4 1983009808
      %v627 = vunpack.c.0.s8 %v626
      %v628 = vlaneseq
      %v629 = vshrl.u32 %v628, 7
      %v630 = vsub.s32 %v627, %v629
      %v631 = vrot.slane %v617, %v630
      %v632 = vcombine.high %v624, %v624
      %v633 = vcombine.high %v631, %v631
      %v634 = vcombine.high %v328, %v328
      %v636 = vunpack.c.l.s4 1983009808
      %v637 = vunpack.c.0.s8 %v636
      %v638 = vlaneseq
      %v639 = vshrl.u32 %v638, 7
      %v640 = vsub.s32 %v637, %v639
      %v641 = vrot.slane %v328, %v640
      %v643 = vunpack.c.l.s4 1983009808
      %v644 = vunpack.c.0.s8 %v643
      %v645 = vlaneseq
      %v646 = vshrl.u32 %v645, 7
      %v647 = vsub.s32 %v644, %v646
      %v648 = vrot.slane %v634, %v647
      %v649 = vcombine.high %v641, %v641
      %v650 = vcombine.high %v648, %v648
      %v651 = vcombine.high %v329, %v329
      %v653 = vunpack.c.l.s4 1983009808
      %v654 = vunpack.c.0.s8 %v653
      %v655 = vlaneseq
      %v656 = vshrl.u32 %v655, 7
      %v657 = vsub.s32 %v654, %v656
      %v658 = vrot.slane %v329, %v657
      %v660 = vunpack.c.l.s4 1983009808
      %v661 = vunpack.c.0.s8 %v660
      %v662 = vlaneseq
      %v663 = vshrl.u32 %v662, 7
      %v664 = vsub.s32 %v661, %v663
      %v665 = vrot.slane %v651, %v664
      %v666 = vcombine.high %v658, %v658
      %v667 = vcombine.high %v665, %v665
      %v668 = vcombine.high %v330, %v330
      %v670 = vunpack.c.l.s4 1983009808
      %v671 = vunpack.c.0.s8 %v670
      %v672 = vlaneseq
      %v673 = vshrl.u32 %v672, 7
      %v674 = vsub.s32 %v671, %v673
      %v675 = vrot.slane %v330, %v674
      %v677 = vunpack.c.l.s4 1983009808
      %v678 = vunpack.c.0.s8 %v677
      %v679 = vlaneseq
      %v680 = vshrl.u32 %v679, 7
      %v681 = vsub.s32 %v678, %v680
      %v682 = vrot.slane %v668, %v681
      %v683 = vcombine.high %v675, %v675
      %v684 = vcombine.high %v682, %v682
      %v685 = vcombine.high %v331, %v331
      %v687 = vunpack.c.l.s4 1983009808
      %v688 = vunpack.c.0.s8 %v687
      %v689 = vlaneseq
      %v690 = vshrl.u32 %v689, 7
      %v691 = vsub.s32 %v688, %v690
      %v692 = vrot.slane %v331, %v691
      %v694 = vunpack.c.l.s4 1983009808
      %v695 = vunpack.c.0.s8 %v694
      %v696 = vlaneseq
      %v697 = vshrl.u32 %v696, 7
      %v698 = vsub.s32 %v695, %v697
      %v699 = vrot.slane %v685, %v698
      %v700 = vcombine.high %v692, %v692
      %v701 = vcombine.high %v699, %v699
      %v702 = vcombine.high %v332, %v332
      %v704 = vunpack.c.l.s4 1983009808
      %v705 = vunpack.c.0.s8 %v704
      %v706 = vlaneseq
      %v707 = vshrl.u32 %v706, 7
      %v708 = vsub.s32 %v705, %v707
      %v709 = vrot.slane %v332, %v708
      %v711 = vunpack.c.l.s4 1983009808
      %v712 = vunpack.c.0.s8 %v711
      %v713 = vlaneseq
      %v714 = vshrl.u32 %v713, 7
      %v715 = vsub.s32 %v712, %v714
      %v716 = vrot.slane %v702, %v715
      %v717 = vcombine.high %v709, %v709
      %v718 = vcombine.high %v716, %v716
      %v719 = vcombine.high %v333, %v333
      %v721 = vunpack.c.l.s4 1983009808
      %v722 = vunpack.c.0.s8 %v721
      %v723 = vlaneseq
      %v724 = vshrl.u32 %v723, 7
      %v725 = vsub.s32 %v722, %v724
      %v726 = vrot.slane %v333, %v725
      %v728 = vunpack.c.l.s4 1983009808
      %v729 = vunpack.c.0.s8 %v728
      %v730 = vlaneseq
      %v731 = vshrl.u32 %v730, 7
      %v732 = vsub.s32 %v729, %v731
      %v733 = vrot.slane %v719, %v732
      %v734 = vcombine.high %v726, %v726
      %v735 = vcombine.high %v733, %v733
      %v736 = vcombine.high %v334, %v334
      %v738 = vunpack.c.l.s4 1983009808
      %v739 = vunpack.c.0.s8 %v738
      %v740 = vlaneseq
      %v741 = vshrl.u32 %v740, 7
      %v742 = vsub.s32 %v739, %v741
      %v743 = vrot.slane %v334, %v742
      %v745 = vunpack.c.l.s4 1983009808
      %v746 = vunpack.c.0.s8 %v745
      %v747 = vlaneseq
      %v748 = vshrl.u32 %v747, 7
      %v749 = vsub.s32 %v746, %v748
      %v750 = vrot.slane %v736, %v749
      %v751 = vcombine.high %v743, %v743
      %v752 = vcombine.high %v750, %v750
      %v753 = vcombine.high %v335, %v335
      %v755 = vunpack.c.l.s4 1983009808
      %v756 = vunpack.c.0.s8 %v755
      %v757 = vlaneseq
      %v758 = vshrl.u32 %v757, 7
      %v759 = vsub.s32 %v756, %v758
      %v760 = vrot.slane %v335, %v759
      %v762 = vunpack.c.l.s4 1983009808
      %v763 = vunpack.c.0.s8 %v762
      %v764 = vlaneseq
      %v765 = vshrl.u32 %v764, 7
      %v766 = vsub.s32 %v763, %v765
      %v767 = vrot.slane %v753, %v766
      %v768 = vcombine.high %v760, %v760
      %v769 = vcombine.high %v767, %v767
      %v771 = vunpack.c.l.s4 1983009808
      %v772 = vunpack.c.0.s8 %v771
      %v773 = vlaneseq
      %v774 = vshrl.u32 %v773, 7
      %v775 = vsub.s32 %v772, %v774
      %v776 = vrot.slane %v336, %v775
      %v777 = vcombine.high %v776, %v776
      %v778 = vcombine.low %v369, %v377
      %v779 = vcombine.low %v376, %v378
      %v781 = vunpack.c.l.s4 1983009808
      %v782 = vunpack.c.0.s8 %v781
      %v783 = vlaneseq
      %v784 = vshrl.u32 %v783, 7
      %v785 = vsub.s32 %v782, %v784
      %v786 = vrot.slane %v778, %v785
      %v788 = vunpack.c.l.s4 1983009808
      %v789 = vunpack.c.0.s8 %v788
      %v790 = vlaneseq
      %v791 = vshrl.u32 %v790, 7
      %v792 = vsub.s32 %v789, %v791
      %v793 = vrot.slane %v779, %v792
      %v794 = vcombine.low %v786, %v793
      %v795 = vcombine.low %v386, %v394
      %v797 = vunpack.c.l.s4 1983009808
      %v798 = vunpack.c.0.s8 %v797
      %v799 = vlaneseq
      %v800 = vshrl.u32 %v799, 7
      %v801 = vsub.s32 %v798, %v800
      %v802 = vrot.slane %v795, %v801
      %v803 = vcombine.low %v395, %v403
      %v804 = vcombine.low %v411, %v410
      %v806 = vunpack.c.l.s4 1983009808
      %v807 = vunpack.c.0.s8 %v806
      %v808 = vlaneseq
      %v809 = vshrl.u32 %v808, 7
      %v810 = vsub.s32 %v807, %v809
      %v811 = vrot.slane %v803, %v810
      %v813 = vunpack.c.l.s4 1983009808
      %v814 = vunpack.c.0.s8 %v813
      %v815 = vlaneseq
      %v816 = vshrl.u32 %v815, 7
      %v817 = vsub.s32 %v814, %v816
      %v818 = vrot.slane %v804, %v817
      %v819 = vcombine.low %v811, %v818
      %v820 = vcombine.low %v412, %v420
      %v822 = vunpack.c.l.s4 1983009808
      %v823 = vunpack.c.0.s8 %v822
      %v824 = vlaneseq
      %v825 = vshrl.u32 %v824, 7
      %v826 = vsub.s32 %v823, %v825
      %v827 = vrot.slane %v820, %v826
      %v828 = vcombine.low %v427, %v429
      %v829 = vcombine.low %v437, %v445
      %v831 = vunpack.c.l.s4 1983009808
      %v832 = vunpack.c.0.s8 %v831
      %v833 = vlaneseq
      %v834 = vshrl.u32 %v833, 7
      %v835 = vsub.s32 %v832, %v834
      %v836 = vrot.slane %v828, %v835
      %v838 = vunpack.c.l.s4 1983009808
      %v839 = vunpack.c.0.s8 %v838
      %v840 = vlaneseq
      %v841 = vshrl.u32 %v840, 7
      %v842 = vsub.s32 %v839, %v841
      %v843 = vrot.slane %v829, %v842
      %v844 = vcombine.low %v836, %v843
      %v845 = vcombine.low %v444, %v446
      %v847 = vunpack.c.l.s4 1983009808
      %v848 = vunpack.c.0.s8 %v847
      %v849 = vlaneseq
      %v850 = vshrl.u32 %v849, 7
      %v851 = vsub.s32 %v848, %v850
      %v852 = vrot.slane %v845, %v851
      %v853 = vcombine.low %v462, %v461
      %v854 = vcombine.low %v463, %v471
      %v856 = vunpack.c.l.s4 1983009808
      %v857 = vunpack.c.0.s8 %v856
      %v858 = vlaneseq
      %v859 = vshrl.u32 %v858, 7
      %v860 = vsub.s32 %v857, %v859
      %v861 = vrot.slane %v853, %v860
      %v863 = vunpack.c.l.s4 1983009808
      %v864 = vunpack.c.0.s8 %v863
      %v865 = vlaneseq
      %v866 = vshrl.u32 %v865, 7
      %v867 = vsub.s32 %v864, %v866
      %v868 = vrot.slane %v854, %v867
      %v869 = vcombine.low %v861, %v868
      %v870 = vcombine.low %v479, %v478
      %v872 = vunpack.c.l.s4 1983009808
      %v873 = vunpack.c.0.s8 %v872
      %v874 = vlaneseq
      %v875 = vshrl.u32 %v874, 7
      %v876 = vsub.s32 %v873, %v875
      %v877 = vrot.slane %v870, %v876
      %v878 = vcombine.low %v488, %v496
      %v879 = vcombine.low %v495, %v497
      %v881 = vunpack.c.l.s4 1983009808
      %v882 = vunpack.c.0.s8 %v881
      %v883 = vlaneseq
      %v884 = vshrl.u32 %v883, 7
      %v885 = vsub.s32 %v882, %v884
      %v886 = vrot.slane %v878, %v885
      %v888 = vunpack.c.l.s4 1983009808
      %v889 = vunpack.c.0.s8 %v888
      %v890 = vlaneseq
      %v891 = vshrl.u32 %v890, 7
      %v892 = vsub.s32 %v889, %v891
      %v893 = vrot.slane %v879, %v892
      %v894 = vcombine.low %v886, %v893
      %v895 = vcombine.low %v505, %v513
      %v897 = vunpack.c.l.s4 1983009808
      %v898 = vunpack.c.0.s8 %v897
      %v899 = vlaneseq
      %v900 = vshrl.u32 %v899, 7
      %v901 = vsub.s32 %v898, %v900
      %v902 = vrot.slane %v895, %v901
      %v903 = vcombine.low %v514, %v522
      %v904 = vcombine.low %v530, %v529
      %v906 = vunpack.c.l.s4 1983009808
      %v907 = vunpack.c.0.s8 %v906
      %v908 = vlaneseq
      %v909 = vshrl.u32 %v908, 7
      %v910 = vsub.s32 %v907, %v909
      %v911 = vrot.slane %v903, %v910
      %v913 = vunpack.c.l.s4 1983009808
      %v914 = vunpack.c.0.s8 %v913
      %v915 = vlaneseq
      %v916 = vshrl.u32 %v915, 7
      %v917 = vsub.s32 %v914, %v916
      %v918 = vrot.slane %v904, %v917
      %v919 = vcombine.low %v911, %v918
      %v920 = vcombine.low %v531, %v539
      %v922 = vunpack.c.l.s4 1983009808
      %v923 = vunpack.c.0.s8 %v922
      %v924 = vlaneseq
      %v925 = vshrl.u32 %v924, 7
      %v926 = vsub.s32 %v923, %v925
      %v927 = vrot.slane %v920, %v926
      %v928 = vcombine.low %v546, %v548
      %v929 = vcombine.low %v556, %v564
      %v931 = vunpack.c.l.s4 1983009808
      %v932 = vunpack.c.0.s8 %v931
      %v933 = vlaneseq
      %v934 = vshrl.u32 %v933, 7
      %v935 = vsub.s32 %v932, %v934
      %v936 = vrot.slane %v928, %v935
      %v938 = vunpack.c.l.s4 1983009808
      %v939 = vunpack.c.0.s8 %v938
      %v940 = vlaneseq
      %v941 = vshrl.u32 %v940, 7
      %v942 = vsub.s32 %v939, %v941
      %v943 = vrot.slane %v929, %v942
      %v944 = vcombine.low %v936, %v943
      %v945 = vcombine.low %v563, %v565
      %v947 = vunpack.c.l.s4 1983009808
      %v948 = vunpack.c.0.s8 %v947
      %v949 = vlaneseq
      %v950 = vshrl.u32 %v949, 7
      %v951 = vsub.s32 %v948, %v950
      %v952 = vrot.slane %v945, %v951
      %v953 = vcombine.low %v581, %v580
      %v954 = vcombine.low %v582, %v590
      %v956 = vunpack.c.l.s4 1983009808
      %v957 = vunpack.c.0.s8 %v956
      %v958 = vlaneseq
      %v959 = vshrl.u32 %v958, 7
      %v960 = vsub.s32 %v957, %v959
      %v961 = vrot.slane %v953, %v960
      %v963 = vunpack.c.l.s4 1983009808
      %v964 = vunpack.c.0.s8 %v963
      %v965 = vlaneseq
      %v966 = vshrl.u32 %v965, 7
      %v967 = vsub.s32 %v964, %v966
      %v968 = vrot.slane %v954, %v967
      %v969 = vcombine.low %v961, %v968
      %v970 = vcombine.low %v598, %v597
      %v972 = vunpack.c.l.s4 1983009808
      %v973 = vunpack.c.0.s8 %v972
      %v974 = vlaneseq
      %v975 = vshrl.u32 %v974, 7
      %v976 = vsub.s32 %v973, %v975
      %v977 = vrot.slane %v970, %v976
      %v978 = vcombine.low %v607, %v615
      %v979 = vcombine.low %v614, %v616
      %v981 = vunpack.c.l.s4 1983009808
      %v982 = vunpack.c.0.s8 %v981
      %v983 = vlaneseq
      %v984 = vshrl.u32 %v983, 7
      %v985 = vsub.s32 %v982, %v984
      %v986 = vrot.slane %v978, %v985
      %v988 = vunpack.c.l.s4 1983009808
      %v989 = vunpack.c.0.s8 %v988
      %v990 = vlaneseq
      %v991 = vshrl.u32 %v990, 7
      %v992 = vsub.s32 %v989, %v991
      %v993 = vrot.slane %v979, %v992
      %v994 = vcombine.low %v986, %v993
      %v995 = vcombine.low %v624, %v632
      %v997 = vunpack.c.l.s4 1983009808
      %v998 = vunpack.c.0.s8 %v997
      %v999 = vlaneseq
      %v1000 = vshrl.u32 %v999, 7
      %v1001 = vsub.s32 %v998, %v1000
      %v1002 = vrot.slane %v995, %v1001
      %v1003 = vcombine.low %v633, %v641
      %v1004 = vcombine.low %v649, %v648
      %v1006 = vunpack.c.l.s4 1983009808
      %v1007 = vunpack.c.0.s8 %v1006
      %v1008 = vlaneseq
      %v1009 = vshrl.u32 %v1008, 7
      %v1010 = vsub.s32 %v1007, %v1009
      %v1011 = vrot.slane %v1003, %v1010
      %v1013 = vunpack.c.l.s4 1983009808
      %v1014 = vunpack.c.0.s8 %v1013
      %v1015 = vlaneseq
      %v1016 = vshrl.u32 %v1015, 7
      %v1017 = vsub.s32 %v1014, %v1016
      %v1018 = vrot.slane %v1004, %v1017
      %v1019 = vcombine.low %v1011, %v1018
      %v1020 = vcombine.low %v650, %v658
      %v1022 = vunpack.c.l.s4 1983009808
      %v1023 = vunpack.c.0.s8 %v1022
      %v1024 = vlaneseq
      %v1025 = vshrl.u32 %v1024, 7
      %v1026 = vsub.s32 %v1023, %v1025
      %v1027 = vrot.slane %v1020, %v1026
      %v1028 = vcombine.low %v665, %v667
      %v1029 = vcombine.low %v675, %v683
      %v1031 = vunpack.c.l.s4 1983009808
      %v1032 = vunpack.c.0.s8 %v1031
      %v1033 = vlaneseq
      %v1034 = vshrl.u32 %v1033, 7
      %v1035 = vsub.s32 %v1032, %v1034
      %v1036 = vrot.slane %v1028, %v1035
      %v1038 = vunpack.c.l.s4 1983009808
      %v1039 = vunpack.c.0.s8 %v1038
      %v1040 = vlaneseq
      %v1041 = vshrl.u32 %v1040, 7
      %v1042 = vsub.s32 %v1039, %v1041
      %v1043 = vrot.slane %v1029, %v1042
      %v1044 = vcombine.low %v1036, %v1043
      %v1045 = vcombine.low %v682, %v684
      %v1047 = vunpack.c.l.s4 1983009808
      %v1048 = vunpack.c.0.s8 %v1047
      %v1049 = vlaneseq
      %v1050 = vshrl.u32 %v1049, 7
      %v1051 = vsub.s32 %v1048, %v1050
      %v1052 = vrot.slane %v1045, %v1051
      %v1053 = vcombine.low %v700, %v699
      %v1054 = vcombine.low %v701, %v709
      %v1056 = vunpack.c.l.s4 1983009808
      %v1057 = vunpack.c.0.s8 %v1056
      %v1058 = vlaneseq
      %v1059 = vshrl.u32 %v1058, 7
      %v1060 = vsub.s32 %v1057, %v1059
      %v1061 = vrot.slane %v1053, %v1060
      %v1063 = vunpack.c.l.s4 1983009808
      %v1064 = vunpack.c.0.s8 %v1063
      %v1065 = vlaneseq
      %v1066 = vshrl.u32 %v1065, 7
      %v1067 = vsub.s32 %v1064, %v1066
      %v1068 = vrot.slane %v1054, %v1067
      %v1069 = vcombine.low %v1061, %v1068
      %v1070 = vcombine.low %v717, %v716
      %v1072 = vunpack.c.l.s4 1983009808
      %v1073 = vunpack.c.0.s8 %v1072
      %v1074 = vlaneseq
      %v1075 = vshrl.u32 %v1074, 7
      %v1076 = vsub.s32 %v1073, %v1075
      %v1077 = vrot.slane %v1070, %v1076
      %v1103 = vunpack.c.l.s4 1983009808
      %v1104 = vunpack.c.0.s8 %v1103
      %v1105 = vlaneseq
      %v1106 = vshrl.u32 %v1105, 7
      %v1107 = vsub.s32 %v1104, %v1106
      %v1108 = vrot.slane %v393, %v1107
      %v1109 = vcombine.low %v802, %v1108
      %v1111 = vunpack.c.l.s4 1983009808
      %v1112 = vunpack.c.0.s8 %v1111
      %v1113 = vlaneseq
      %v1114 = vshrl.u32 %v1113, 7
      %v1115 = vsub.s32 %v1112, %v1114
      %v1116 = vrot.slane %v428, %v1115
      %v1117 = vcombine.low %v827, %v1116
      %v1119 = vunpack.c.l.s4 1983009808
      %v1120 = vunpack.c.0.s8 %v1119
      %v1121 = vlaneseq
      %v1122 = vshrl.u32 %v1121, 7
      %v1123 = vsub.s32 %v1120, %v1122
      %v1124 = vrot.slane %v454, %v1123
      %v1125 = vcombine.low %v852, %v1124
      %v1127 = vunpack.c.l.s4 1983009808
      %v1128 = vunpack.c.0.s8 %v1127
      %v1129 = vlaneseq
      %v1130 = vshrl.u32 %v1129, 7
      %v1131 = vsub.s32 %v1128, %v1130
      %v1132 = vrot.slane %v480, %v1131
      %v1133 = vcombine.low %v877, %v1132
      %v1135 = vunpack.c.l.s4 1983009808
      %v1136 = vunpack.c.0.s8 %v1135
      %v1137 = vlaneseq
      %v1138 = vshrl.u32 %v1137, 7
      %v1139 = vsub.s32 %v1136, %v1138
      %v1140 = vrot.slane %v512, %v1139
      %v1141 = vcombine.low %v902, %v1140
      %v1143 = vunpack.c.l.s4 1983009808
      %v1144 = vunpack.c.0.s8 %v1143
      %v1145 = vlaneseq
      %v1146 = vshrl.u32 %v1145, 7
      %v1147 = vsub.s32 %v1144, %v1146
      %v1148 = vrot.slane %v547, %v1147
      %v1149 = vcombine.low %v927, %v1148
      %v1151 = vunpack.c.l.s4 1983009808
      %v1152 = vunpack.c.0.s8 %v1151
      %v1153 = vlaneseq
      %v1154 = vshrl.u32 %v1153, 7
      %v1155 = vsub.s32 %v1152, %v1154
      %v1156 = vrot.slane %v573, %v1155
      %v1157 = vcombine.low %v952, %v1156
      %v1159 = vunpack.c.l.s4 1983009808
      %v1160 = vunpack.c.0.s8 %v1159
      %v1161 = vlaneseq
      %v1162 = vshrl.u32 %v1161, 7
      %v1163 = vsub.s32 %v1160, %v1162
      %v1164 = vrot.slane %v599, %v1163
      %v1165 = vcombine.low %v977, %v1164
      %v1167 = vunpack.c.l.s4 1983009808
      %v1168 = vunpack.c.0.s8 %v1167
      %v1169 = vlaneseq
      %v1170 = vshrl.u32 %v1169, 7
      %v1171 = vsub.s32 %v1168, %v1170
      %v1172 = vrot.slane %v631, %v1171
      %v1173 = vcombine.low %v1002, %v1172
      %v1175 = vunpack.c.l.s4 1983009808
      %v1176 = vunpack.c.0.s8 %v1175
      %v1177 = vlaneseq
      %v1178 = vshrl.u32 %v1177, 7
      %v1179 = vsub.s32 %v1176, %v1178
      %v1180 = vrot.slane %v666, %v1179
      %v1181 = vcombine.low %v1027, %v1180
      %v1183 = vunpack.c.l.s4 1983009808
      %v1184 = vunpack.c.0.s8 %v1183
      %v1185 = vlaneseq
      %v1186 = vshrl.u32 %v1185, 7
      %v1187 = vsub.s32 %v1184, %v1186
      %v1188 = vrot.slane %v692, %v1187
      %v1189 = vcombine.low %v1052, %v1188
      %v1191 = vunpack.c.l.s4 1983009808
      %v1192 = vunpack.c.0.s8 %v1191
      %v1193 = vlaneseq
      %v1194 = vshrl.u32 %v1193, 7
      %v1195 = vsub.s32 %v1192, %v1194
      %v1196 = vrot.slane %v718, %v1195
      %v1197 = vcombine.low %v1077, %v1196
      %vm1198 = vcmask 1046528
      %v1199 = vrot.slane %v794, 1
      %v1200 = vrot.slane %v1109, 1
      %v1201 = vsel %vm1198, %v1199, %v1200
      %v1202 = vrot.slane %v819, 1
      %v1203 = vrot.slane %v1117, 1
      %v1204 = vsel %vm1198, %v1202, %v1203
      %v1205 = vrot.slane %v844, 1
      %v1206 = vrot.slane %v1125, 1
      %v1207 = vsel %vm1198, %v1205, %v1206
      %v1208 = vrot.slane %v869, 1
      %v1209 = vrot.slane %v1133, 1
      %v1210 = vsel %vm1198, %v1208, %v1209
      %v1211 = vrot.slane %v894, 1
      %v1212 = vrot.slane %v1141, 1
      %v1213 = vsel %vm1198, %v1211, %v1212
      %v1214 = vrot.slane %v919, 1
      %v1215 = vrot.slane %v1149, 1
      %v1216 = vsel %vm1198, %v1214, %v1215
      %v1217 = vrot.slane %v944, 1
      %v1218 = vrot.slane %v1157, 1
      %v1219 = vsel %vm1198, %v1217, %v1218
      %v1220 = vrot.slane %v969, 1
      %v1221 = vrot.slane %v1165, 1
      %v1222 = vsel %vm1198, %v1220, %v1221
      %v1223 = vrot.slane %v994, 1
      %v1224 = vrot.slane %v1173, 1
      %v1225 = vsel %vm1198, %v1223, %v1224
      %v1226 = vrot.slane %v1019, 1
      %v1227 = vrot.slane %v1181, 1
      %v1228 = vsel %vm1198, %v1226, %v1227
      %v1229 = vrot.slane %v1044, 1
      %v1230 = vrot.slane %v1189, 1
      %v1231 = vsel %vm1198, %v1229, %v1230
      %v1232 = vrot.slane %v1069, 1
      %v1233 = vrot.slane %v1197, 1
      %v1234 = vsel %vm1198, %v1232, %v1233
      %1235 = vrot.lane.b32.xlu0 %v1201, 8
      %v1236 = vpop.permute.xlu0 %1235
      %1237 = vrot.lane.b32.xlu0 %v1200, 8
      %v1238 = vpop.permute.xlu0 %1237
      %1239 = vrot.lane.b32.xlu0 %v1204, 8
      %v1240 = vpop.permute.xlu0 %1239
      %1241 = vrot.lane.b32.xlu0 %v1203, 8
      %v1242 = vpop.permute.xlu0 %1241
      %1243 = vrot.lane.b32.xlu0 %v1207, 8
      %v1244 = vpop.permute.xlu0 %1243
      %1245 = vrot.lane.b32.xlu0 %v1206, 8
      %v1246 = vpop.permute.xlu0 %1245
      %1247 = vrot.lane.b32.xlu0 %v1210, 8
      %v1248 = vpop.permute.xlu0 %1247
      %1249 = vrot.lane.b32.xlu0 %v1209, 8
      %v1250 = vpop.permute.xlu0 %1249
      %1251 = vrot.lane.b32.xlu0 %v1213, 8
      %v1252 = vpop.permute.xlu0 %1251
      %1253 = vrot.lane.b32.xlu0 %v1212, 8
      %v1254 = vpop.permute.xlu0 %1253
      %1255 = vrot.lane.b32.xlu0 %v1216, 8
      %v1256 = vpop.permute.xlu0 %1255
      %1257 = vrot.lane.b32.xlu0 %v1215, 8
      %v1258 = vpop.permute.xlu0 %1257
      %1259 = vrot.lane.b32.xlu0 %v1219, 8
      %v1260 = vpop.permute.xlu0 %1259
      %1261 = vrot.lane.b32.xlu0 %v1218, 8
      %v1262 = vpop.permute.xlu0 %1261
      %1263 = vrot.lane.b32.xlu0 %v1222, 8
      %v1264 = vpop.permute.xlu0 %1263
      %1265 = vrot.lane.b32.xlu0 %v1221, 8
      %v1266 = vpop.permute.xlu0 %1265
      %1267 = vrot.lane.b32.xlu0 %v1225, 8
      %v1268 = vpop.permute.xlu0 %1267
      %1269 = vrot.lane.b32.xlu0 %v1224, 8
      %v1270 = vpop.permute.xlu0 %1269
      %1271 = vrot.lane.b32.xlu0 %v1228, 8
      %v1272 = vpop.permute.xlu0 %1271
      %1273 = vrot.lane.b32.xlu0 %v1227, 8
      %v1274 = vpop.permute.xlu0 %1273
      %1275 = vrot.lane.b32.xlu0 %v1231, 8
      %v1276 = vpop.permute.xlu0 %1275
      %1277 = vrot.lane.b32.xlu0 %v1230, 8
      %v1278 = vpop.permute.xlu0 %1277
      %1279 = vrot.lane.b32.xlu0 %v1234, 8
      %v1280 = vpop.permute.xlu0 %1279
      %1281 = vrot.lane.b32.xlu0 %v1233, 8
      %v1282 = vpop.permute.xlu0 %1281
      %v1307 = vcombine.low %v377, %v376
      %v1308 = vcombine.low %v378, %v386
      %v1310 = vunpack.c.l.s4 1983009808
      %v1311 = vunpack.c.0.s8 %v1310
      %v1312 = vlaneseq
      %v1313 = vshrl.u32 %v1312, 7
      %v1314 = vsub.s32 %v1311, %v1313
      %v1315 = vrot.slane %v1307, %v1314
      %v1317 = vunpack.c.l.s4 1983009808
      %v1318 = vunpack.c.0.s8 %v1317
      %v1319 = vlaneseq
      %v1320 = vshrl.u32 %v1319, 7
      %v1321 = vsub.s32 %v1318, %v1320
      %v1322 = vrot.slane %v1308, %v1321
      %v1323 = vcombine.low %v1315, %v1322
      %v1324 = vcombine.low %v394, %v393
      %v1326 = vunpack.c.l.s4 1983009808
      %v1327 = vunpack.c.0.s8 %v1326
      %v1328 = vlaneseq
      %v1329 = vshrl.u32 %v1328, 7
      %v1330 = vsub.s32 %v1327, %v1329
      %v1331 = vrot.slane %v1324, %v1330
      %v1332 = vcombine.low %v403, %v411
      %v1333 = vcombine.low %v410, %v412
      %v1335 = vunpack.c.l.s4 1983009808
      %v1336 = vunpack.c.0.s8 %v1335
      %v1337 = vlaneseq
      %v1338 = vshrl.u32 %v1337, 7
      %v1339 = vsub.s32 %v1336, %v1338
      %v1340 = vrot.slane %v1332, %v1339
      %v1342 = vunpack.c.l.s4 1983009808
      %v1343 = vunpack.c.0.s8 %v1342
      %v1344 = vlaneseq
      %v1345 = vshrl.u32 %v1344, 7
      %v1346 = vsub.s32 %v1343, %v1345
      %v1347 = vrot.slane %v1333, %v1346
      %v1348 = vcombine.low %v1340, %v1347
      %v1349 = vcombine.low %v420, %v428
      %v1351 = vunpack.c.l.s4 1983009808
      %v1352 = vunpack.c.0.s8 %v1351
      %v1353 = vlaneseq
      %v1354 = vshrl.u32 %v1353, 7
      %v1355 = vsub.s32 %v1352, %v1354
      %v1356 = vrot.slane %v1349, %v1355
      %v1357 = vcombine.low %v429, %v437
      %v1358 = vcombine.low %v445, %v444
      %v1360 = vunpack.c.l.s4 1983009808
      %v1361 = vunpack.c.0.s8 %v1360
      %v1362 = vlaneseq
      %v1363 = vshrl.u32 %v1362, 7
      %v1364 = vsub.s32 %v1361, %v1363
      %v1365 = vrot.slane %v1357, %v1364
      %v1367 = vunpack.c.l.s4 1983009808
      %v1368 = vunpack.c.0.s8 %v1367
      %v1369 = vlaneseq
      %v1370 = vshrl.u32 %v1369, 7
      %v1371 = vsub.s32 %v1368, %v1370
      %v1372 = vrot.slane %v1358, %v1371
      %v1373 = vcombine.low %v1365, %v1372
      %v1374 = vcombine.low %v446, %v454
      %v1376 = vunpack.c.l.s4 1983009808
      %v1377 = vunpack.c.0.s8 %v1376
      %v1378 = vlaneseq
      %v1379 = vshrl.u32 %v1378, 7
      %v1380 = vsub.s32 %v1377, %v1379
      %v1381 = vrot.slane %v1374, %v1380
      %v1382 = vcombine.low %v461, %v463
      %v1383 = vcombine.low %v471, %v479
      %v1385 = vunpack.c.l.s4 1983009808
      %v1386 = vunpack.c.0.s8 %v1385
      %v1387 = vlaneseq
      %v1388 = vshrl.u32 %v1387, 7
      %v1389 = vsub.s32 %v1386, %v1388
      %v1390 = vrot.slane %v1382, %v1389
      %v1392 = vunpack.c.l.s4 1983009808
      %v1393 = vunpack.c.0.s8 %v1392
      %v1394 = vlaneseq
      %v1395 = vshrl.u32 %v1394, 7
      %v1396 = vsub.s32 %v1393, %v1395
      %v1397 = vrot.slane %v1383, %v1396
      %v1398 = vcombine.low %v1390, %v1397
      %v1399 = vcombine.low %v478, %v480
      %v1401 = vunpack.c.l.s4 1983009808
      %v1402 = vunpack.c.0.s8 %v1401
      %v1403 = vlaneseq
      %v1404 = vshrl.u32 %v1403, 7
      %v1405 = vsub.s32 %v1402, %v1404
      %v1406 = vrot.slane %v1399, %v1405
      %v1407 = vcombine.low %v496, %v495
      %v1408 = vcombine.low %v497, %v505
      %v1410 = vunpack.c.l.s4 1983009808
      %v1411 = vunpack.c.0.s8 %v1410
      %v1412 = vlaneseq
      %v1413 = vshrl.u32 %v1412, 7
      %v1414 = vsub.s32 %v1411, %v1413
      %v1415 = vrot.slane %v1407, %v1414
      %v1417 = vunpack.c.l.s4 1983009808
      %v1418 = vunpack.c.0.s8 %v1417
      %v1419 = vlaneseq
      %v1420 = vshrl.u32 %v1419, 7
      %v1421 = vsub.s32 %v1418, %v1420
      %v1422 = vrot.slane %v1408, %v1421
      %v1423 = vcombine.low %v1415, %v1422
      %v1424 = vcombine.low %v513, %v512
      %v1426 = vunpack.c.l.s4 1983009808
      %v1427 = vunpack.c.0.s8 %v1426
      %v1428 = vlaneseq
      %v1429 = vshrl.u32 %v1428, 7
      %v1430 = vsub.s32 %v1427, %v1429
      %v1431 = vrot.slane %v1424, %v1430
      %v1432 = vcombine.low %v522, %v530
      %v1433 = vcombine.low %v529, %v531
      %v1435 = vunpack.c.l.s4 1983009808
      %v1436 = vunpack.c.0.s8 %v1435
      %v1437 = vlaneseq
      %v1438 = vshrl.u32 %v1437, 7
      %v1439 = vsub.s32 %v1436, %v1438
      %v1440 = vrot.slane %v1432, %v1439
      %v1442 = vunpack.c.l.s4 1983009808
      %v1443 = vunpack.c.0.s8 %v1442
      %v1444 = vlaneseq
      %v1445 = vshrl.u32 %v1444, 7
      %v1446 = vsub.s32 %v1443, %v1445
      %v1447 = vrot.slane %v1433, %v1446
      %v1448 = vcombine.low %v1440, %v1447
      %v1449 = vcombine.low %v539, %v547
      %v1451 = vunpack.c.l.s4 1983009808
      %v1452 = vunpack.c.0.s8 %v1451
      %v1453 = vlaneseq
      %v1454 = vshrl.u32 %v1453, 7
      %v1455 = vsub.s32 %v1452, %v1454
      %v1456 = vrot.slane %v1449, %v1455
      %v1457 = vcombine.low %v548, %v556
      %v1458 = vcombine.low %v564, %v563
      %v1460 = vunpack.c.l.s4 1983009808
      %v1461 = vunpack.c.0.s8 %v1460
      %v1462 = vlaneseq
      %v1463 = vshrl.u32 %v1462, 7
      %v1464 = vsub.s32 %v1461, %v1463
      %v1465 = vrot.slane %v1457, %v1464
      %v1467 = vunpack.c.l.s4 1983009808
      %v1468 = vunpack.c.0.s8 %v1467
      %v1469 = vlaneseq
      %v1470 = vshrl.u32 %v1469, 7
      %v1471 = vsub.s32 %v1468, %v1470
      %v1472 = vrot.slane %v1458, %v1471
      %v1473 = vcombine.low %v1465, %v1472
      %v1474 = vcombine.low %v565, %v573
      %v1476 = vunpack.c.l.s4 1983009808
      %v1477 = vunpack.c.0.s8 %v1476
      %v1478 = vlaneseq
      %v1479 = vshrl.u32 %v1478, 7
      %v1480 = vsub.s32 %v1477, %v1479
      %v1481 = vrot.slane %v1474, %v1480
      %v1482 = vcombine.low %v580, %v582
      %v1483 = vcombine.low %v590, %v598
      %v1485 = vunpack.c.l.s4 1983009808
      %v1486 = vunpack.c.0.s8 %v1485
      %v1487 = vlaneseq
      %v1488 = vshrl.u32 %v1487, 7
      %v1489 = vsub.s32 %v1486, %v1488
      %v1490 = vrot.slane %v1482, %v1489
      %v1492 = vunpack.c.l.s4 1983009808
      %v1493 = vunpack.c.0.s8 %v1492
      %v1494 = vlaneseq
      %v1495 = vshrl.u32 %v1494, 7
      %v1496 = vsub.s32 %v1493, %v1495
      %v1497 = vrot.slane %v1483, %v1496
      %v1498 = vcombine.low %v1490, %v1497
      %v1499 = vcombine.low %v597, %v599
      %v1501 = vunpack.c.l.s4 1983009808
      %v1502 = vunpack.c.0.s8 %v1501
      %v1503 = vlaneseq
      %v1504 = vshrl.u32 %v1503, 7
      %v1505 = vsub.s32 %v1502, %v1504
      %v1506 = vrot.slane %v1499, %v1505
      %v1507 = vcombine.low %v615, %v614
      %v1508 = vcombine.low %v616, %v624
      %v1510 = vunpack.c.l.s4 1983009808
      %v1511 = vunpack.c.0.s8 %v1510
      %v1512 = vlaneseq
      %v1513 = vshrl.u32 %v1512, 7
      %v1514 = vsub.s32 %v1511, %v1513
      %v1515 = vrot.slane %v1507, %v1514
      %v1517 = vunpack.c.l.s4 1983009808
      %v1518 = vunpack.c.0.s8 %v1517
      %v1519 = vlaneseq
      %v1520 = vshrl.u32 %v1519, 7
      %v1521 = vsub.s32 %v1518, %v1520
      %v1522 = vrot.slane %v1508, %v1521
      %v1523 = vcombine.low %v1515, %v1522
      %v1524 = vcombine.low %v632, %v631
      %v1526 = vunpack.c.l.s4 1983009808
      %v1527 = vunpack.c.0.s8 %v1526
      %v1528 = vlaneseq
      %v1529 = vshrl.u32 %v1528, 7
      %v1530 = vsub.s32 %v1527, %v1529
      %v1531 = vrot.slane %v1524, %v1530
      %v1532 = vcombine.low %v641, %v649
      %v1533 = vcombine.low %v648, %v650
      %v1535 = vunpack.c.l.s4 1983009808
      %v1536 = vunpack.c.0.s8 %v1535
      %v1537 = vlaneseq
      %v1538 = vshrl.u32 %v1537, 7
      %v1539 = vsub.s32 %v1536, %v1538
      %v1540 = vrot.slane %v1532, %v1539
      %v1542 = vunpack.c.l.s4 1983009808
      %v1543 = vunpack.c.0.s8 %v1542
      %v1544 = vlaneseq
      %v1545 = vshrl.u32 %v1544, 7
      %v1546 = vsub.s32 %v1543, %v1545
      %v1547 = vrot.slane %v1533, %v1546
      %v1548 = vcombine.low %v1540, %v1547
      %v1549 = vcombine.low %v658, %v666
      %v1551 = vunpack.c.l.s4 1983009808
      %v1552 = vunpack.c.0.s8 %v1551
      %v1553 = vlaneseq
      %v1554 = vshrl.u32 %v1553, 7
      %v1555 = vsub.s32 %v1552, %v1554
      %v1556 = vrot.slane %v1549, %v1555
      %v1557 = vcombine.low %v667, %v675
      %v1558 = vcombine.low %v683, %v682
      %v1560 = vunpack.c.l.s4 1983009808
      %v1561 = vunpack.c.0.s8 %v1560
      %v1562 = vlaneseq
      %v1563 = vshrl.u32 %v1562, 7
      %v1564 = vsub.s32 %v1561, %v1563
      %v1565 = vrot.slane %v1557, %v1564
      %v1567 = vunpack.c.l.s4 1983009808
      %v1568 = vunpack.c.0.s8 %v1567
      %v1569 = vlaneseq
      %v1570 = vshrl.u32 %v1569, 7
      %v1571 = vsub.s32 %v1568, %v1570
      %v1572 = vrot.slane %v1558, %v1571
      %v1573 = vcombine.low %v1565, %v1572
      %v1574 = vcombine.low %v684, %v692
      %v1576 = vunpack.c.l.s4 1983009808
      %v1577 = vunpack.c.0.s8 %v1576
      %v1578 = vlaneseq
      %v1579 = vshrl.u32 %v1578, 7
      %v1580 = vsub.s32 %v1577, %v1579
      %v1581 = vrot.slane %v1574, %v1580
      %v1582 = vcombine.low %v699, %v701
      %v1583 = vcombine.low %v709, %v717
      %v1585 = vunpack.c.l.s4 1983009808
      %v1586 = vunpack.c.0.s8 %v1585
      %v1587 = vlaneseq
      %v1588 = vshrl.u32 %v1587, 7
      %v1589 = vsub.s32 %v1586, %v1588
      %v1590 = vrot.slane %v1582, %v1589
      %v1592 = vunpack.c.l.s4 1983009808
      %v1593 = vunpack.c.0.s8 %v1592
      %v1594 = vlaneseq
      %v1595 = vshrl.u32 %v1594, 7
      %v1596 = vsub.s32 %v1593, %v1595
      %v1597 = vrot.slane %v1583, %v1596
      %v1598 = vcombine.low %v1590, %v1597
      %v1599 = vcombine.low %v716, %v718
      %v1601 = vunpack.c.l.s4 1983009808
      %v1602 = vunpack.c.0.s8 %v1601
      %v1603 = vlaneseq
      %v1604 = vshrl.u32 %v1603, 7
      %v1605 = vsub.s32 %v1602, %v1604
      %v1606 = vrot.slane %v1599, %v1605
      %1607 = vrot.lane.b32.xlu0 %v1323, 16
      %v1608 = vpop.permute.xlu0 %1607
      %1609 = vrot.lane.b32.xlu0 %v1331, 16
      %v1610 = vpop.permute.xlu0 %1609
      %1611 = vrot.lane.b32.xlu0 %v1348, 16
      %v1612 = vpop.permute.xlu0 %1611
      %1613 = vrot.lane.b32.xlu0 %v1356, 16
      %v1614 = vpop.permute.xlu0 %1613
      %1615 = vrot.lane.b32.xlu0 %v1373, 16
      %v1616 = vpop.permute.xlu0 %1615
      %1617 = vrot.lane.b32.xlu0 %v1381, 16
      %v1618 = vpop.permute.xlu0 %1617
      %1619 = vrot.lane.b32.xlu0 %v1398, 16
      %v1620 = vpop.permute.xlu0 %1619
      %1621 = vrot.lane.b32.xlu0 %v1406, 16
      %v1622 = vpop.permute.xlu0 %1621
      %1623 = vrot.lane.b32.xlu0 %v1423, 16
      %v1624 = vpop.permute.xlu0 %1623
      %1625 = vrot.lane.b32.xlu0 %v1431, 16
      %v1626 = vpop.permute.xlu0 %1625
      %1627 = vrot.lane.b32.xlu0 %v1448, 16
      %v1628 = vpop.permute.xlu0 %1627
      %1629 = vrot.lane.b32.xlu0 %v1456, 16
      %v1630 = vpop.permute.xlu0 %1629
      %1631 = vrot.lane.b32.xlu0 %v1473, 16
      %v1632 = vpop.permute.xlu0 %1631
      %1633 = vrot.lane.b32.xlu0 %v1481, 16
      %v1634 = vpop.permute.xlu0 %1633
      %1635 = vrot.lane.b32.xlu0 %v1498, 16
      %v1636 = vpop.permute.xlu0 %1635
      %1637 = vrot.lane.b32.xlu0 %v1506, 16
      %v1638 = vpop.permute.xlu0 %1637
      %1639 = vrot.lane.b32.xlu0 %v1523, 16
      %v1640 = vpop.permute.xlu0 %1639
      %1641 = vrot.lane.b32.xlu0 %v1531, 16
      %v1642 = vpop.permute.xlu0 %1641
      %1643 = vrot.lane.b32.xlu0 %v1548, 16
      %v1644 = vpop.permute.xlu0 %1643
      %1645 = vrot.lane.b32.xlu0 %v1556, 16
      %v1646 = vpop.permute.xlu0 %1645
      %1647 = vrot.lane.b32.xlu0 %v1573, 16
      %v1648 = vpop.permute.xlu0 %1647
      %1649 = vrot.lane.b32.xlu0 %v1581, 16
      %v1650 = vpop.permute.xlu0 %1649
      %1651 = vrot.lane.b32.xlu0 %v1598, 16
      %v1652 = vpop.permute.xlu0 %1651
      %1653 = vrot.lane.b32.xlu0 %v1606, 16
      %v1654 = vpop.permute.xlu0 %1653
      %v1679 = vcombine.low %v726, %v734
      %v1680 = vcombine.low %v733, %v735
      %v1682 = vunpack.c.l.s4 1983009808
      %v1683 = vunpack.c.0.s8 %v1682
      %v1684 = vlaneseq
      %v1685 = vshrl.u32 %v1684, 7
      %v1686 = vsub.s32 %v1683, %v1685
      %v1687 = vrot.slane %v1679, %v1686
      %v1689 = vunpack.c.l.s4 1983009808
      %v1690 = vunpack.c.0.s8 %v1689
      %v1691 = vlaneseq
      %v1692 = vshrl.u32 %v1691, 7
      %v1693 = vsub.s32 %v1690, %v1692
      %v1694 = vrot.slane %v1680, %v1693
      %v1695 = vcombine.low %v1687, %v1694
      %v1696 = vcombine.low %v743, %v751
      %v1698 = vunpack.c.l.s4 1983009808
      %v1699 = vunpack.c.0.s8 %v1698
      %v1700 = vlaneseq
      %v1701 = vshrl.u32 %v1700, 7
      %v1702 = vsub.s32 %v1699, %v1701
      %v1703 = vrot.slane %v1696, %v1702
      %1704 = vrot.lane.b32.xlu0 %v819, 24
      %v1705 = vpop.permute.xlu0 %1704
      %1706 = vrot.lane.b32.xlu0 %v827, 24
      %v1707 = vpop.permute.xlu0 %1706
      %1708 = vrot.lane.b32.xlu0 %v844, 24
      %v1709 = vpop.permute.xlu0 %1708
      %1710 = vrot.lane.b32.xlu0 %v852, 24
      %v1711 = vpop.permute.xlu0 %1710
      %1712 = vrot.lane.b32.xlu0 %v869, 24
      %v1713 = vpop.permute.xlu0 %1712
      %1714 = vrot.lane.b32.xlu0 %v877, 24
      %v1715 = vpop.permute.xlu0 %1714
      %1716 = vrot.lane.b32.xlu0 %v894, 24
      %v1717 = vpop.permute.xlu0 %1716
      %1718 = vrot.lane.b32.xlu0 %v902, 24
      %v1719 = vpop.permute.xlu0 %1718
      %1720 = vrot.lane.b32.xlu0 %v919, 24
      %v1721 = vpop.permute.xlu0 %1720
      %1722 = vrot.lane.b32.xlu0 %v927, 24
      %v1723 = vpop.permute.xlu0 %1722
      %1724 = vrot.lane.b32.xlu0 %v944, 24
      %v1725 = vpop.permute.xlu0 %1724
      %1726 = vrot.lane.b32.xlu0 %v952, 24
      %v1727 = vpop.permute.xlu0 %1726
      %1728 = vrot.lane.b32.xlu0 %v969, 24
      %v1729 = vpop.permute.xlu0 %1728
      %1730 = vrot.lane.b32.xlu0 %v977, 24
      %v1731 = vpop.permute.xlu0 %1730
      %1732 = vrot.lane.b32.xlu0 %v994, 24
      %v1733 = vpop.permute.xlu0 %1732
      %1734 = vrot.lane.b32.xlu0 %v1002, 24
      %v1735 = vpop.permute.xlu0 %1734
      %1736 = vrot.lane.b32.xlu0 %v1019, 24
      %v1737 = vpop.permute.xlu0 %1736
      %1738 = vrot.lane.b32.xlu0 %v1027, 24
      %v1739 = vpop.permute.xlu0 %1738
      %1740 = vrot.lane.b32.xlu0 %v1044, 24
      %v1741 = vpop.permute.xlu0 %1740
      %1742 = vrot.lane.b32.xlu0 %v1052, 24
      %v1743 = vpop.permute.xlu0 %1742
      %1744 = vrot.lane.b32.xlu0 %v1069, 24
      %v1745 = vpop.permute.xlu0 %1744
      %1746 = vrot.lane.b32.xlu0 %v1077, 24
      %v1747 = vpop.permute.xlu0 %1746
      %1748 = vrot.lane.b32.xlu0 %v1695, 24
      %v1749 = vpop.permute.xlu0 %1748
      %1750 = vrot.lane.b32.xlu0 %v1703, 24
      %v1751 = vpop.permute.xlu0 %1750
      %v1777 = vunpack.c.l.s4 1983009808
      %v1778 = vunpack.c.0.s8 %v1777
      %v1779 = vlaneseq
      %v1780 = vshrl.u32 %v1779, 7
      %v1781 = vsub.s32 %v1778, %v1780
      %v1782 = vrot.slane %v750, %v1781
      %v1783 = vcombine.low %v1703, %v1782
      %v1784 = vrot.slane %v1695, 1
      %v1785 = vrot.slane %v1783, 1
      %v1786 = vsel %vm1198, %v1784, %v1785
      %1787 = vrot.lane.b32.xlu0 %v1204, 32
      %v1788 = vpop.permute.xlu0 %1787
      %1789 = vrot.lane.b32.xlu0 %v1203, 32
      %v1790 = vpop.permute.xlu0 %1789
      %1791 = vrot.lane.b32.xlu0 %v1207, 32
      %v1792 = vpop.permute.xlu0 %1791
      %1793 = vrot.lane.b32.xlu0 %v1206, 32
      %v1794 = vpop.permute.xlu0 %1793
      %1795 = vrot.lane.b32.xlu0 %v1210, 32
      %v1796 = vpop.permute.xlu0 %1795
      %1797 = vrot.lane.b32.xlu0 %v1209, 32
      %v1798 = vpop.permute.xlu0 %1797
      %1799 = vrot.lane.b32.xlu0 %v1213, 32
      %v1800 = vpop.permute.xlu0 %1799
      %1801 = vrot.lane.b32.xlu0 %v1212, 32
      %v1802 = vpop.permute.xlu0 %1801
      %1803 = vrot.lane.b32.xlu0 %v1216, 32
      %v1804 = vpop.permute.xlu0 %1803
      %1805 = vrot.lane.b32.xlu0 %v1215, 32
      %v1806 = vpop.permute.xlu0 %1805
      %1807 = vrot.lane.b32.xlu0 %v1219, 32
      %v1808 = vpop.permute.xlu0 %1807
      %1809 = vrot.lane.b32.xlu0 %v1218, 32
      %v1810 = vpop.permute.xlu0 %1809
      %1811 = vrot.lane.b32.xlu0 %v1222, 32
      %v1812 = vpop.permute.xlu0 %1811
      %1813 = vrot.lane.b32.xlu0 %v1221, 32
      %v1814 = vpop.permute.xlu0 %1813
      %1815 = vrot.lane.b32.xlu0 %v1225, 32
      %v1816 = vpop.permute.xlu0 %1815
      %1817 = vrot.lane.b32.xlu0 %v1224, 32
      %v1818 = vpop.permute.xlu0 %1817
      %1819 = vrot.lane.b32.xlu0 %v1228, 32
      %v1820 = vpop.permute.xlu0 %1819
      %1821 = vrot.lane.b32.xlu0 %v1227, 32
      %v1822 = vpop.permute.xlu0 %1821
      %1823 = vrot.lane.b32.xlu0 %v1231, 32
      %v1824 = vpop.permute.xlu0 %1823
      %1825 = vrot.lane.b32.xlu0 %v1230, 32
      %v1826 = vpop.permute.xlu0 %1825
      %1827 = vrot.lane.b32.xlu0 %v1234, 32
      %v1828 = vpop.permute.xlu0 %1827
      %1829 = vrot.lane.b32.xlu0 %v1233, 32
      %v1830 = vpop.permute.xlu0 %1829
      %1831 = vrot.lane.b32.xlu0 %v1786, 32
      %v1832 = vpop.permute.xlu0 %1831
      %1833 = vrot.lane.b32.xlu0 %v1785, 32
      %v1834 = vpop.permute.xlu0 %1833
      %v1859 = vcombine.low %v734, %v733
      %v1860 = vcombine.low %v735, %v743
      %v1862 = vunpack.c.l.s4 1983009808
      %v1863 = vunpack.c.0.s8 %v1862
      %v1864 = vlaneseq
      %v1865 = vshrl.u32 %v1864, 7
      %v1866 = vsub.s32 %v1863, %v1865
      %v1867 = vrot.slane %v1859, %v1866
      %v1869 = vunpack.c.l.s4 1983009808
      %v1870 = vunpack.c.0.s8 %v1869
      %v1871 = vlaneseq
      %v1872 = vshrl.u32 %v1871, 7
      %v1873 = vsub.s32 %v1870, %v1872
      %v1874 = vrot.slane %v1860, %v1873
      %v1875 = vcombine.low %v1867, %v1874
      %v1876 = vcombine.low %v751, %v750
      %v1878 = vunpack.c.l.s4 1983009808
      %v1879 = vunpack.c.0.s8 %v1878
      %v1880 = vlaneseq
      %v1881 = vshrl.u32 %v1880, 7
      %v1882 = vsub.s32 %v1879, %v1881
      %v1883 = vrot.slane %v1876, %v1882
      %1884 = vrot.lane.b32.xlu0 %v1348, 40
      %v1885 = vpop.permute.xlu0 %1884
      %1886 = vrot.lane.b32.xlu0 %v1356, 40
      %v1887 = vpop.permute.xlu0 %1886
      %1888 = vrot.lane.b32.xlu0 %v1373, 40
      %v1889 = vpop.permute.xlu0 %1888
      %1890 = vrot.lane.b32.xlu0 %v1381, 40
      %v1891 = vpop.permute.xlu0 %1890
      %1892 = vrot.lane.b32.xlu0 %v1398, 40
      %v1893 = vpop.permute.xlu0 %1892
      %1894 = vrot.lane.b32.xlu0 %v1406, 40
      %v1895 = vpop.permute.xlu0 %1894
      %1896 = vrot.lane.b32.xlu0 %v1423, 40
      %v1897 = vpop.permute.xlu0 %1896
      %1898 = vrot.lane.b32.xlu0 %v1431, 40
      %v1899 = vpop.permute.xlu0 %1898
      %1900 = vrot.lane.b32.xlu0 %v1448, 40
      %v1901 = vpop.permute.xlu0 %1900
      %1902 = vrot.lane.b32.xlu0 %v1456, 40
      %v1903 = vpop.permute.xlu0 %1902
      %1904 = vrot.lane.b32.xlu0 %v1473, 40
      %v1905 = vpop.permute.xlu0 %1904
      %1906 = vrot.lane.b32.xlu0 %v1481, 40
      %v1907 = vpop.permute.xlu0 %1906
      %1908 = vrot.lane.b32.xlu0 %v1498, 40
      %v1909 = vpop.permute.xlu0 %1908
      %1910 = vrot.lane.b32.xlu0 %v1506, 40
      %v1911 = vpop.permute.xlu0 %1910
      %1912 = vrot.lane.b32.xlu0 %v1523, 40
      %v1913 = vpop.permute.xlu0 %1912
      %1914 = vrot.lane.b32.xlu0 %v1531, 40
      %v1915 = vpop.permute.xlu0 %1914
      %1916 = vrot.lane.b32.xlu0 %v1548, 40
      %v1917 = vpop.permute.xlu0 %1916
      %1918 = vrot.lane.b32.xlu0 %v1556, 40
      %v1919 = vpop.permute.xlu0 %1918
      %1920 = vrot.lane.b32.xlu0 %v1573, 40
      %v1921 = vpop.permute.xlu0 %1920
      %1922 = vrot.lane.b32.xlu0 %v1581, 40
      %v1923 = vpop.permute.xlu0 %1922
      %1924 = vrot.lane.b32.xlu0 %v1598, 40
      %v1925 = vpop.permute.xlu0 %1924
      %1926 = vrot.lane.b32.xlu0 %v1606, 40
      %v1927 = vpop.permute.xlu0 %1926
      %1928 = vrot.lane.b32.xlu0 %v1875, 40
      %v1929 = vpop.permute.xlu0 %1928
      %1930 = vrot.lane.b32.xlu0 %v1883, 40
      %v1931 = vpop.permute.xlu0 %1930
      %v1956 = vcombine.low %v752, %v760
      %v1957 = vcombine.low %v768, %v767
      %v1959 = vunpack.c.l.s4 1983009808
      %v1960 = vunpack.c.0.s8 %v1959
      %v1961 = vlaneseq
      %v1962 = vshrl.u32 %v1961, 7
      %v1963 = vsub.s32 %v1960, %v1962
      %v1964 = vrot.slane %v1956, %v1963
      %v1966 = vunpack.c.l.s4 1983009808
      %v1967 = vunpack.c.0.s8 %v1966
      %v1968 = vlaneseq
      %v1969 = vshrl.u32 %v1968, 7
      %v1970 = vsub.s32 %v1967, %v1969
      %v1971 = vrot.slane %v1957, %v1970
      %v1972 = vcombine.low %v1964, %v1971
      %v1973 = vcombine.low %v769, %v776
      %v1975 = vunpack.c.l.s4 1983009808
      %v1976 = vunpack.c.0.s8 %v1975
      %v1977 = vlaneseq
      %v1978 = vshrl.u32 %v1977, 7
      %v1979 = vsub.s32 %v1976, %v1978
      %v1980 = vrot.slane %v1973, %v1979
      %1981 = vrot.lane.b32.xlu0 %v844, 48
      %v1982 = vpop.permute.xlu0 %1981
      %1983 = vrot.lane.b32.xlu0 %v852, 48
      %v1984 = vpop.permute.xlu0 %1983
      %1985 = vrot.lane.b32.xlu0 %v869, 48
      %v1986 = vpop.permute.xlu0 %1985
      %1987 = vrot.lane.b32.xlu0 %v877, 48
      %v1988 = vpop.permute.xlu0 %1987
      %1989 = vrot.lane.b32.xlu0 %v894, 48
      %v1990 = vpop.permute.xlu0 %1989
      %1991 = vrot.lane.b32.xlu0 %v902, 48
      %v1992 = vpop.permute.xlu0 %1991
      %1993 = vrot.lane.b32.xlu0 %v919, 48
      %v1994 = vpop.permute.xlu0 %1993
      %1995 = vrot.lane.b32.xlu0 %v927, 48
      %v1996 = vpop.permute.xlu0 %1995
      %1997 = vrot.lane.b32.xlu0 %v944, 48
      %v1998 = vpop.permute.xlu0 %1997
      %1999 = vrot.lane.b32.xlu0 %v952, 48
      %v2000 = vpop.permute.xlu0 %1999
      %2001 = vrot.lane.b32.xlu0 %v969, 48
      %v2002 = vpop.permute.xlu0 %2001
      %2003 = vrot.lane.b32.xlu0 %v977, 48
      %v2004 = vpop.permute.xlu0 %2003
      %2005 = vrot.lane.b32.xlu0 %v994, 48
      %v2006 = vpop.permute.xlu0 %2005
      %2007 = vrot.lane.b32.xlu0 %v1002, 48
      %v2008 = vpop.permute.xlu0 %2007
      %2009 = vrot.lane.b32.xlu0 %v1019, 48
      %v2010 = vpop.permute.xlu0 %2009
      %2011 = vrot.lane.b32.xlu0 %v1027, 48
      %v2012 = vpop.permute.xlu0 %2011
      %2013 = vrot.lane.b32.xlu0 %v1044, 48
      %v2014 = vpop.permute.xlu0 %2013
      %2015 = vrot.lane.b32.xlu0 %v1052, 48
      %v2016 = vpop.permute.xlu0 %2015
      %2017 = vrot.lane.b32.xlu0 %v1069, 48
      %v2018 = vpop.permute.xlu0 %2017
      %2019 = vrot.lane.b32.xlu0 %v1077, 48
      %v2020 = vpop.permute.xlu0 %2019
      %2021 = vrot.lane.b32.xlu0 %v1695, 48
      %v2022 = vpop.permute.xlu0 %2021
      %2023 = vrot.lane.b32.xlu0 %v1703, 48
      %v2024 = vpop.permute.xlu0 %2023
      %2025 = vrot.lane.b32.xlu0 %v1972, 48
      %v2026 = vpop.permute.xlu0 %2025
      %2027 = vrot.lane.b32.xlu0 %v1980, 48
      %v2028 = vpop.permute.xlu0 %2027
      %v2054 = vunpack.c.l.s4 1983009808
      %v2055 = vunpack.c.0.s8 %v2054
      %v2056 = vlaneseq
      %v2057 = vshrl.u32 %v2056, 7
      %v2058 = vsub.s32 %v2055, %v2057
      %v2059 = vrot.slane %v777, %v2058
      %v2060 = vcombine.low %v1980, %v2059
      %v2061 = vrot.slane %v1972, 1
      %v2062 = vrot.slane %v2060, 1
      %v2063 = vsel %vm1198, %v2061, %v2062
      %2064 = vrot.lane.b32.xlu0 %v1207, 56
      %v2065 = vpop.permute.xlu0 %2064
      %2066 = vrot.lane.b32.xlu0 %v1206, 56
      %v2067 = vpop.permute.xlu0 %2066
      %2068 = vrot.lane.b32.xlu0 %v1210, 56
      %v2069 = vpop.permute.xlu0 %2068
      %2070 = vrot.lane.b32.xlu0 %v1209, 56
      %v2071 = vpop.permute.xlu0 %2070
      %2072 = vrot.lane.b32.xlu0 %v1213, 56
      %v2073 = vpop.permute.xlu0 %2072
      %2074 = vrot.lane.b32.xlu0 %v1212, 56
      %v2075 = vpop.permute.xlu0 %2074
      %2076 = vrot.lane.b32.xlu0 %v1216, 56
      %v2077 = vpop.permute.xlu0 %2076
      %2078 = vrot.lane.b32.xlu0 %v1215, 56
      %v2079 = vpop.permute.xlu0 %2078
      %2080 = vrot.lane.b32.xlu0 %v1219, 56
      %v2081 = vpop.permute.xlu0 %2080
      %2082 = vrot.lane.b32.xlu0 %v1218, 56
      %v2083 = vpop.permute.xlu0 %2082
      %2084 = vrot.lane.b32.xlu0 %v1222, 56
      %v2085 = vpop.permute.xlu0 %2084
      %2086 = vrot.lane.b32.xlu0 %v1221, 56
      %v2087 = vpop.permute.xlu0 %2086
      %2088 = vrot.lane.b32.xlu0 %v1225, 56
      %v2089 = vpop.permute.xlu0 %2088
      %2090 = vrot.lane.b32.xlu0 %v1224, 56
      %v2091 = vpop.permute.xlu0 %2090
      %2092 = vrot.lane.b32.xlu0 %v1228, 56
      %v2093 = vpop.permute.xlu0 %2092
      %2094 = vrot.lane.b32.xlu0 %v1227, 56
      %v2095 = vpop.permute.xlu0 %2094
      %2096 = vrot.lane.b32.xlu0 %v1231, 56
      %v2097 = vpop.permute.xlu0 %2096
      %2098 = vrot.lane.b32.xlu0 %v1230, 56
      %v2099 = vpop.permute.xlu0 %2098
      %2100 = vrot.lane.b32.xlu0 %v1234, 56
      %v2101 = vpop.permute.xlu0 %2100
      %2102 = vrot.lane.b32.xlu0 %v1233, 56
      %v2103 = vpop.permute.xlu0 %2102
      %2104 = vrot.lane.b32.xlu0 %v1786, 56
      %v2105 = vpop.permute.xlu0 %2104
      %2106 = vrot.lane.b32.xlu0 %v1785, 56
      %v2107 = vpop.permute.xlu0 %2106
      %2108 = vrot.lane.b32.xlu0 %v2063, 56
      %v2109 = vpop.permute.xlu0 %2108
      %2110 = vrot.lane.b32.xlu0 %v2062, 56
      %v2111 = vpop.permute.xlu0 %2110
      %v2136 = vcombine.low %v760, %v768
      %v2137 = vcombine.low %v767, %v769
      %v2139 = vunpack.c.l.s4 1983009808
      %v2140 = vunpack.c.0.s8 %v2139
      %v2141 = vlaneseq
      %v2142 = vshrl.u32 %v2141, 7
      %v2143 = vsub.s32 %v2140, %v2142
      %v2144 = vrot.slane %v2136, %v2143
      %v2146 = vunpack.c.l.s4 1983009808
      %v2147 = vunpack.c.0.s8 %v2146
      %v2148 = vlaneseq
      %v2149 = vshrl.u32 %v2148, 7
      %v2150 = vsub.s32 %v2147, %v2149
      %v2151 = vrot.slane %v2137, %v2150
      %v2152 = vcombine.low %v2144, %v2151
      %v2153 = vcombine.low %v776, %v777
      %v2155 = vunpack.c.l.s4 1983009808
      %v2156 = vunpack.c.0.s8 %v2155
      %v2157 = vlaneseq
      %v2158 = vshrl.u32 %v2157, 7
      %v2159 = vsub.s32 %v2156, %v2158
      %v2160 = vrot.slane %v2153, %v2159
      %2161 = vrot.lane.b32.xlu0 %v1373, 64
      %v2162 = vpop.permute.xlu0 %2161
      %2163 = vrot.lane.b32.xlu0 %v1381, 64
      %v2164 = vpop.permute.xlu0 %2163
      %2165 = vrot.lane.b32.xlu0 %v1398, 64
      %v2166 = vpop.permute.xlu0 %2165
      %2167 = vrot.lane.b32.xlu0 %v1406, 64
      %v2168 = vpop.permute.xlu0 %2167
      %2169 = vrot.lane.b32.xlu0 %v1423, 64
      %v2170 = vpop.permute.xlu0 %2169
      %2171 = vrot.lane.b32.xlu0 %v1431, 64
      %v2172 = vpop.permute.xlu0 %2171
      %2173 = vrot.lane.b32.xlu0 %v1448, 64
      %v2174 = vpop.permute.xlu0 %2173
      %2175 = vrot.lane.b32.xlu0 %v1456, 64
      %v2176 = vpop.permute.xlu0 %2175
      %2177 = vrot.lane.b32.xlu0 %v1473, 64
      %v2178 = vpop.permute.xlu0 %2177
      %2179 = vrot.lane.b32.xlu0 %v1481, 64
      %v2180 = vpop.permute.xlu0 %2179
      %2181 = vrot.lane.b32.xlu0 %v1498, 64
      %v2182 = vpop.permute.xlu0 %2181
      %2183 = vrot.lane.b32.xlu0 %v1506, 64
      %v2184 = vpop.permute.xlu0 %2183
      %2185 = vrot.lane.b32.xlu0 %v1523, 64
      %v2186 = vpop.permute.xlu0 %2185
      %2187 = vrot.lane.b32.xlu0 %v1531, 64
      %v2188 = vpop.permute.xlu0 %2187
      %2189 = vrot.lane.b32.xlu0 %v1548, 64
      %v2190 = vpop.permute.xlu0 %2189
      %2191 = vrot.lane.b32.xlu0 %v1556, 64
      %v2192 = vpop.permute.xlu0 %2191
      %2193 = vrot.lane.b32.xlu0 %v1573, 64
      %v2194 = vpop.permute.xlu0 %2193
      %2195 = vrot.lane.b32.xlu0 %v1581, 64
      %v2196 = vpop.permute.xlu0 %2195
      %2197 = vrot.lane.b32.xlu0 %v1598, 64
      %v2198 = vpop.permute.xlu0 %2197
      %2199 = vrot.lane.b32.xlu0 %v1606, 64
      %v2200 = vpop.permute.xlu0 %2199
      %2201 = vrot.lane.b32.xlu0 %v1875, 64
      %v2202 = vpop.permute.xlu0 %2201
      %2203 = vrot.lane.b32.xlu0 %v1883, 64
      %v2204 = vpop.permute.xlu0 %2203
      %2205 = vrot.lane.b32.xlu0 %v2152, 64
      %v2206 = vpop.permute.xlu0 %2205
      %2207 = vrot.lane.b32.xlu0 %v2160, 64
      %v2208 = vpop.permute.xlu0 %2207
      %vm2233 = vcmask 64512
      %v2234 = vsel %vm2233, %v794, %v1236
      %v2235 = vsel %vm2233, %v802, %v1238
      %v2236 = vsel %vm2233, %v819, %v1240
      %v2237 = vsel %vm2233, %v827, %v1242
      %v2238 = vsel %vm2233, %v844, %v1244
      %v2239 = vsel %vm2233, %v852, %v1246
      %v2240 = vsel %vm2233, %v869, %v1248
      %v2241 = vsel %vm2233, %v877, %v1250
      %v2242 = vsel %vm2233, %v894, %v1252
      %v2243 = vsel %vm2233, %v902, %v1254
      %v2244 = vsel %vm2233, %v919, %v1256
      %v2245 = vsel %vm2233, %v927, %v1258
      %v2246 = vsel %vm2233, %v944, %v1260
      %v2247 = vsel %vm2233, %v952, %v1262
      %v2248 = vsel %vm2233, %v969, %v1264
      %v2249 = vsel %vm2233, %v977, %v1266
      %v2250 = vsel %vm2233, %v994, %v1268
      %v2251 = vsel %vm2233, %v1002, %v1270
      %v2252 = vsel %vm2233, %v1019, %v1272
      %v2253 = vsel %vm2233, %v1027, %v1274
      %v2254 = vsel %vm2233, %v1044, %v1276
      %v2255 = vsel %vm2233, %v1052, %v1278
      %v2256 = vsel %vm2233, %v1069, %v1280
      %v2257 = vsel %vm2233, %v1077, %v1282
      %vm2258 = vcmask 130048
      %v2259 = vsel %vm2258, %v2234, %v1608
      %v2260 = vsel %vm2258, %v2235, %v1610
      %v2261 = vsel %vm2258, %v2236, %v1612
      %v2262 = vsel %vm2258, %v2237, %v1614
      %v2263 = vsel %vm2258, %v2238, %v1616
      %v2264 = vsel %vm2258, %v2239, %v1618
      %v2265 = vsel %vm2258, %v2240, %v1620
      %v2266 = vsel %vm2258, %v2241, %v1622
      %v2267 = vsel %vm2258, %v2242, %v1624
      %v2268 = vsel %vm2258, %v2243, %v1626
      %v2269 = vsel %vm2258, %v2244, %v1628
      %v2270 = vsel %vm2258, %v2245, %v1630
      %v2271 = vsel %vm2258, %v2246, %v1632
      %v2272 = vsel %vm2258, %v2247, %v1634
      %v2273 = vsel %vm2258, %v2248, %v1636
      %v2274 = vsel %vm2258, %v2249, %v1638
      %v2275 = vsel %vm2258, %v2250, %v1640
      %v2276 = vsel %vm2258, %v2251, %v1642
      %v2277 = vsel %vm2258, %v2252, %v1644
      %v2278 = vsel %vm2258, %v2253, %v1646
      %v2279 = vsel %vm2258, %v2254, %v1648
      %v2280 = vsel %vm2258, %v2255, %v1650
      %v2281 = vsel %vm2258, %v2256, %v1652
      %v2282 = vsel %vm2258, %v2257, %v1654
      %vm2283 = vcmask 195584
      %v2284 = vsel %vm2283, %v2259, %v1705
      %v2285 = vsel %vm2283, %v2260, %v1707
      %v2286 = vsel %vm2283, %v2261, %v1709
      %v2287 = vsel %vm2283, %v2262, %v1711
      %v2288 = vsel %vm2283, %v2263, %v1713
      %v2289 = vsel %vm2283, %v2264, %v1715
      %v2290 = vsel %vm2283, %v2265, %v1717
      %v2291 = vsel %vm2283, %v2266, %v1719
      %v2292 = vsel %vm2283, %v2267, %v1721
      %v2293 = vsel %vm2283, %v2268, %v1723
      %v2294 = vsel %vm2283, %v2269, %v1725
      %v2295 = vsel %vm2283, %v2270, %v1727
      %v2296 = vsel %vm2283, %v2271, %v1729
      %v2297 = vsel %vm2283, %v2272, %v1731
      %v2298 = vsel %vm2283, %v2273, %v1733
      %v2299 = vsel %vm2283, %v2274, %v1735
      %v2300 = vsel %vm2283, %v2275, %v1737
      %v2301 = vsel %vm2283, %v2276, %v1739
      %v2302 = vsel %vm2283, %v2277, %v1741
      %v2303 = vsel %vm2283, %v2278, %v1743
      %v2304 = vsel %vm2283, %v2279, %v1745
      %v2305 = vsel %vm2283, %v2280, %v1747
      %v2306 = vsel %vm2283, %v2281, %v1749
      %v2307 = vsel %vm2283, %v2282, %v1751
      %vm2308 = vcmask 261120
      %v2309 = vsel %vm2308, %v2284, %v1788
      %v2310 = vsel %vm2308, %v2285, %v1790
      %v2311 = vsel %vm2308, %v2286, %v1792
      %v2312 = vsel %vm2308, %v2287, %v1794
      %v2313 = vsel %vm2308, %v2288, %v1796
      %v2314 = vsel %vm2308, %v2289, %v1798
      %v2315 = vsel %vm2308, %v2290, %v1800
      %v2316 = vsel %vm2308, %v2291, %v1802
      %v2317 = vsel %vm2308, %v2292, %v1804
      %v2318 = vsel %vm2308, %v2293, %v1806
      %v2319 = vsel %vm2308, %v2294, %v1808
      %v2320 = vsel %vm2308, %v2295, %v1810
      %v2321 = vsel %vm2308, %v2296, %v1812
      %v2322 = vsel %vm2308, %v2297, %v1814
      %v2323 = vsel %vm2308, %v2298, %v1816
      %v2324 = vsel %vm2308, %v2299, %v1818
      %v2325 = vsel %vm2308, %v2300, %v1820
      %v2326 = vsel %vm2308, %v2301, %v1822
      %v2327 = vsel %vm2308, %v2302, %v1824
      %v2328 = vsel %vm2308, %v2303, %v1826
      %v2329 = vsel %vm2308, %v2304, %v1828
      %v2330 = vsel %vm2308, %v2305, %v1830
      %v2331 = vsel %vm2308, %v2306, %v1832
      %v2332 = vsel %vm2308, %v2307, %v1834
      %vm2333 = vcmask 326656
      %v2334 = vsel %vm2333, %v2309, %v1885
      %v2335 = vsel %vm2333, %v2310, %v1887
      %v2336 = vsel %vm2333, %v2311, %v1889
      %v2337 = vsel %vm2333, %v2312, %v1891
      %v2338 = vsel %vm2333, %v2313, %v1893
      %v2339 = vsel %vm2333, %v2314, %v1895
      %v2340 = vsel %vm2333, %v2315, %v1897
      %v2341 = vsel %vm2333, %v2316, %v1899
      %v2342 = vsel %vm2333, %v2317, %v1901
      %v2343 = vsel %vm2333, %v2318, %v1903
      %v2344 = vsel %vm2333, %v2319, %v1905
      %v2345 = vsel %vm2333, %v2320, %v1907
      %v2346 = vsel %vm2333, %v2321, %v1909
      %v2347 = vsel %vm2333, %v2322, %v1911
      %v2348 = vsel %vm2333, %v2323, %v1913
      %v2349 = vsel %vm2333, %v2324, %v1915
      %v2350 = vsel %vm2333, %v2325, %v1917
      %v2351 = vsel %vm2333, %v2326, %v1919
      %v2352 = vsel %vm2333, %v2327, %v1921
      %v2353 = vsel %vm2333, %v2328, %v1923
      %v2354 = vsel %vm2333, %v2329, %v1925
      %v2355 = vsel %vm2333, %v2330, %v1927
      %v2356 = vsel %vm2333, %v2331, %v1929
      %v2357 = vsel %vm2333, %v2332, %v1931
      %vm2358 = vcmask 392192
      %v2359 = vsel %vm2358, %v2334, %v1982
      %v2360 = vsel %vm2358, %v2335, %v1984
      %v2361 = vsel %vm2358, %v2336, %v1986
      %v2362 = vsel %vm2358, %v2337, %v1988
      %v2363 = vsel %vm2358, %v2338, %v1990
      %v2364 = vsel %vm2358, %v2339, %v1992
      %v2365 = vsel %vm2358, %v2340, %v1994
      %v2366 = vsel %vm2358, %v2341, %v1996
      %v2367 = vsel %vm2358, %v2342, %v1998
      %v2368 = vsel %vm2358, %v2343, %v2000
      %v2369 = vsel %vm2358, %v2344, %v2002
      %v2370 = vsel %vm2358, %v2345, %v2004
      %v2371 = vsel %vm2358, %v2346, %v2006
      %v2372 = vsel %vm2358, %v2347, %v2008
      %v2373 = vsel %vm2358, %v2348, %v2010
      %v2374 = vsel %vm2358, %v2349, %v2012
      %v2375 = vsel %vm2358, %v2350, %v2014
      %v2376 = vsel %vm2358, %v2351, %v2016
      %v2377 = vsel %vm2358, %v2352, %v2018
      %v2378 = vsel %vm2358, %v2353, %v2020
      %v2379 = vsel %vm2358, %v2354, %v2022
      %v2380 = vsel %vm2358, %v2355, %v2024
      %v2381 = vsel %vm2358, %v2356, %v2026
      %v2382 = vsel %vm2358, %v2357, %v2028
      %vm2383 = vcmask 457728
      %v2384 = vsel %vm2383, %v2359, %v2065
      %v2385 = vsel %vm2383, %v2360, %v2067
      %v2386 = vsel %vm2383, %v2361, %v2069
      %v2387 = vsel %vm2383, %v2362, %v2071
      %v2388 = vsel %vm2383, %v2363, %v2073
      %v2389 = vsel %vm2383, %v2364, %v2075
      %v2390 = vsel %vm2383, %v2365, %v2077
      %v2391 = vsel %vm2383, %v2366, %v2079
      %v2392 = vsel %vm2383, %v2367, %v2081
      %v2393 = vsel %vm2383, %v2368, %v2083
      %v2394 = vsel %vm2383, %v2369, %v2085
      %v2395 = vsel %vm2383, %v2370, %v2087
      %v2396 = vsel %vm2383, %v2371, %v2089
      %v2397 = vsel %vm2383, %v2372, %v2091
      %v2398 = vsel %vm2383, %v2373, %v2093
      %v2399 = vsel %vm2383, %v2374, %v2095
      %v2400 = vsel %vm2383, %v2375, %v2097
      %v2401 = vsel %vm2383, %v2376, %v2099
      %v2402 = vsel %vm2383, %v2377, %v2101
      %v2403 = vsel %vm2383, %v2378, %v2103
      %v2404 = vsel %vm2383, %v2379, %v2105
      %v2405 = vsel %vm2383, %v2380, %v2107
      %v2406 = vsel %vm2383, %v2381, %v2109
      %v2407 = vsel %vm2383, %v2382, %v2111
      %vm2408 = vcmask 523264
      %v2409 = vsel %vm2408, %v2384, %v2162
      %v2410 = vsel %vm2408, %v2385, %v2164
      %v2411 = vsel %vm2408, %v2386, %v2166
      %v2412 = vsel %vm2408, %v2387, %v2168
      %v2413 = vsel %vm2408, %v2388, %v2170
      %v2414 = vsel %vm2408, %v2389, %v2172
      %v2415 = vsel %vm2408, %v2390, %v2174
      %v2416 = vsel %vm2408, %v2391, %v2176
      %v2417 = vsel %vm2408, %v2392, %v2178
      %v2418 = vsel %vm2408, %v2393, %v2180
      %v2419 = vsel %vm2408, %v2394, %v2182
      %v2420 = vsel %vm2408, %v2395, %v2184
      %v2421 = vsel %vm2408, %v2396, %v2186
      %v2422 = vsel %vm2408, %v2397, %v2188
      %v2423 = vsel %vm2408, %v2398, %v2190
      %v2424 = vsel %vm2408, %v2399, %v2192
      %v2425 = vsel %vm2408, %v2400, %v2194
      %v2426 = vsel %vm2408, %v2401, %v2196
      %v2427 = vsel %vm2408, %v2402, %v2198
      %v2428 = vsel %vm2408, %v2403, %v2200
      %v2429 = vsel %vm2408, %v2404, %v2202
      %v2430 = vsel %vm2408, %v2405, %v2204
      %v2431 = vsel %vm2408, %v2406, %v2206
      %v2432 = vsel %vm2408, %v2407, %v2208
      %v2457 = vcombine.high %v2409, %v2409
      %v2458 = vcombine.high %v2411, %v2411
      %v2459 = vcombine.high %v2413, %v2413
      %v2460 = vcombine.high %v2415, %v2415
      %v2461 = vcombine.high %v2417, %v2417
      %v2462 = vcombine.high %v2419, %v2419
      %v2463 = vcombine.high %v2421, %v2421
      %v2464 = vcombine.high %v2423, %v2423
      %v2465 = vcombine.high %v2425, %v2425
      %v2466 = vcombine.high %v2427, %v2427
      %v2467 = vcombine.high %v2429, %v2429
      %v2468 = vcombine.high %v2431, %v2431
      %v2469 = vld [vmem:[%s3] sm:$0xff]
      %v2470 = vld [vmem:[%s3 + $0x8] sm:$0xff]
      %v2471 = vld [vmem:[%s3 + $0x10] sm:$0xff]
      %v2472 = vld [vmem:[%s3 + $0x18] sm:$0xff]
      %v2473 = vld [vmem:[%s3 + $0x20] sm:$0xff]
      %v2474 = vld [vmem:[%s3 + $0x28] sm:$0xff]
      %v2475 = vld [vmem:[%s3 + $0x30] sm:$0xff]
      %v2476 = vld [vmem:[%s3 + $0x38] sm:$0xff]
      %v2477 = vld [vmem:[%s3 + $0x40] sm:$0xff]
      %v2478 = vcombine.low %v2409, %v2457
      %v2479 = vcombine.low %v2410, %v2411
      %v2480 = vcombine.low %v2458, %v2412
      %v2481 = vcombine.low %v2413, %v2459
      %v2482 = vcombine.low %v2414, %v2415
      %v2483 = vcombine.low %v2460, %v2416
      %v2484 = vcombine.low %v2417, %v2461
      %v2485 = vcombine.low %v2418, %v2419
      %v2486 = vcombine.low %v2462, %v2420
      %v2487 = vcombine.low %v2421, %v2463
      %v2488 = vcombine.low %v2422, %v2423
      %v2489 = vcombine.low %v2464, %v2424
      %v2490 = vcombine.low %v2425, %v2465
      %v2491 = vcombine.low %v2426, %v2427
      %v2492 = vcombine.low %v2466, %v2428
      %v2493 = vcombine.low %v2429, %v2467
      %v2494 = vcombine.low %v2430, %v2431
      %v2495 = vcombine.low %v2468, %v2432
      %vm2496 = vcmask 588800
      %v2497 = vsel %vm2496, %v2478, 0
      %v2499 = vsel %vm2496, %v2479, 0
      %v2501 = vsel %vm2496, %v2480, 0
      %v2503 = vsel %vm2496, %v2481, 0
      %v2505 = vsel %vm2496, %v2482, 0
      %v2507 = vsel %vm2496, %v2483, 0
      %v2509 = vsel %vm2496, %v2484, 0
      %v2511 = vsel %vm2496, %v2485, 0
      %v2513 = vsel %vm2496, %v2486, 0
      %v2515 = vsel %vm2496, %v2487, 0
      %v2517 = vsel %vm2496, %v2488, 0
      %v2519 = vsel %vm2496, %v2489, 0
      %v2521 = vsel %vm2496, %v2490, 0
      %v2523 = vsel %vm2496, %v2491, 0
      %v2525 = vsel %vm2496, %v2492, 0
      %v2527 = vsel %vm2496, %v2493, 0
      %v2529 = vsel %vm2496, %v2494, 0
      %v2531 = vsel %vm2496, %v2495, 0
      %2533 = vmatprep.subr.mxu0 0.0
      %2534 = vmatpush1.msra.mxu0 %v2469
      %2535 = vmatprep.subr.mxu0 0.0
      %2536 = vmatpush1.msra.mxu0 %v2470
      %2537 = vmatprep.subr.mxu0 0.0
      %2538 = vmatpush1.msra.mxu0 %v2471
      %2539 = vmatprep.subr.mxu0 0.0
      %2540 = vmatpush1.msra.mxu0 %v2472
      %2541 = vmatprep.subr.mxu0 0.0
      %2542 = vmatpush1.msra.mxu0 %v2473
      %2543 = vmatprep.subr.mxu0 0.0
      %2544 = vmatpush1.msra.mxu0 %v2474
      %2545 = vmatprep.subr.mxu0 0.0
      %2546 = vmatpush1.msra.mxu0 %v2475
      %2547 = vmatprep.subr.mxu0 0.0
      %2548 = vmatpush1.msra.mxu0 %v2476
      %2549 = vmatprep.subr.mxu0 0.0
      %2550 = vmatpush1.msra.mxu0 %v2477
      %2551 = vmatprep.subr.mxu0 0.0
      %2552 = vmatpush1.msra.mxu0 0.0
      %2553 = vmatprep.subr.mxu0 0.0
      %2554 = vmatpush1.msra.mxu0 0.0
      %2555 = vmatprep.subr.mxu0 0.0
      %2556 = vmatpush1.msra.mxu0 0.0
      %2557 = vmatprep.subr.mxu0 0.0
      %2558 = vmatpush1.msra.mxu0 0.0
      %2559 = vmatprep.subr.mxu0 0.0
      %2560 = vmatpush1.msra.mxu0 0.0
      %2561 = vmatprep.subr.mxu0 0.0
      %2562 = vmatpush1.msra.mxu0 0.0
      %2563 = vmatprep.subr.mxu0 0.0
      %2564 = vmatpush1.msra.mxu0 0.0
      %2565 = vmatprep.subr.mxu0 0.0
      %2566 = vmatpush1.msra.mxu0 0.0
      %2567 = vmatprep.subr.mxu0 0.0
      %2568 = vmatpush1.msra.mxu0 0.0
      %2569 = vmatprep.subr.mxu0 0.0
      %2570 = vmatpush1.msra.mxu0 0.0
      %2571 = vmatprep.subr.mxu0 0.0
      %2572 = vmatpush1.msra.mxu0 0.0
      %2573 = vmatprep.subr.mxu0 0.0
      %2574 = vmatpush1.msra.mxu0 0.0
      %2575 = vmatprep.subr.mxu0 0.0
      %2576 = vmatpush1.msra.mxu0 0.0
      %2577 = vmatprep.subr.mxu0 0.0
      %2578 = vmatpush1.msra.mxu0 0.0
      %2579 = vmatprep.subr.mxu0 0.0
      %2580 = vmatpush1.msra.mxu0 0.0
      %2581 = vmatprep.subr.mxu0 0.0
      %2582 = vmatpush1.msra.mxu0 0.0
      %2583 = vmatprep.subr.mxu0 0.0
      %2584 = vmatpush1.msra.mxu0 0.0
      %2585 = vmatprep.subr.mxu0 0.0
      %2586 = vmatpush1.msra.mxu0 0.0
      %2587 = vmatprep.subr.mxu0 0.0
      %2588 = vmatpush1.msra.mxu0 0.0
      %2589 = vmatprep.subr.mxu0 0.0
      %2590 = vmatpush1.msra.mxu0 0.0
      %2591 = vmatprep.subr.mxu0 0.0
      %2592 = vmatpush1.msra.mxu0 0.0
      %2593 = vmatprep.subr.mxu0 0.0
      %2594 = vmatpush1.msra.mxu0 0.0
      %2595 = vmatprep.subr.mxu0 0.0
      %2596 = vmatpush1.msra.mxu0 0.0
      %2597 = vmatprep.mubr.f32.mxu0 0.0
      %2598 = vmatmul.mubr.f32.gmra.mrb[0].mxu0 %v2497
      %v2599 = vpop.f32.mrb[0].mxu0
      %v2600 = vadd.f32 0.0, %v2599
      %v2601 = vpop.f32.mrb[0].mxu0
      %2602 = vmatprep.mubr.f32.mxu0 0.0
      %2603 = vmatmul.mubr.f32.gmra.mrb[0].mxu0 %v2499
      %v2604 = vpop.f32.mrb[0].mxu0
      %v2605 = vadd.f32 0.0, %v2604
      %v2606 = vpop.f32.mrb[0].mxu0
      %2607 = vmatprep.mubr.f32.mxu0 0.0
      %2608 = vmatmul.mubr.f32.gmra.mrb[0].mxu0 %v2501
      %v2609 = vpop.f32.mrb[0].mxu0
      %v2610 = vadd.f32 0.0, %v2609
      %v2611 = vpop.f32.mrb[0].mxu0
      %2612 = vmatprep.mubr.f32.mxu0 0.0
      %2613 = vmatmul.mubr.f32.gmra.mrb[0].mxu0 %v2503
      %v2614 = vpop.f32.mrb[0].mxu0
      %v2615 = vadd.f32 0.0, %v2614
      %v2616 = vpop.f32.mrb[0].mxu0
      %2617 = vmatprep.mubr.f32.mxu0 0.0
      %2618 = vmatmul.mubr.f32.gmra.mrb[0].mxu0 %v2505
      %v2619 = vpop.f32.mrb[0].mxu0
      %v2620 = vadd.f32 0.0, %v2619
      %v2621 = vpop.f32.mrb[0].mxu0
      %2622 = vmatprep.mubr.f32.mxu0 0.0
      %2623 = vmatmul.mubr.f32.gmra.mrb[0].mxu0 %v2507
      %v2624 = vpop.f32.mrb[0].mxu0
      %v2625 = vadd.f32 0.0, %v2624
      %v2626 = vpop.f32.mrb[0].mxu0
      %2627 = vmatprep.mubr.f32.mxu0 0.0
      %2628 = vmatmul.mubr.f32.gmra.mrb[0].mxu0 %v2509
      %v2629 = vpop.f32.mrb[0].mxu0
      %v2630 = vadd.f32 0.0, %v2629
      %v2631 = vpop.f32.mrb[0].mxu0
      %2632 = vmatprep.mubr.f32.mxu0 0.0
      %2633 = vmatmul.mubr.f32.gmra.mrb[0].mxu0 %v2511
      %v2634 = vpop.f32.mrb[0].mxu0
      %v2635 = vadd.f32 0.0, %v2634
      %v2636 = vpop.f32.mrb[0].mxu0
      %2637 = vmatprep.mubr.f32.mxu0 0.0
      %2638 = vmatmul.mubr.f32.gmra.mrb[0].mxu0 %v2513
      %v2639 = vpop.f32.mrb[0].mxu0
      %v2640 = vadd.f32 0.0, %v2639
      %v2641 = vpop.f32.mrb[0].mxu0
      %2642 = vmatprep.mubr.f32.mxu0 0.0
      %2643 = vmatmul.mubr.f32.gmra.mrb[0].mxu0 %v2515
      %v2644 = vpop.f32.mrb[0].mxu0
      %v2645 = vadd.f32 0.0, %v2644
      %v2646 = vpop.f32.mrb[0].mxu0
      %2647 = vmatprep.mubr.f32.mxu0 0.0
      %2648 = vmatmul.mubr.f32.gmra.mrb[0].mxu0 %v2517
      %v2649 = vpop.f32.mrb[0].mxu0
      %v2650 = vadd.f32 0.0, %v2649
      %v2651 = vpop.f32.mrb[0].mxu0
      %2652 = vmatprep.mubr.f32.mxu0 0.0
      %2653 = vmatmul.mubr.f32.gmra.mrb[0].mxu0 %v2519
      %v2654 = vpop.f32.mrb[0].mxu0
      %v2655 = vadd.f32 0.0, %v2654
      %v2656 = vpop.f32.mrb[0].mxu0
      %2657 = vmatprep.mubr.f32.mxu0 0.0
      %2658 = vmatmul.mubr.f32.gmra.mrb[0].mxu0 %v2521
      %v2659 = vpop.f32.mrb[0].mxu0
      %v2660 = vadd.f32 0.0, %v2659
      %v2661 = vpop.f32.mrb[0].mxu0
      %2662 = vmatprep.mubr.f32.mxu0 0.0
      %2663 = vmatmul.mubr.f32.gmra.mrb[0].mxu0 %v2523
      %v2664 = vpop.f32.mrb[0].mxu0
      %v2665 = vadd.f32 0.0, %v2664
      %v2666 = vpop.f32.mrb[0].mxu0
      %2667 = vmatprep.mubr.f32.mxu0 0.0
      %2668 = vmatmul.mubr.f32.gmra.mrb[0].mxu0 %v2525
      %v2669 = vpop.f32.mrb[0].mxu0
      %v2670 = vadd.f32 0.0, %v2669
      %v2671 = vpop.f32.mrb[0].mxu0
      %2672 = vmatprep.mubr.f32.mxu0 0.0
      %2673 = vmatmul.mubr.f32.gmra.mrb[0].mxu0 %v2527
      %v2674 = vpop.f32.mrb[0].mxu0
      %v2675 = vadd.f32 0.0, %v2674
      %v2676 = vpop.f32.mrb[0].mxu0
      %2677 = vmatprep.mubr.f32.mxu0 0.0
      %2678 = vmatmul.mubr.f32.gmra.mrb[0].mxu0 %v2529
      %v2679 = vpop.f32.mrb[0].mxu0
      %v2680 = vadd.f32 0.0, %v2679
      %v2681 = vpop.f32.mrb[0].mxu0
      %2682 = vmatprep.mubr.f32.mxu0 0.0
      %2683 = vmatmul.mubr.f32.gmra.mrb[0].mxu0 %v2531
      %v2684 = vpop.f32.mrb[0].mxu0
      %v2685 = vadd.f32 0.0, %v2684
      %v2686 = vpop.f32.mrb[0].mxu0
      %2687 = vdwg.mxu0
      %2688 = vst.msk [vmem:[%s222] sm:$0xff] %vm2233, %v2600
      %2689 = vst.msk [vmem:[%s222 + $0x8] sm:$0xff] %vm2233, %v2605
      %2690 = vst.msk [vmem:[%s222 + $0x10] sm:$0xff] %vm2233, %v2610
      %2691 = vst.msk [vmem:[%s222 + $0x18] sm:$0xff] %vm2233, %v2615
      %2692 = vst.msk [vmem:[%s222 + $0x20] sm:$0xff] %vm2233, %v2620
      %2693 = vst.msk [vmem:[%s222 + $0x28] sm:$0xff] %vm2233, %v2625
      %2694 = vst.msk [vmem:[%s222 + $0x30] sm:$0xff] %vm2233, %v2630
      %2695 = vst.msk [vmem:[%s222 + $0x38] sm:$0xff] %vm2233, %v2635
      %2696 = vst.msk [vmem:[%s222 + $0x40] sm:$0xff] %vm2233, %v2640
      %2697 = vst.msk [vmem:[%s222 + $0x48] sm:$0xff] %vm2233, %v2645
      %2698 = vst.msk [vmem:[%s222 + $0x50] sm:$0xff] %vm2233, %v2650
      %2699 = vst.msk [vmem:[%s222 + $0x58] sm:$0xff] %vm2233, %v2655
      %2700 = vst.msk [vmem:[%s222 + $0x60] sm:$0xff] %vm2233, %v2660
      %2701 = vst.msk [vmem:[%s222 + $0x68] sm:$0xff] %vm2233, %v2665
      %2702 = vst.msk [vmem:[%s222 + $0x70] sm:$0xff] %vm2233, %v2670
      %2703 = vst.msk [vmem:[%s222 + $0x78] sm:$0xff] %vm2233, %v2675
      %2704 = vst.msk [vmem:[%s222 + $0x80] sm:$0xff] %vm2233, %v2680
      %2705 = vst.msk [vmem:[%s222 + $0x88] sm:$0xff] %vm2233, %v2685
      %p2706 = scmp.eq.s32.totalorder %s17, 0
      // Predicated region
      $region37: #{block_forward.4} parent=35 // pred_check
        %p2707 = pneg %p2706
      $region38: #{block_forward.4} parent=35 // pred_check_branch
        %2709 = sbr.rel (%p2707) target = $region40
      $region39: #{block_forward.4} parent=35 // pred_region
        %vm2710 = vcmask 58368
        %2711 = vst.msk [vmem:[%s5] sm:$0x3] %vm2710, 0.0
      $region40: #{block_forward.4} parent=35 // pred_fallthru
        _
      %v2712 = vsel %vm2233, %v2600, 0.0
      %v2713 = vsel %vm2233, %v2605, 0.0
      %v2714 = vadd.f32 %v2712, %v2713
      %v2715 = vsel %vm2233, %v2610, 0.0
      %v2716 = vadd.f32 %v2714, %v2715
      %v2717 = vsel %vm2233, %v2615, 0.0
      %v2718 = vadd.f32 %v2716, %v2717
      %v2719 = vsel %vm2233, %v2620, 0.0
      %v2720 = vadd.f32 %v2718, %v2719
      %v2721 = vsel %vm2233, %v2625, 0.0
      %v2722 = vadd.f32 %v2720, %v2721
      %v2723 = vsel %vm2233, %v2630, 0.0
      %v2724 = vadd.f32 %v2722, %v2723
      %v2725 = vsel %vm2233, %v2635, 0.0
      %v2726 = vadd.f32 %v2724, %v2725
      %v2727 = vsel %vm2233, %v2640, 0.0
      %v2728 = vadd.f32 %v2726, %v2727
      %v2729 = vsel %vm2233, %v2645, 0.0
      %v2730 = vadd.f32 %v2728, %v2729
      %v2731 = vsel %vm2233, %v2650, 0.0
      %v2732 = vadd.f32 %v2730, %v2731
      %v2733 = vsel %vm2233, %v2655, 0.0
      %v2734 = vadd.f32 %v2732, %v2733
      %v2735 = vsel %vm2233, %v2660, 0.0
      %v2736 = vadd.f32 %v2734, %v2735
      %v2737 = vsel %vm2233, %v2665, 0.0
      %v2738 = vadd.f32 %v2736, %v2737
      %v2739 = vsel %vm2233, %v2670, 0.0
      %v2740 = vadd.f32 %v2738, %v2739
      %v2741 = vsel %vm2233, %v2675, 0.0
      %v2742 = vadd.f32 %v2740, %v2741
      %v2743 = vsel %vm2233, %v2680, 0.0
      %v2744 = vadd.f32 %v2742, %v2743
      %v2745 = vsel %vm2233, %v2685, 0.0
      %v2746 = vadd.f32 %v2744, %v2745
      %v2747 = vrot.slane %v2746, 4
      %v2748 = vadd.f32 %v2746, %v2747
      %v2749 = vrot.slane %v2748, 2
      %v2750 = vadd.f32 %v2748, %v2749
      %v2751 = vrot.slane %v2750, 1
      %v2752 = vadd.f32 %v2750, %v2751
      %v2753 = vmul.f32 %v2600, %v2600
      %v2754 = vmul.f32 %v2605, %v2605
      %v2755 = vmul.f32 %v2610, %v2610
      %v2756 = vmul.f32 %v2615, %v2615
      %v2757 = vmul.f32 %v2620, %v2620
      %v2758 = vmul.f32 %v2625, %v2625
      %v2759 = vmul.f32 %v2630, %v2630
      %v2760 = vmul.f32 %v2635, %v2635
      %v2761 = vmul.f32 %v2640, %v2640
      %v2762 = vmul.f32 %v2645, %v2645
      %v2763 = vmul.f32 %v2650, %v2650
      %v2764 = vmul.f32 %v2655, %v2655
      %v2765 = vmul.f32 %v2660, %v2660
      %v2766 = vmul.f32 %v2665, %v2665
      %v2767 = vmul.f32 %v2670, %v2670
      %v2768 = vmul.f32 %v2675, %v2675
      %v2769 = vmul.f32 %v2680, %v2680
      %v2770 = vmul.f32 %v2685, %v2685
      %v2771 = vsel %vm2233, %v2753, 0.0
      %v2772 = vsel %vm2233, %v2754, 0.0
      %v2773 = vadd.f32 %v2771, %v2772
      %v2774 = vsel %vm2233, %v2755, 0.0
      %v2775 = vadd.f32 %v2773, %v2774
      %v2776 = vsel %vm2233, %v2756, 0.0
      %v2777 = vadd.f32 %v2775, %v2776
      %v2778 = vsel %vm2233, %v2757, 0.0
      %v2779 = vadd.f32 %v2777, %v2778
      %v2780 = vsel %vm2233, %v2758, 0.0
      %v2781 = vadd.f32 %v2779, %v2780
      %v2782 = vsel %vm2233, %v2759, 0.0
      %v2783 = vadd.f32 %v2781, %v2782
      %v2784 = vsel %vm2233, %v2760, 0.0
      %v2785 = vadd.f32 %v2783, %v2784
      %v2786 = vsel %vm2233, %v2761, 0.0
      %v2787 = vadd.f32 %v2785, %v2786
      %v2788 = vsel %vm2233, %v2762, 0.0
      %v2789 = vadd.f32 %v2787, %v2788
      %v2790 = vsel %vm2233, %v2763, 0.0
      %v2791 = vadd.f32 %v2789, %v2790
      %v2792 = vsel %vm2233, %v2764, 0.0
      %v2793 = vadd.f32 %v2791, %v2792
      %v2794 = vsel %vm2233, %v2765, 0.0
      %v2795 = vadd.f32 %v2793, %v2794
      %v2796 = vsel %vm2233, %v2766, 0.0
      %v2797 = vadd.f32 %v2795, %v2796
      %v2798 = vsel %vm2233, %v2767, 0.0
      %v2799 = vadd.f32 %v2797, %v2798
      %v2800 = vsel %vm2233, %v2768, 0.0
      %v2801 = vadd.f32 %v2799, %v2800
      %v2802 = vsel %vm2233, %v2769, 0.0
      %v2803 = vadd.f32 %v2801, %v2802
      %v2804 = vsel %vm2233, %v2770, 0.0
      %v2805 = vadd.f32 %v2803, %v2804
      %v2806 = vrot.slane %v2805, 4
      %v2807 = vadd.f32 %v2805, %v2806
      %v2808 = vrot.slane %v2807, 2
      %v2809 = vadd.f32 %v2807, %v2808
      %v2810 = vrot.slane %v2809, 1
      %v2811 = vadd.f32 %v2809, %v2810
      %v2812 = vld [vmem:[%s5] sm:$0x3]
      %vm2813 = vcmask 1040384
      %v2814 = vsel %vm2813, %v2752, %v2811
      %v2815 = vadd.f32 %v2812, %v2814
      %vm2816 = vcmask 58368
      %2817 = vst.msk [vmem:[%s5] sm:$0x3] %vm2816, %v2815
      %p2818 = scmp.lt.s32.totalorder %s17, 1
      %s2819 = scalar_select %p2818, %s17, 1
      %s2820 = smul.addr %s2819, 18
      %s2821 = smul.addr %s2820, 8
      %s2822 = scalar_lea.vmem %s4, %s2821
      // Predicated region
      $region41: #{block_forward.4} parent=35 // pred_check
        %p2823 = pneg %p124
      $region42: #{block_forward.4} parent=35 // pred_check_branch
        %2825 = sbr.rel (%p2823) target = $region44
      $region43: #{block_forward.4} parent=35 // pred_region
        _
      $region44: #{block_forward.4} parent=35 // pred_fallthru
        _
      // Predicated region
      $region45: #{block_forward.4} parent=35 // pred_check
        %p2826 = pneg %p145
      $region46: #{block_forward.4} parent=35 // pred_check_branch
        %2828 = sbr.rel (%p2826) target = $region48
      $region47: #{block_forward.4} parent=35 // pred_region
        _
      $region48: #{block_forward.4} parent=35 // pred_fallthru
        _
      // Predicated region
      $region49: #{block_forward.4} parent=35 // pred_check
        %p2829 = pneg %p145
      $region50: #{block_forward.4} parent=35 // pred_check_branch
        %2831 = sbr.rel (%p2829) target = $region52
      $region51: #{block_forward.4} parent=35 // pred_region
        _
      $region52: #{block_forward.4} parent=35 // pred_fallthru
        _
    $region36: #{block_forward.4} parent=5 // pred_fallthru
      _
    %p2832 = scmp.le.s32.totalorder 2, %s12
    // Predicated region
    $region53: #{block_forward.4} parent=5 // pred_check
      %p2833 = pneg %p2832
    $region54: #{block_forward.4} parent=5 // pred_check_branch
      %2835 = sbr.rel (%p2833) target = $region56
    $region55: #{block_forward.4} parent=5 // pred_region
      %s2836 = ssub.s32 %s12, 2
      // Predicated region
      $region57: #{block_forward.4} parent=55 // pred_check
        %p2837 = pneg %p130
      $region58: #{block_forward.4} parent=55 // pred_check_branch
        %2839 = sbr.rel (%p2837) target = $region60
      $region59: #{block_forward.4} parent=55 // pred_region
        %p2840 = scmp.lt.s32.totalorder %s18, 1
        %s2841 = scalar_select %p2840, %s18, 1
        %s2842 = smul.addr %s2841, 18
        %s2843 = smul.addr %s2842, 8
        %s2844 = scalar_lea.vmem %s4, %s2843
      $region60: #{block_forward.4} parent=55 // pred_fallthru
        _
    $region56: #{block_forward.4} parent=5 // pred_fallthru
      _
  $region6: #{block_forward.4} parent=0 // loop_footer
    %s16 = sadd.s32 1, %s12
  $region7: #{block_forward.4} parent=0 // loop_footer_branch
    %11 = sbr.rel target = $region3
  $region8: #{block_forward.4} parent=0 // loop_exit
    _

</llo_original>
